<compile_context>
chip_gen: v7x
topology: tpu7x:2x2x1
jax: 0.10.0
libtpu: 0.0.40
codegen_flags: <defaults>
</compile_context>

<pallas_src>
import functools

import jax
import jax.numpy as jnp
from jax import lax
from jax.experimental import pallas as pl
from jax.experimental.pallas import tpu as pltpu

EPS = 1e-5  # PyTorch BatchNorm2d default

_COMPILER_PARAMS = pltpu.CompilerParams(
    dimension_semantics=("parallel",),      # batch grid axis -> both TCs on v7x
    vmem_limit_bytes=32 * 1024 * 1024,
)


def conv_bn_stats_kernel(x_ref, scale_ref, shift_ref, w_ref, b_ref,
                         y_ref, stats_ref, zpad_ref, *, H, W, apply_relu):
    """One image tile of:  a = relu?(x*scale + shift);  y = conv3x3(a) + b.

    x_ref:     (1, H*W, Cin)   f32  input tile (spatial flattened, channels last)
    scale_ref: (1, Cin)        f32  per-channel affine (BN of the previous layer;
    shift_ref: (1, Cin)        f32  identity for the first conv stage)
    w_ref:     (9*Cin, Cout)   bf16 conv weights with the 3x3 taps folded into K
    b_ref:     (1, Cout)       f32  conv bias
    y_ref:     (1, H*W, Cout)  f32  pre-BN conv output
    stats_ref: (1, 2, Cout)    f32  per-tile [sum(y); sum(y*y)] for global BN
    zpad_ref:  (H+2, W+2, Cin) f32  VMEM scratch holding the zero-padded input
    """
    M, Cin = x_ref.shape[1], x_ref.shape[2]

    # Previous-layer BN apply (or identity) + optional leading ReLU (VPU, f32).
    a = x_ref[0] * scale_ref[...] + shift_ref[...]
    if apply_relu:
        a = jnp.maximum(a, 0.0)
    a = a.reshape(H, W, Cin)                      # split leading dim only

    # Zero only the 1-pixel border of the padded scratch; the interior is fully
    # overwritten below.  Done every step so it is megacore-partition safe.
    zrow = jnp.zeros((1, W + 2, Cin), jnp.float32)
    zcol = jnp.zeros((H + 2, 1, Cin), jnp.float32)
    zpad_ref[0:1, :, :] = zrow
    zpad_ref[H + 1:H + 2, :, :] = zrow
    zpad_ref[:, 0:1, :] = zcol
    zpad_ref[:, W + 1:W + 2, :] = zcol
    zpad_ref[1:H + 1, 1:W + 1, :] = a

    # In-kernel im2col: concatenate the nine taps along the channel (lane) axis
    # so the whole conv is a single MXU matmul with K = 9*Cin instead of nine
    # K=Cin matmuls.  The trailing reshape only merges leading dims (no relayout).
    taps = [zpad_ref[dy:dy + H, dx:dx + W, :]
            for dy in range(3) for dx in range(3)]
    patch = jnp.concatenate(taps, axis=-1).reshape(M, 9 * Cin)

    # Feed the MXU bf16 operands (v6e/v7x fast path), accumulate in f32.
    y = jnp.dot(patch.astype(jnp.bfloat16), w_ref[...],
                preferred_element_type=jnp.float32)
    y = y + b_ref[...]
    y_ref[0] = y

    # BN statistics fused into the conv epilogue (single pass over y).
    s = jnp.sum(y, axis=0, keepdims=True)
    ss = jnp.sum(y * y, axis=0, keepdims=True)
    stats_ref[0] = jnp.concatenate([s, ss], axis=0)


def affine_kernel(y_ref, scale_ref, shift_ref, o_ref):
    """Elementwise y*scale + shift (BN2 apply); lane-dense load/store."""
    o_ref[...] = y_ref[...] * scale_ref[...] + shift_ref[...]


def _conv_stage(x_flat, scale, shift, wmat, bias, *, H, W, apply_relu):
    """One conv stage over per-image tiles: returns (pre-BN conv output,
    per-tile partial BN statistics)."""
    N, M, Cin = x_flat.shape
    Cout = wmat.shape[-1]
    kernel = functools.partial(conv_bn_stats_kernel, H=H, W=W,
                               apply_relu=apply_relu)
    return pl.pallas_call(
        kernel,
        grid=(N,),
        in_specs=[
            pl.BlockSpec((1, M, Cin), lambda i: (i, 0, 0)),
            pl.BlockSpec((1, Cin), lambda i: (0, 0)),
            pl.BlockSpec((1, Cin), lambda i: (0, 0)),
            pl.BlockSpec((9 * Cin, Cout), lambda i: (0, 0)),
            pl.BlockSpec((1, Cout), lambda i: (0, 0)),
        ],
        out_specs=(
            pl.BlockSpec((1, M, Cout), lambda i: (i, 0, 0)),
            pl.BlockSpec((1, 2, Cout), lambda i: (i, 0, 0)),
        ),
        out_shape=(
            jax.ShapeDtypeStruct((N, M, Cout), jnp.float32),
            jax.ShapeDtypeStruct((N, 2, Cout), jnp.float32),
        ),
        scratch_shapes=[pltpu.VMEM((H + 2, W + 2, Cin), jnp.float32)],
        compiler_params=_COMPILER_PARAMS,
    )(x_flat, scale, shift, wmat, bias)


def _finalize_bn(stats, gamma, beta, count):
    """Fold global training-mode (biased-variance) BN stats into scale/shift."""
    s = jnp.sum(stats[:, 0, :], axis=0)
    ss = jnp.sum(stats[:, 1, :], axis=0)
    mu = s / count
    # E[y^2] - E[y]^2 in f32 is fine at these magnitudes; guard tiny negatives.
    var = jnp.maximum(ss / count - mu * mu, 0.0)
    scale = gamma * lax.rsqrt(var + EPS)
    shift = beta - mu * scale
    return scale, shift


def block_forward(x_nchw, params):
    """NCHW in -> NCHW out, matching the PyTorch module in training mode."""
    w1, b1, g1, be1, w2, b2, g2, be2 = params
    N, Cin, H, W = x_nchw.shape
    Cmid = w1.shape[-1]
    Cout = w2.shape[-1]
    M = H * W
    count = jnp.float32(N * M)

    # Boundary layout conversion stays in XLA (one fused transpose each way);
    # padding, im2col, matmuls and BN statistics all run inside the kernels.
    x_flat = jnp.transpose(x_nchw, (0, 2, 3, 1)).astype(jnp.float32)
    x_flat = x_flat.reshape(N, M, Cin)

    # Fold (kh, kw, Cin) into the contraction dim; MXU operands in bf16.
    w1mat = w1.reshape(9 * Cin, Cmid).astype(jnp.bfloat16)
    w2mat = w2.reshape(9 * Cmid, Cout).astype(jnp.bfloat16)

    # Stage 1: ReLU -> conv1 (+bias), partial BN1 stats (identity pre-affine).
    ones_c = jnp.ones((1, Cin), jnp.float32)
    zeros_c = jnp.zeros((1, Cin), jnp.float32)
    y1, st1 = _conv_stage(x_flat, ones_c, zeros_c, w1mat, b1.reshape(1, Cmid),
                          H=H, W=W, apply_relu=True)
    scale1, shift1 = _finalize_bn(st1, g1, be1, count)

    # Stage 2: BN1 apply -> conv2 (+bias), partial BN2 stats.
    y2, st2 = _conv_stage(y1, scale1.reshape(1, Cmid), shift1.reshape(1, Cmid),
                          w2mat, b2.reshape(1, Cout),
                          H=H, W=W, apply_relu=False)
    scale2, shift2 = _finalize_bn(st2, g2, be2, count)

    # Stage 3: BN2 apply.  Use a lane-dense (last dim 128) view when possible so
    # the output store is a full-lane unmasked vst instead of a Cout-wide one.
    hwc = M * Cout
    if hwc % 128 == 0 and 128 % Cout == 0:
        rows = hwc // 128
        y2v = y2.reshape(N, rows, 128)                        # free: contiguous
        sc = jnp.tile(scale2, 128 // Cout).reshape(1, 1, 128)
        sh = jnp.tile(shift2, 128 // Cout).reshape(1, 1, 128)
        blk = (1, rows, 128)
    else:
        y2v = y2                                              # (N, M, Cout) fallback
        sc = scale2.reshape(1, 1, Cout)
        sh = shift2.reshape(1, 1, Cout)
        blk = (1, M, Cout)

    out = pl.pallas_call(
        affine_kernel,
        grid=(N,),
        in_specs=[
            pl.BlockSpec(blk, lambda i: (i, 0, 0)),
            pl.BlockSpec((1, 1, blk[-1]), lambda i: (0, 0, 0)),
            pl.BlockSpec((1, 1, blk[-1]), lambda i: (0, 0, 0)),
        ],
        out_specs=pl.BlockSpec(blk, lambda i: (i, 0, 0)),
        out_shape=jax.ShapeDtypeStruct(y2v.shape, jnp.float32),
        compiler_params=_COMPILER_PARAMS,
    )(y2v, sc, sh)

    out_nhwc = out.reshape(N, H, W, Cout)
    return jnp.transpose(out_nhwc, (0, 3, 1, 2))


def block_reference(x_nchw, params, conv_dtype=jnp.float32):
    """Pure-JAX reference (lax.conv) with identical training-mode BN semantics.
    conv_dtype=bfloat16 mirrors the kernel's MXU input precision."""
    w1, b1, g1, be1, w2, b2, g2, be2 = params

    def conv(h, w):
        return lax.conv_general_dilated(
            h.astype(conv_dtype), w.astype(conv_dtype), (1, 1), 'SAME',
            dimension_numbers=('NHWC', 'HWIO', 'NHWC'),
            preferred_element_type=jnp.float32)

    def bn(y, gamma, beta):
        mu = jnp.mean(y, axis=(0, 1, 2), keepdims=True)
        var = jnp.mean((y - mu) ** 2, axis=(0, 1, 2), keepdims=True)  # biased
        return (y - mu) * (gamma * lax.rsqrt(var + EPS)) + beta

    x = jnp.transpose(x_nchw, (0, 2, 3, 1)).astype(jnp.float32)
    h = jnp.maximum(x, 0.0)
    y1 = conv(h, w1) + b1
    z1 = bn(y1, g1, be1)
    y2 = conv(z1, w2) + b2
    z2 = bn(y2, g2, be2)
    return jnp.transpose(z2, (0, 3, 1, 2))


def make_params(key, in_channels, middle_channels, out_channels):
    ks = jax.random.split(key, 8)
    w1 = 0.2 * jax.random.normal(ks[0], (3, 3, in_channels, middle_channels), jnp.float32)
    b1 = 0.1 * jax.random.normal(ks[1], (middle_channels,), jnp.float32)
    g1 = 1.0 + 0.1 * jax.random.normal(ks[2], (middle_channels,), jnp.float32)
    be1 = 0.1 * jax.random.normal(ks[3], (middle_channels,), jnp.float32)
    w2 = 0.2 * jax.random.normal(ks[4], (3, 3, middle_channels, out_channels), jnp.float32)
    b2 = 0.1 * jax.random.normal(ks[5], (out_channels,), jnp.float32)
    g2 = 1.0 + 0.1 * jax.random.normal(ks[6], (out_channels,), jnp.float32)
    be2 = 0.1 * jax.random.normal(ks[7], (out_channels,), jnp.float32)
    return (w1, b1, g1, be1, w2, b2, g2, be2)


if __name__ == "__main__":
    key = jax.random.PRNGKey(0)
    k_x, k_p = jax.random.split(key)

    N, Cin, Cmid, Cout, H, W = 2, 4, 8, 4, 16, 16
    x = jax.random.normal(k_x, (N, Cin, H, W), jnp.float32)
    params = make_params(k_p, Cin, Cmid, Cout)

    out = jax.block_until_ready(jax.jit(block_forward)(x, params))
    assert out.shape == (N, Cout, H, W)

    # Tight check vs. a reference that mirrors the kernel's bf16 MXU inputs,
    # plus a loose sanity check vs. the pure-f32 reference.
    ref_bf16 = jax.block_until_ready(block_reference(x, params, jnp.bfloat16))
    ref_f32 = jax.block_until_ready(block_reference(x, params, jnp.float32))
    err_m = jnp.max(jnp.abs(out - ref_bf16))
    err_f = jnp.max(jnp.abs(out - ref_f32))
    assert jnp.allclose(out, ref_bf16, rtol=2e-2, atol=2e-2), \
        f"max abs err vs bf16-matched reference: {err_m}"
    assert jnp.allclose(out, ref_f32, rtol=2e-1, atol=2e-1), \
        f"max abs err vs f32 reference: {err_f}"

    print("KERNEL_OK")
</pallas_src>

<mosaic_0001>
module attributes {stable_mosaic.version = 11 : i64} {
  func.func @conv_bn_stats_kernel(%arg0: i32, %arg1: memref<1x256x8xf32, #tpu.memory_space<vmem>>, %arg2: memref<1x8xf32, #tpu.memory_space<vmem>>, %arg3: memref<1x8xf32, #tpu.memory_space<vmem>>, %arg4: memref<72x4xbf16, #tpu.memory_space<vmem>>, %arg5: memref<1x4xf32, #tpu.memory_space<vmem>>, %arg6: memref<1x256x4xf32, #tpu.memory_space<vmem>>, %arg7: memref<1x2x4xf32, #tpu.memory_space<vmem>>, %arg8: memref<18x18x8xf32, #tpu.memory_space<vmem>>) attributes {dimension_semantics = [#tpu.dimension_semantics<parallel>], iteration_bounds = array<i64: 2>, scalar_prefetch = 0 : i64, scratch_operands = 1 : i64, tpu.core_type = #tpu.core_type<tc>, window_params = [{transform_indices = @transform_0, window_bounds = array<i64: 1, 256, 8>}, {pipeline_mode = #tpu.pipeline_mode<synchronous>, transform_indices = @transform_1, window_bounds = array<i64: 1, 8>}, {pipeline_mode = #tpu.pipeline_mode<synchronous>, transform_indices = @transform_2, window_bounds = array<i64: 1, 8>}, {pipeline_mode = #tpu.pipeline_mode<synchronous>, transform_indices = @transform_3, window_bounds = array<i64: 72, 4>}, {pipeline_mode = #tpu.pipeline_mode<synchronous>, transform_indices = @transform_4, window_bounds = array<i64: 1, 4>}, {transform_indices = @transform_5, window_bounds = array<i64: 1, 256, 4>}, {transform_indices = @transform_6, window_bounds = array<i64: 1, 2, 4>}]} {
    %c0 = arith.constant 0 : index
    %c0_0 = arith.constant 0 : index
    %c0_1 = arith.constant 0 : index
    %0 = vector.load %arg1[%c0, %c0_0, %c0_1] : memref<1x256x8xf32, #tpu.memory_space<vmem>>, vector<1x256x8xf32>
    %1 = vector.shape_cast %0 : vector<1x256x8xf32> to vector<256x8xf32>
    %c0_2 = arith.constant 0 : index
    %c0_3 = arith.constant 0 : index
    %2 = vector.load %arg2[%c0_2, %c0_3] : memref<1x8xf32, #tpu.memory_space<vmem>>, vector<1x8xf32>
    %3 = vector.broadcast %2 : vector<1x8xf32> to vector<256x8xf32>
    %4 = arith.mulf %1, %3 : vector<256x8xf32>
    %c0_4 = arith.constant 0 : index
    %c0_5 = arith.constant 0 : index
    %5 = vector.load %arg3[%c0_4, %c0_5] : memref<1x8xf32, #tpu.memory_space<vmem>>, vector<1x8xf32>
    %6 = vector.broadcast %5 : vector<1x8xf32> to vector<256x8xf32>
    %7 = arith.addf %4, %6 : vector<256x8xf32>
    %8 = vector.shape_cast %7 : vector<256x8xf32> to vector<16x16x8xf32>
    %cst = arith.constant 0.000000e+00 : f32
    %9 = vector.broadcast %cst : f32 to vector<1x18x8xf32>
    %cst_6 = arith.constant 0.000000e+00 : f32
    %10 = vector.broadcast %cst_6 : f32 to vector<18x1x8xf32>
    %c0_7 = arith.constant 0 : index
    %c0_8 = arith.constant 0 : index
    %c0_9 = arith.constant 0 : index
    %11 = vector.load %arg8[%c0_7, %c0_8, %c0_9] : memref<18x18x8xf32, #tpu.memory_space<vmem>>, vector<1x18x8xf32>
    tpu.vector_store %arg8[%c0_7, %c0_8, %c0_9], %9 {strides = array<i32>} : memref<18x18x8xf32, #tpu.memory_space<vmem>>, vector<1x18x8xf32>,
    %c17 = arith.constant 17 : index
    %c0_10 = arith.constant 0 : index
    %c0_11 = arith.constant 0 : index
    %12 = vector.load %arg8[%c17, %c0_10, %c0_11] : memref<18x18x8xf32, #tpu.memory_space<vmem>>, vector<1x18x8xf32>
    tpu.vector_store %arg8[%c17, %c0_10, %c0_11], %9 {strides = array<i32>} : memref<18x18x8xf32, #tpu.memory_space<vmem>>, vector<1x18x8xf32>,
    %c0_12 = arith.constant 0 : index
    %c0_13 = arith.constant 0 : index
    %c0_14 = arith.constant 0 : index
    %13 = vector.load %arg8[%c0_12, %c0_13, %c0_14] : memref<18x18x8xf32, #tpu.memory_space<vmem>>, vector<18x1x8xf32>
    tpu.vector_store %arg8[%c0_12, %c0_13, %c0_14], %10 {strides = array<i32>} : memref<18x18x8xf32, #tpu.memory_space<vmem>>, vector<18x1x8xf32>,
    %c0_15 = arith.constant 0 : index
    %c17_16 = arith.constant 17 : index
    %c0_17 = arith.constant 0 : index
    %14 = vector.load %arg8[%c0_15, %c17_16, %c0_17] : memref<18x18x8xf32, #tpu.memory_space<vmem>>, vector<18x1x8xf32>
    tpu.vector_store %arg8[%c0_15, %c17_16, %c0_17], %10 {strides = array<i32>} : memref<18x18x8xf32, #tpu.memory_space<vmem>>, vector<18x1x8xf32>,
    %c1 = arith.constant 1 : index
    %c1_18 = arith.constant 1 : index
    %c0_19 = arith.constant 0 : index
    %15 = vector.load %arg8[%c1, %c1_18, %c0_19] : memref<18x18x8xf32, #tpu.memory_space<vmem>>, vector<16x16x8xf32>
    tpu.vector_store %arg8[%c1, %c1_18, %c0_19], %8 {strides = array<i32>} : memref<18x18x8xf32, #tpu.memory_space<vmem>>, vector<16x16x8xf32>,
    %c0_20 = arith.constant 0 : index
    %c0_21 = arith.constant 0 : index
    %c0_22 = arith.constant 0 : index
    %16 = vector.load %arg8[%c0_20, %c0_21, %c0_22] : memref<18x18x8xf32, #tpu.memory_space<vmem>>, vector<16x16x8xf32>
    %c0_23 = arith.constant 0 : index
    %c1_24 = arith.constant 1 : index
    %c0_25 = arith.constant 0 : index
    %17 = vector.load %arg8[%c0_23, %c1_24, %c0_25] : memref<18x18x8xf32, #tpu.memory_space<vmem>>, vector<16x16x8xf32>
    %c0_26 = arith.constant 0 : index
    %c2 = arith.constant 2 : index
    %c0_27 = arith.constant 0 : index
    %18 = vector.load %arg8[%c0_26, %c2, %c0_27] : memref<18x18x8xf32, #tpu.memory_space<vmem>>, vector<16x16x8xf32>
    %c1_28 = arith.constant 1 : index
    %c0_29 = arith.constant 0 : index
    %c0_30 = arith.constant 0 : index
    %19 = vector.load %arg8[%c1_28, %c0_29, %c0_30] : memref<18x18x8xf32, #tpu.memory_space<vmem>>, vector<16x16x8xf32>
    %c1_31 = arith.constant 1 : index
    %c1_32 = arith.constant 1 : index
    %c0_33 = arith.constant 0 : index
    %20 = vector.load %arg8[%c1_31, %c1_32, %c0_33] : memref<18x18x8xf32, #tpu.memory_space<vmem>>, vector<16x16x8xf32>
    %c1_34 = arith.constant 1 : index
    %c2_35 = arith.constant 2 : index
    %c0_36 = arith.constant 0 : index
    %21 = vector.load %arg8[%c1_34, %c2_35, %c0_36] : memref<18x18x8xf32, #tpu.memory_space<vmem>>, vector<16x16x8xf32>
    %c2_37 = arith.constant 2 : index
    %c0_38 = arith.constant 0 : index
    %c0_39 = arith.constant 0 : index
    %22 = vector.load %arg8[%c2_37, %c0_38, %c0_39] : memref<18x18x8xf32, #tpu.memory_space<vmem>>, vector<16x16x8xf32>
    %c2_40 = arith.constant 2 : index
    %c1_41 = arith.constant 1 : index
    %c0_42 = arith.constant 0 : index
    %23 = vector.load %arg8[%c2_40, %c1_41, %c0_42] : memref<18x18x8xf32, #tpu.memory_space<vmem>>, vector<16x16x8xf32>
    %c2_43 = arith.constant 2 : index
    %c2_44 = arith.constant 2 : index
    %c0_45 = arith.constant 0 : index
    %24 = vector.load %arg8[%c2_43, %c2_44, %c0_45] : memref<18x18x8xf32, #tpu.memory_space<vmem>>, vector<16x16x8xf32>
    %25 = tpu.concatenate %16, %17, %18, %19, %20, %21, %22, %23, %24 in 2 : vector<16x16x8xf32>, vector<16x16x8xf32>, vector<16x16x8xf32>, vector<16x16x8xf32>, vector<16x16x8xf32>, vector<16x16x8xf32>, vector<16x16x8xf32>, vector<16x16x8xf32>, vector<16x16x8xf32> -> vector<16x16x72xf32>
    %26 = vector.shape_cast %25 : vector<16x16x72xf32> to vector<256x72xf32>
    %27 = arith.truncf %26 : vector<256x72xf32> to vector<256x72xbf16>
    %c0_46 = arith.constant 0 : index
    %c0_47 = arith.constant 0 : index
    %28 = vector.load %arg4[%c0_46, %c0_47] : memref<72x4xbf16, #tpu.memory_space<vmem>>, vector<72x4xbf16>
    %cst_48 = arith.constant dense<0.000000e+00> : vector<256x4xf32>
    %29 = tpu.matmul %27, %28, %cst_48 {dimension_numbers = #tpu.dot_dimension_numbers<[1], [0], [0], [1], [0, 0, 1, 1], [], []>} : vector<256x72xbf16>, vector<72x4xbf16>, vector<256x4xf32> -> vector<256x4xf32>
    %c0_49 = arith.constant 0 : index
    %c0_50 = arith.constant 0 : index
    %30 = vector.load %arg5[%c0_49, %c0_50] : memref<1x4xf32, #tpu.memory_space<vmem>>, vector<1x4xf32>
    %31 = vector.broadcast %30 : vector<1x4xf32> to vector<256x4xf32>
    %32 = arith.addf %29, %31 : vector<256x4xf32>
    %c0_51 = arith.constant 0 : index
    %c0_52 = arith.constant 0 : index
    %c0_53 = arith.constant 0 : index
    %33 = vector.load %arg6[%c0_51, %c0_52, %c0_53] : memref<1x256x4xf32, #tpu.memory_space<vmem>>, vector<1x256x4xf32>
    %34 = vector.shape_cast %33 : vector<1x256x4xf32> to vector<256x4xf32>
    %35 = vector.shape_cast %32 : vector<256x4xf32> to vector<1x256x4xf32>
    tpu.vector_store %arg6[%c0_51, %c0_52, %c0_53], %35 {strides = array<i32>} : memref<1x256x4xf32, #tpu.memory_space<vmem>>, vector<1x256x4xf32>,
    %cst_54 = arith.constant dense<0.000000e+00> : vector<4xf32>
    %36 = vector.multi_reduction <add>, %32, %cst_54 [0] : vector<256x4xf32> to vector<4xf32>
    %37 = vector.shape_cast %36 : vector<4xf32> to vector<1x4xf32>
    %38 = arith.mulf %32, %32 : vector<256x4xf32>
    %cst_55 = arith.constant dense<0.000000e+00> : vector<4xf32>
    %39 = vector.multi_reduction <add>, %38, %cst_55 [0] : vector<256x4xf32> to vector<4xf32>
    %40 = vector.shape_cast %39 : vector<4xf32> to vector<1x4xf32>
    %41 = tpu.concatenate %37, %40 in 0 : vector<1x4xf32>, vector<1x4xf32> -> vector<2x4xf32>
    %c0_56 = arith.constant 0 : index
    %c0_57 = arith.constant 0 : index
    %c0_58 = arith.constant 0 : index
    %42 = vector.load %arg7[%c0_56, %c0_57, %c0_58] : memref<1x2x4xf32, #tpu.memory_space<vmem>>, vector<1x2x4xf32>
    %43 = vector.shape_cast %42 : vector<1x2x4xf32> to vector<2x4xf32>
    %44 = vector.shape_cast %41 : vector<2x4xf32> to vector<1x2x4xf32>
    tpu.vector_store %arg7[%c0_56, %c0_57, %c0_58], %44 {strides = array<i32>} : memref<1x2x4xf32, #tpu.memory_space<vmem>>, vector<1x2x4xf32>,
    return
  }
  func.func @transform_0(%arg0: i32) -> (i32, i32, i32) {
    %c0_i32 = arith.constant 0 : i32
    %c0_i32_0 = arith.constant 0 : i32
    %c0_i32_1 = arith.constant 0 : i32
    return %arg0, %c0_i32, %c0_i32_0 : i32, i32, i32
  }
  func.func @transform_1(%arg0: i32) -> (i32, i32) {
    %c0_i32 = arith.constant 0 : i32
    %c0_i32_0 = arith.constant 0 : i32
    %c0_i32_1 = arith.constant 0 : i32
    return %c0_i32, %c0_i32_0 : i32, i32
  }
  func.func @transform_2(%arg0: i32) -> (i32, i32) {
    %c0_i32 = arith.constant 0 : i32
    %c0_i32_0 = arith.constant 0 : i32
    %c0_i32_1 = arith.constant 0 : i32
    return %c0_i32, %c0_i32_0 : i32, i32
  }
  func.func @transform_3(%arg0: i32) -> (i32, i32) {
    %c0_i32 = arith.constant 0 : i32
    %c0_i32_0 = arith.constant 0 : i32
    %c0_i32_1 = arith.constant 0 : i32
    return %c0_i32, %c0_i32_0 : i32, i32
  }
  func.func @transform_4(%arg0: i32) -> (i32, i32) {
    %c0_i32 = arith.constant 0 : i32
    %c0_i32_0 = arith.constant 0 : i32
    %c0_i32_1 = arith.constant 0 : i32
    return %c0_i32, %c0_i32_0 : i32, i32
  }
  func.func @transform_5(%arg0: i32) -> (i32, i32, i32) {
    %c0_i32 = arith.constant 0 : i32
    %c0_i32_0 = arith.constant 0 : i32
    %c0_i32_1 = arith.constant 0 : i32
    return %arg0, %c0_i32, %c0_i32_0 : i32, i32, i32
  }
  func.func @transform_6(%arg0: i32) -> (i32, i32, i32) {
    %c0_i32 = arith.constant 0 : i32
    %c0_i32_0 = arith.constant 0 : i32
    %c0_i32_1 = arith.constant 0 : i32
    return %arg0, %c0_i32, %c0_i32_0 : i32, i32, i32
  }
}

module attributes {stable_mosaic.version = 11 : i64} {
  func.func @conv_bn_stats_kernel(%arg0: i32, %arg1: memref<1x256x4xf32, #tpu.memory_space<vmem>>, %arg2: memref<1x4xf32, #tpu.memory_space<vmem>>, %arg3: memref<1x4xf32, #tpu.memory_space<vmem>>, %arg4: memref<36x8xbf16, #tpu.memory_space<vmem>>, %arg5: memref<1x8xf32, #tpu.memory_space<vmem>>, %arg6: memref<1x256x8xf32, #tpu.memory_space<vmem>>, %arg7: memref<1x2x8xf32, #tpu.memory_space<vmem>>, %arg8: memref<18x18x4xf32, #tpu.memory_space<vmem>>) attributes {dimension_semantics = [#tpu.dimension_semantics<parallel>], iteration_bounds = array<i64: 2>, scalar_prefetch = 0 : i64, scratch_operands = 1 : i64, tpu.core_type = #tpu.core_type<tc>, window_params = [{transform_indices = @transform_0, window_bounds = array<i64: 1, 256, 4>}, {pipeline_mode = #tpu.pipeline_mode<synchronous>, transform_indices = @transform_1, window_bounds = array<i64: 1, 4>}, {pipeline_mode = #tpu.pipeline_mode<synchronous>, transform_indices = @transform_2, window_bounds = array<i64: 1, 4>}, {pipeline_mode = #tpu.pipeline_mode<synchronous>, transform_indices = @transform_3, window_bounds = array<i64: 36, 8>}, {pipeline_mode = #tpu.pipeline_mode<synchronous>, transform_indices = @transform_4, window_bounds = array<i64: 1, 8>}, {transform_indices = @transform_5, window_bounds = array<i64: 1, 256, 8>}, {transform_indices = @transform_6, window_bounds = array<i64: 1, 2, 8>}]} {
    %c0 = arith.constant 0 : index
    %c0_0 = arith.constant 0 : index
    %c0_1 = arith.constant 0 : index
    %0 = vector.load %arg1[%c0, %c0_0, %c0_1] : memref<1x256x4xf32, #tpu.memory_space<vmem>>, vector<1x256x4xf32>
    %1 = vector.shape_cast %0 : vector<1x256x4xf32> to vector<256x4xf32>
    %c0_2 = arith.constant 0 : index
    %c0_3 = arith.constant 0 : index
    %2 = vector.load %arg2[%c0_2, %c0_3] : memref<1x4xf32, #tpu.memory_space<vmem>>, vector<1x4xf32>
    %3 = vector.broadcast %2 : vector<1x4xf32> to vector<256x4xf32>
    %4 = arith.mulf %1, %3 : vector<256x4xf32>
    %c0_4 = arith.constant 0 : index
    %c0_5 = arith.constant 0 : index
    %5 = vector.load %arg3[%c0_4, %c0_5] : memref<1x4xf32, #tpu.memory_space<vmem>>, vector<1x4xf32>
    %6 = vector.broadcast %5 : vector<1x4xf32> to vector<256x4xf32>
    %7 = arith.addf %4, %6 : vector<256x4xf32>
    %cst = arith.constant 0.000000e+00 : f32
    %8 = vector.broadcast %cst : f32 to vector<256x4xf32>
    %9 = arith.maximumf %7, %8 : vector<256x4xf32>
    %10 = vector.shape_cast %9 : vector<256x4xf32> to vector<16x16x4xf32>
    %cst_6 = arith.constant 0.000000e+00 : f32
    %11 = vector.broadcast %cst_6 : f32 to vector<1x18x4xf32>
    %cst_7 = arith.constant 0.000000e+00 : f32
    %12 = vector.broadcast %cst_7 : f32 to vector<18x1x4xf32>
    %c0_8 = arith.constant 0 : index
    %c0_9 = arith.constant 0 : index
    %c0_10 = arith.constant 0 : index
    %13 = vector.load %arg8[%c0_8, %c0_9, %c0_10] : memref<18x18x4xf32, #tpu.memory_space<vmem>>, vector<1x18x4xf32>
    tpu.vector_store %arg8[%c0_8, %c0_9, %c0_10], %11 {strides = array<i32>} : memref<18x18x4xf32, #tpu.memory_space<vmem>>, vector<1x18x4xf32>,
    %c17 = arith.constant 17 : index
    %c0_11 = arith.constant 0 : index
    %c0_12 = arith.constant 0 : index
    %14 = vector.load %arg8[%c17, %c0_11, %c0_12] : memref<18x18x4xf32, #tpu.memory_space<vmem>>, vector<1x18x4xf32>
    tpu.vector_store %arg8[%c17, %c0_11, %c0_12], %11 {strides = array<i32>} : memref<18x18x4xf32, #tpu.memory_space<vmem>>, vector<1x18x4xf32>,
    %c0_13 = arith.constant 0 : index
    %c0_14 = arith.constant 0 : index
    %c0_15 = arith.constant 0 : index
    %15 = vector.load %arg8[%c0_13, %c0_14, %c0_15] : memref<18x18x4xf32, #tpu.memory_space<vmem>>, vector<18x1x4xf32>
    tpu.vector_store %arg8[%c0_13, %c0_14, %c0_15], %12 {strides = array<i32>} : memref<18x18x4xf32, #tpu.memory_space<vmem>>, vector<18x1x4xf32>,
    %c0_16 = arith.constant 0 : index
    %c17_17 = arith.constant 17 : index
    %c0_18 = arith.constant 0 : index
    %16 = vector.load %arg8[%c0_16, %c17_17, %c0_18] : memref<18x18x4xf32, #tpu.memory_space<vmem>>, vector<18x1x4xf32>
    tpu.vector_store %arg8[%c0_16, %c17_17, %c0_18], %12 {strides = array<i32>} : memref<18x18x4xf32, #tpu.memory_space<vmem>>, vector<18x1x4xf32>,
    %c1 = arith.constant 1 : index
    %c1_19 = arith.constant 1 : index
    %c0_20 = arith.constant 0 : index
    %17 = vector.load %arg8[%c1, %c1_19, %c0_20] : memref<18x18x4xf32, #tpu.memory_space<vmem>>, vector<16x16x4xf32>
    tpu.vector_store %arg8[%c1, %c1_19, %c0_20], %10 {strides = array<i32>} : memref<18x18x4xf32, #tpu.memory_space<vmem>>, vector<16x16x4xf32>,
    %c0_21 = arith.constant 0 : index
    %c0_22 = arith.constant 0 : index
    %c0_23 = arith.constant 0 : index
    %18 = vector.load %arg8[%c0_21, %c0_22, %c0_23] : memref<18x18x4xf32, #tpu.memory_space<vmem>>, vector<16x16x4xf32>
    %c0_24 = arith.constant 0 : index
    %c1_25 = arith.constant 1 : index
    %c0_26 = arith.constant 0 : index
    %19 = vector.load %arg8[%c0_24, %c1_25, %c0_26] : memref<18x18x4xf32, #tpu.memory_space<vmem>>, vector<16x16x4xf32>
    %c0_27 = arith.constant 0 : index
    %c2 = arith.constant 2 : index
    %c0_28 = arith.constant 0 : index
    %20 = vector.load %arg8[%c0_27, %c2, %c0_28] : memref<18x18x4xf32, #tpu.memory_space<vmem>>, vector<16x16x4xf32>
    %c1_29 = arith.constant 1 : index
    %c0_30 = arith.constant 0 : index
    %c0_31 = arith.constant 0 : index
    %21 = vector.load %arg8[%c1_29, %c0_30, %c0_31] : memref<18x18x4xf32, #tpu.memory_space<vmem>>, vector<16x16x4xf32>
    %c1_32 = arith.constant 1 : index
    %c1_33 = arith.constant 1 : index
    %c0_34 = arith.constant 0 : index
    %22 = vector.load %arg8[%c1_32, %c1_33, %c0_34] : memref<18x18x4xf32, #tpu.memory_space<vmem>>, vector<16x16x4xf32>
    %c1_35 = arith.constant 1 : index
    %c2_36 = arith.constant 2 : index
    %c0_37 = arith.constant 0 : index
    %23 = vector.load %arg8[%c1_35, %c2_36, %c0_37] : memref<18x18x4xf32, #tpu.memory_space<vmem>>, vector<16x16x4xf32>
    %c2_38 = arith.constant 2 : index
    %c0_39 = arith.constant 0 : index
    %c0_40 = arith.constant 0 : index
    %24 = vector.load %arg8[%c2_38, %c0_39, %c0_40] : memref<18x18x4xf32, #tpu.memory_space<vmem>>, vector<16x16x4xf32>
    %c2_41 = arith.constant 2 : index
    %c1_42 = arith.constant 1 : index
    %c0_43 = arith.constant 0 : index
    %25 = vector.load %arg8[%c2_41, %c1_42, %c0_43] : memref<18x18x4xf32, #tpu.memory_space<vmem>>, vector<16x16x4xf32>
    %c2_44 = arith.constant 2 : index
    %c2_45 = arith.constant 2 : index
    %c0_46 = arith.constant 0 : index
    %26 = vector.load %arg8[%c2_44, %c2_45, %c0_46] : memref<18x18x4xf32, #tpu.memory_space<vmem>>, vector<16x16x4xf32>
    %27 = tpu.concatenate %18, %19, %20, %21, %22, %23, %24, %25, %26 in 2 : vector<16x16x4xf32>, vector<16x16x4xf32>, vector<16x16x4xf32>, vector<16x16x4xf32>, vector<16x16x4xf32>, vector<16x16x4xf32>, vector<16x16x4xf32>, vector<16x16x4xf32>, vector<16x16x4xf32> -> vector<16x16x36xf32>
    %28 = vector.shape_cast %27 : vector<16x16x36xf32> to vector<256x36xf32>
    %29 = arith.truncf %28 : vector<256x36xf32> to vector<256x36xbf16>
    %c0_47 = arith.constant 0 : index
    %c0_48 = arith.constant 0 : index
    %30 = vector.load %arg4[%c0_47, %c0_48] : memref<36x8xbf16, #tpu.memory_space<vmem>>, vector<36x8xbf16>
    %cst_49 = arith.constant dense<0.000000e+00> : vector<256x8xf32>
    %31 = tpu.matmul %29, %30, %cst_49 {dimension_numbers = #tpu.dot_dimension_numbers<[1], [0], [0], [1], [0, 0, 1, 1], [], []>} : vector<256x36xbf16>, vector<36x8xbf16>, vector<256x8xf32> -> vector<256x8xf32>
    %c0_50 = arith.constant 0 : index
    %c0_51 = arith.constant 0 : index
    %32 = vector.load %arg5[%c0_50, %c0_51] : memref<1x8xf32, #tpu.memory_space<vmem>>, vector<1x8xf32>
    %33 = vector.broadcast %32 : vector<1x8xf32> to vector<256x8xf32>
    %34 = arith.addf %31, %33 : vector<256x8xf32>
    %c0_52 = arith.constant 0 : index
    %c0_53 = arith.constant 0 : index
    %c0_54 = arith.constant 0 : index
    %35 = vector.load %arg6[%c0_52, %c0_53, %c0_54] : memref<1x256x8xf32, #tpu.memory_space<vmem>>, vector<1x256x8xf32>
    %36 = vector.shape_cast %35 : vector<1x256x8xf32> to vector<256x8xf32>
    %37 = vector.shape_cast %34 : vector<256x8xf32> to vector<1x256x8xf32>
    tpu.vector_store %arg6[%c0_52, %c0_53, %c0_54], %37 {strides = array<i32>} : memref<1x256x8xf32, #tpu.memory_space<vmem>>, vector<1x256x8xf32>,
    %cst_55 = arith.constant dense<0.000000e+00> : vector<8xf32>
    %38 = vector.multi_reduction <add>, %34, %cst_55 [0] : vector<256x8xf32> to vector<8xf32>
    %39 = vector.shape_cast %38 : vector<8xf32> to vector<1x8xf32>
    %40 = arith.mulf %34, %34 : vector<256x8xf32>
    %cst_56 = arith.constant dense<0.000000e+00> : vector<8xf32>
    %41 = vector.multi_reduction <add>, %40, %cst_56 [0] : vector<256x8xf32> to vector<8xf32>
    %42 = vector.shape_cast %41 : vector<8xf32> to vector<1x8xf32>
    %43 = tpu.concatenate %39, %42 in 0 : vector<1x8xf32>, vector<1x8xf32> -> vector<2x8xf32>
    %c0_57 = arith.constant 0 : index
    %c0_58 = arith.constant 0 : index
    %c0_59 = arith.constant 0 : index
    %44 = vector.load %arg7[%c0_57, %c0_58, %c0_59] : memref<1x2x8xf32, #tpu.memory_space<vmem>>, vector<1x2x8xf32>
    %45 = vector.shape_cast %44 : vector<1x2x8xf32> to vector<2x8xf32>
    %46 = vector.shape_cast %43 : vector<2x8xf32> to vector<1x2x8xf32>
    tpu.vector_store %arg7[%c0_57, %c0_58, %c0_59], %46 {strides = array<i32>} : memref<1x2x8xf32, #tpu.memory_space<vmem>>, vector<1x2x8xf32>,
    return
  }
  func.func @transform_0(%arg0: i32) -> (i32, i32, i32) {
    %c0_i32 = arith.constant 0 : i32
    %c0_i32_0 = arith.constant 0 : i32
    %c0_i32_1 = arith.constant 0 : i32
    return %arg0, %c0_i32, %c0_i32_0 : i32, i32, i32
  }
  func.func @transform_1(%arg0: i32) -> (i32, i32) {
    %c0_i32 = arith.constant 0 : i32
    %c0_i32_0 = arith.constant 0 : i32
    %c0_i32_1 = arith.constant 0 : i32
    return %c0_i32, %c0_i32_0 : i32, i32
  }
  func.func @transform_2(%arg0: i32) -> (i32, i32) {
    %c0_i32 = arith.constant 0 : i32
    %c0_i32_0 = arith.constant 0 : i32
    %c0_i32_1 = arith.constant 0 : i32
    return %c0_i32, %c0_i32_0 : i32, i32
  }
  func.func @transform_3(%arg0: i32) -> (i32, i32) {
    %c0_i32 = arith.constant 0 : i32
    %c0_i32_0 = arith.constant 0 : i32
    %c0_i32_1 = arith.constant 0 : i32
    return %c0_i32, %c0_i32_0 : i32, i32
  }
  func.func @transform_4(%arg0: i32) -> (i32, i32) {
    %c0_i32 = arith.constant 0 : i32
    %c0_i32_0 = arith.constant 0 : i32
    %c0_i32_1 = arith.constant 0 : i32
    return %c0_i32, %c0_i32_0 : i32, i32
  }
  func.func @transform_5(%arg0: i32) -> (i32, i32, i32) {
    %c0_i32 = arith.constant 0 : i32
    %c0_i32_0 = arith.constant 0 : i32
    %c0_i32_1 = arith.constant 0 : i32
    return %arg0, %c0_i32, %c0_i32_0 : i32, i32, i32
  }
  func.func @transform_6(%arg0: i32) -> (i32, i32, i32) {
    %c0_i32 = arith.constant 0 : i32
    %c0_i32_0 = arith.constant 0 : i32
    %c0_i32_1 = arith.constant 0 : i32
    return %arg0, %c0_i32, %c0_i32_0 : i32, i32, i32
  }
}

module attributes {stable_mosaic.version = 11 : i64} {
  func.func @affine_kernel(%arg0: i32, %arg1: memref<1x8x128xf32, #tpu.memory_space<vmem>>, %arg2: memref<1x1x128xf32, #tpu.memory_space<vmem>>, %arg3: memref<1x1x128xf32, #tpu.memory_space<vmem>>, %arg4: memref<1x8x128xf32, #tpu.memory_space<vmem>>) attributes {dimension_semantics = [#tpu.dimension_semantics<parallel>], iteration_bounds = array<i64: 2>, scalar_prefetch = 0 : i64, scratch_operands = 0 : i64, tpu.core_type = #tpu.core_type<tc>, window_params = [{transform_indices = @transform_0, window_bounds = array<i64: 1, 8, 128>}, {pipeline_mode = #tpu.pipeline_mode<synchronous>, transform_indices = @transform_1, window_bounds = array<i64: 1, 1, 128>}, {pipeline_mode = #tpu.pipeline_mode<synchronous>, transform_indices = @transform_2, window_bounds = array<i64: 1, 1, 128>}, {transform_indices = @transform_3, window_bounds = array<i64: 1, 8, 128>}]} {
    %c0 = arith.constant 0 : index
    %c0_0 = arith.constant 0 : index
    %c0_1 = arith.constant 0 : index
    %0 = vector.load %arg1[%c0, %c0_0, %c0_1] : memref<1x8x128xf32, #tpu.memory_space<vmem>>, vector<1x8x128xf32>
    %c0_2 = arith.constant 0 : index
    %c0_3 = arith.constant 0 : index
    %c0_4 = arith.constant 0 : index
    %1 = vector.load %arg2[%c0_2, %c0_3, %c0_4] : memref<1x1x128xf32, #tpu.memory_space<vmem>>, vector<1x1x128xf32>
    %2 = vector.broadcast %1 : vector<1x1x128xf32> to vector<1x8x128xf32>
    %3 = arith.mulf %0, %2 : vector<1x8x128xf32>
    %c0_5 = arith.constant 0 : index
    %c0_6 = arith.constant 0 : index
    %c0_7 = arith.constant 0 : index
    %4 = vector.load %arg3[%c0_5, %c0_6, %c0_7] : memref<1x1x128xf32, #tpu.memory_space<vmem>>, vector<1x1x128xf32>
    %5 = vector.broadcast %4 : vector<1x1x128xf32> to vector<1x8x128xf32>
    %6 = arith.addf %3, %5 : vector<1x8x128xf32>
    %c0_8 = arith.constant 0 : index
    %c0_9 = arith.constant 0 : index
    %c0_10 = arith.constant 0 : index
    %7 = vector.load %arg4[%c0_8, %c0_9, %c0_10] : memref<1x8x128xf32, #tpu.memory_space<vmem>>, vector<1x8x128xf32>
    tpu.vector_store %arg4[%c0_8, %c0_9, %c0_10], %6 {strides = array<i32>} : memref<1x8x128xf32, #tpu.memory_space<vmem>>, vector<1x8x128xf32>,
    return
  }
  func.func @transform_0(%arg0: i32) -> (i32, i32, i32) {
    %c0_i32 = arith.constant 0 : i32
    %c0_i32_0 = arith.constant 0 : i32
    %c0_i32_1 = arith.constant 0 : i32
    return %arg0, %c0_i32, %c0_i32_0 : i32, i32, i32
  }
  func.func @transform_1(%arg0: i32) -> (i32, i32, i32) {
    %c0_i32 = arith.constant 0 : i32
    %c0_i32_0 = arith.constant 0 : i32
    %c0_i32_1 = arith.constant 0 : i32
    %c0_i32_2 = arith.constant 0 : i32
    return %c0_i32, %c0_i32_0, %c0_i32_1 : i32, i32, i32
  }
  func.func @transform_2(%arg0: i32) -> (i32, i32, i32) {
    %c0_i32 = arith.constant 0 : i32
    %c0_i32_0 = arith.constant 0 : i32
    %c0_i32_1 = arith.constant 0 : i32
    %c0_i32_2 = arith.constant 0 : i32
    return %c0_i32, %c0_i32_0, %c0_i32_1 : i32, i32, i32
  }
  func.func @transform_3(%arg0: i32) -> (i32, i32, i32) {
    %c0_i32 = arith.constant 0 : i32
    %c0_i32_0 = arith.constant 0 : i32
    %c0_i32_1 = arith.constant 0 : i32
    return %arg0, %c0_i32, %c0_i32_0 : i32, i32, i32
  }
}

</mosaic_0001>

<llo_original>
// kernel: tile.13
$region0: #{tile.13}
  #allocation0 [shape = 's32[1]{0}', space=sflag, size = 0x4, scoped, tag = 'scoped memory for tile.13']
  %s0 = inlined_call_operand.vmem [shape: f32[4], index: 0, kind: input, shape index: {}]
  %s1 = inlined_call_operand.vmem [shape: f32[32,4], index: 1, kind: output, shape index: {}]
  // Predicated region
  $region2: #{tile.13} parent=0 // pred_check
    _
  $region3: #{tile.13} parent=0 // pred_check_branch
    %3 = sbr.rel (0) target = $region5
  $region4: #{tile.13} parent=0 // pred_region
    _
  $region5: #{tile.13} parent=0 // pred_fallthru
    _
  %v4 = vld [vmem:[%s0] ss:$0 sm:$0xff]
  %5 = vst [vmem:[%s1] sm:$0xff] %v4
  %s6 = scalar_lea.vmem %s1, 8
  %7 = vst [vmem:[%s6] sm:$0xff] %v4
  %s8 = scalar_lea.vmem %s1, 16
  %9 = vst [vmem:[%s8] sm:$0xff] %v4
  %s10 = scalar_lea.vmem %s1, 24
  %11 = vst [vmem:[%s10] sm:$0xff] %v4

// kernel: tile.14
$region0: #{tile.14}
  %s0 = inlined_call_operand.vmem [shape: f32[32,4], index: 0, kind: input, shape index: {}]
  %s1 = inlined_call_operand.vmem [shape: f32[1,1,128], index: 1, kind: output, shape index: {}]
  $region1: #{tile.14} parent=0
    #allocation0 [shape = 'u8[4096]{0}', space=vmem, size = 0x1000, scoped, tag = 'scoped mem for output reshape']
    %v2 = vld [vmem:[%s0] sm:$0x1]
    %vm3 = vcmask 31744
    %4 = vst.msk [vmem:[#allocation0] sm:$0x1] %vm3, %v2
    %s5 = scalar_lea.vmem %s0, 31
    %v6 = vld [vmem:[%s5] sm:$0x1]
    %7 = vrot.lane.b32.xlu0 %v6, 124
    %v8 = vpop.permute.xlu0 %7
    %vm9 = vcmask 1048544
    %10 = vst.msk [vmem:[#allocation0] sm:$0x1] %vm9, %v8
    %s11 = scalar_lea.vmem %s0, 30
    %v12 = vld [vmem:[%s11] sm:$0x1]
    %13 = vrot.lane.b32.xlu0 %v12, 120
    %v14 = vpop.permute.xlu0 %13
    %vm15 = vcmask 1015744
    %16 = vst.msk [vmem:[#allocation0] sm:$0x1] %vm15, %v14
    %s17 = scalar_lea.vmem %s0, 29
    %v18 = vld [vmem:[%s17] sm:$0x1]
    %19 = vrot.lane.b32.xlu0 %v18, 116
    %v20 = vpop.permute.xlu0 %19
    %vm21 = vcmask 982944
    %22 = vst.msk [vmem:[#allocation0] sm:$0x1] %vm21, %v20
    %s23 = scalar_lea.vmem %s0, 28
    %v24 = vld [vmem:[%s23] sm:$0x1]
    %25 = vrot.lane.b32.xlu0 %v24, 112
    %v26 = vpop.permute.xlu0 %25
    %vm27 = vcmask 950144
    %28 = vst.msk [vmem:[#allocation0] sm:$0x1] %vm27, %v26
    %s29 = scalar_lea.vmem %s0, 27
    %v30 = vld [vmem:[%s29] sm:$0x1]
    %31 = vrot.lane.b32.xlu0 %v30, 108
    %v32 = vpop.permute.xlu0 %31
    %vm33 = vcmask 917344
    %34 = vst.msk [vmem:[#allocation0] sm:$0x1] %vm33, %v32
    %s35 = scalar_lea.vmem %s0, 26
    %v36 = vld [vmem:[%s35] sm:$0x1]
    %37 = vrot.lane.b32.xlu0 %v36, 104
    %v38 = vpop.permute.xlu0 %37
    %vm39 = vcmask 884544
    %40 = vst.msk [vmem:[#allocation0] sm:$0x1] %vm39, %v38
    %s41 = scalar_lea.vmem %s0, 25
    %v42 = vld [vmem:[%s41] sm:$0x1]
    %43 = vrot.lane.b32.xlu0 %v42, 100
    %v44 = vpop.permute.xlu0 %43
    %vm45 = vcmask 851744
    %46 = vst.msk [vmem:[#allocation0] sm:$0x1] %vm45, %v44
    %s47 = scalar_lea.vmem %s0, 24
    %v48 = vld [vmem:[%s47] sm:$0x1]
    %49 = vrot.lane.b32.xlu0 %v48, 96
    %v50 = vpop.permute.xlu0 %49
    %vm51 = vcmask 818944
    %52 = vst.msk [vmem:[#allocation0] sm:$0x1] %vm51, %v50
    %s53 = scalar_lea.vmem %s0, 23
    %v54 = vld [vmem:[%s53] sm:$0x1]
    %55 = vrot.lane.b32.xlu0 %v54, 92
    %v56 = vpop.permute.xlu0 %55
    %vm57 = vcmask 786144
    %58 = vst.msk [vmem:[#allocation0] sm:$0x1] %vm57, %v56
    %s59 = scalar_lea.vmem %s0, 22
    %v60 = vld [vmem:[%s59] sm:$0x1]
    %61 = vrot.lane.b32.xlu0 %v60, 88
    %v62 = vpop.permute.xlu0 %61
    %vm63 = vcmask 753344
    %64 = vst.msk [vmem:[#allocation0] sm:$0x1] %vm63, %v62
    %s65 = scalar_lea.vmem %s0, 21
    %v66 = vld [vmem:[%s65] sm:$0x1]
    %67 = vrot.lane.b32.xlu0 %v66, 84
    %v68 = vpop.permute.xlu0 %67
    %vm69 = vcmask 720544
    %70 = vst.msk [vmem:[#allocation0] sm:$0x1] %vm69, %v68
    %s71 = scalar_lea.vmem %s0, 20
    %v72 = vld [vmem:[%s71] sm:$0x1]
    %73 = vrot.lane.b32.xlu0 %v72, 80
    %v74 = vpop.permute.xlu0 %73
    %vm75 = vcmask 687744
    %76 = vst.msk [vmem:[#allocation0] sm:$0x1] %vm75, %v74
    %s77 = scalar_lea.vmem %s0, 19
    %v78 = vld [vmem:[%s77] sm:$0x1]
    %79 = vrot.lane.b32.xlu0 %v78, 76
    %v80 = vpop.permute.xlu0 %79
    %vm81 = vcmask 654944
    %82 = vst.msk [vmem:[#allocation0] sm:$0x1] %vm81, %v80
    %s83 = scalar_lea.vmem %s0, 18
    %v84 = vld [vmem:[%s83] sm:$0x1]
    %85 = vrot.lane.b32.xlu0 %v84, 72
    %v86 = vpop.permute.xlu0 %85
    %vm87 = vcmask 622144
    %88 = vst.msk [vmem:[#allocation0] sm:$0x1] %vm87, %v86
    %s89 = scalar_lea.vmem %s0, 17
    %v90 = vld [vmem:[%s89] sm:$0x1]
    %91 = vrot.lane.b32.xlu0 %v90, 68
    %v92 = vpop.permute.xlu0 %91
    %vm93 = vcmask 589344
    %94 = vst.msk [vmem:[#allocation0] sm:$0x1] %vm93, %v92
    %s95 = scalar_lea.vmem %s0, 16
    %v96 = vld [vmem:[%s95] sm:$0x1]
    %97 = vrot.lane.b32.xlu0 %v96, 64
    %v98 = vpop.permute.xlu0 %97
    %vm99 = vcmask 556544
    %100 = vst.msk [vmem:[#allocation0] sm:$0x1] %vm99, %v98
    %s101 = scalar_lea.vmem %s0, 15
    %v102 = vld [vmem:[%s101] sm:$0x1]
    %103 = vrot.lane.b32.xlu0 %v102, 60
    %v104 = vpop.permute.xlu0 %103
    %vm105 = vcmask 523744
    %106 = vst.msk [vmem:[#allocation0] sm:$0x1] %vm105, %v104
    %s107 = scalar_lea.vmem %s0, 14
    %v108 = vld [vmem:[%s107] sm:$0x1]
    %109 = vrot.lane.b32.xlu0 %v108, 56
    %v110 = vpop.permute.xlu0 %109
    %vm111 = vcmask 490944
    %112 = vst.msk [vmem:[#allocation0] sm:$0x1] %vm111, %v110
    %s113 = scalar_lea.vmem %s0, 13
    %v114 = vld [vmem:[%s113] sm:$0x1]
    %115 = vrot.lane.b32.xlu0 %v114, 52
    %v116 = vpop.permute.xlu0 %115
    %vm117 = vcmask 458144
    %118 = vst.msk [vmem:[#allocation0] sm:$0x1] %vm117, %v116
    %s119 = scalar_lea.vmem %s0, 12
    %v120 = vld [vmem:[%s119] sm:$0x1]
    %121 = vrot.lane.b32.xlu0 %v120, 48
    %v122 = vpop.permute.xlu0 %121
    %vm123 = vcmask 425344
    %124 = vst.msk [vmem:[#allocation0] sm:$0x1] %vm123, %v122
    %s125 = scalar_lea.vmem %s0, 11
    %v126 = vld [vmem:[%s125] sm:$0x1]
    %127 = vrot.lane.b32.xlu0 %v126, 44
    %v128 = vpop.permute.xlu0 %127
    %vm129 = vcmask 392544
    %130 = vst.msk [vmem:[#allocation0] sm:$0x1] %vm129, %v128
    %s131 = scalar_lea.vmem %s0, 10
    %v132 = vld [vmem:[%s131] sm:$0x1]
    %133 = vrot.lane.b32.xlu0 %v132, 40
    %v134 = vpop.permute.xlu0 %133
    %vm135 = vcmask 359744
    %136 = vst.msk [vmem:[#allocation0] sm:$0x1] %vm135, %v134
    %s137 = scalar_lea.vmem %s0, 9
    %v138 = vld [vmem:[%s137] sm:$0x1]
    %139 = vrot.lane.b32.xlu0 %v138, 36
    %v140 = vpop.permute.xlu0 %139
    %vm141 = vcmask 326944
    %142 = vst.msk [vmem:[#allocation0] sm:$0x1] %vm141, %v140
    %s143 = scalar_lea.vmem %s0, 8
    %v144 = vld [vmem:[%s143] sm:$0x1]
    %145 = vrot.lane.b32.xlu0 %v144, 32
    %v146 = vpop.permute.xlu0 %145
    %vm147 = vcmask 294144
    %148 = vst.msk [vmem:[#allocation0] sm:$0x1] %vm147, %v146
    %s149 = scalar_lea.vmem %s0, 7
    %v150 = vld [vmem:[%s149] sm:$0x1]
    %151 = vrot.lane.b32.xlu0 %v150, 28
    %v152 = vpop.permute.xlu0 %151
    %vm153 = vcmask 261344
    %154 = vst.msk [vmem:[#allocation0] sm:$0x1] %vm153, %v152
    %s155 = scalar_lea.vmem %s0, 6
    %v156 = vld [vmem:[%s155] sm:$0x1]
    %157 = vrot.lane.b32.xlu0 %v156, 24
    %v158 = vpop.permute.xlu0 %157
    %vm159 = vcmask 228544
    %160 = vst.msk [vmem:[#allocation0] sm:$0x1] %vm159, %v158
    %s161 = scalar_lea.vmem %s0, 5
    %v162 = vld [vmem:[%s161] sm:$0x1]
    %163 = vrot.lane.b32.xlu0 %v162, 20
    %v164 = vpop.permute.xlu0 %163
    %vm165 = vcmask 195744
    %166 = vst.msk [vmem:[#allocation0] sm:$0x1] %vm165, %v164
    %s167 = scalar_lea.vmem %s0, 4
    %v168 = vld [vmem:[%s167] sm:$0x1]
    %169 = vrot.lane.b32.xlu0 %v168, 16
    %v170 = vpop.permute.xlu0 %169
    %vm171 = vcmask 162944
    %172 = vst.msk [vmem:[#allocation0] sm:$0x1] %vm171, %v170
    %s173 = scalar_lea.vmem %s0, 3
    %v174 = vld [vmem:[%s173] sm:$0x1]
    %175 = vrot.lane.b32.xlu0 %v174, 12
    %v176 = vpop.permute.xlu0 %175
    %vm177 = vcmask 130144
    %178 = vst.msk [vmem:[#allocation0] sm:$0x1] %vm177, %v176
    %s179 = scalar_lea.vmem %s0, 2
    %v180 = vld [vmem:[%s179] sm:$0x1]
    %181 = vrot.lane.b32.xlu0 %v180, 8
    %v182 = vpop.permute.xlu0 %181
    %vm183 = vcmask 97344
    %184 = vst.msk [vmem:[#allocation0] sm:$0x1] %vm183, %v182
    %s185 = scalar_lea.vmem %s0, 1
    %v186 = vld [vmem:[%s185] sm:$0x1]
    %187 = vrot.lane.b32.xlu0 %v186, 4
    %v188 = vpop.permute.xlu0 %187
    %vm189 = vcmask 64544
    %190 = vst.msk [vmem:[#allocation0] sm:$0x1] %vm189, %v188
    %s192 = sshllo.u32 0, 1
    %v194 = vld [vmem:[#allocation0] sm:%s192]
    %s195 = sshllo.u32 0, 1
    %196 = vst [vmem:[%s1] sm:%s195] %v194

// kernel: block_forward.5
$region0: #{block_forward.5}
  #allocation0 [shape = 'u32[]', space=smem, size = 0x4, offset = 0x4, fixed_abs, tag = 'smem constant byte address 0x4 - core index']
  #allocation1 [shape = 'u32[144,128]{1,0:T(1,128)}', space=vmem, size = 0x12000, scoped, tag = 'internal scratch']
  %s0 = inlined_call_operand.vmem [shape: f32[2,8,128], index: 0, kind: input, shape index: {}]
  %s1 = inlined_call_operand.vmem [shape: f32[1,1,128], index: 1, kind: input, shape index: {}]
  %s2 = inlined_call_operand.vmem [shape: f32[1,1,128], index: 2, kind: input, shape index: {}]
  %s3 = inlined_call_operand.vmem [shape: f32[2,8,128], index: 3, kind: output, shape index: {}]
  %s4 = sld [smem:[#allocation0]]
  $region45: #{block_forward.5} parent=0
    _
  %s6 = ssub.s32 1, %s4
  %s7 = scalar_select 0, %s6, %s4
  loop: start=0, step=1, limit=4
  $region2: #{block_forward.5} parent=0 // loop_pre_header
    _
  $region3: #{block_forward.5} parent=0 // loop_header
    %s9 = sphi 0, %s13
    %p10 = scmp.ge.s32.totalorder %s9, 4
    %s19 = sphi 0, %s21
    %s22 = sphi 0, %s19
    %s23 = sphi 0, %s22
    %s39 = sphi 0, %s23
    %s43 = sphi 0, %s43
    %s45 = sphi 0, %s43
    %s46 = sphi 0, %s45
    %s60 = sphi 0, %s46
    %s64 = sphi 0, %s64
    %s66 = sphi 0, %s64
    %s67 = sphi 0, %s66
    %s81 = sphi 0, %s67
    %s87 = sphi 0, %s89
    %s90 = sphi 0, %s87
    %s91 = sphi 0, %s90
    %s107 = sphi 0, %s91
  $region4: #{block_forward.5} parent=0 // loop_header_branch
    %12 = sbr.rel (%p10) target = $region8
  $region5: #{block_forward.5} parent=0 // loop_body
    %s14 = ssub.s32 %s9, 1
    %s15 = ssub.s32 %s9, 2
    %s16 = sadd.s32 %s9, 1
    %s17 = ssub.s32 %s9, %s16
    %p18 = scmp.eq.s32.totalorder %s17, 0
    %s20 = sadd.s32 %s19, 1
    %s21 = scalar_select %p18, %s19, %s20
    %p24 = pneg %p18
    %p25 = scmp.eq.s32.totalorder %s9, 1
    %p26 = por %p24, %p25
    %p27 = scmp.ne.s32.totalorder %s19, %s22
    %p28 = scmp.eq.s32.totalorder %s9, 0
    %p29 = por %p27, %p28
    %p30 = scmp.ne.s32.totalorder %s19, %s22
    %p31 = scmp.eq.s32.totalorder %s14, 1
    %p32 = por %p30, %p31
    %p33 = scmp.ne.s32.totalorder %s22, %s23
    %p34 = scmp.eq.s32.totalorder %s14, 0
    %p35 = por %p33, %p34
    %p36 = scmp.ne.s32.totalorder %s22, %s23
    %p37 = scmp.eq.s32.totalorder %s15, 1
    %p38 = por %p36, %p37
    %p40 = scmp.ne.s32.totalorder %s23, %s39
    %p41 = scmp.eq.s32.totalorder %s15, 0
    %p42 = por %p40, %p41
    %s44 = sadd.s32 %s43, 1
    %p47 = scmp.eq.s32.totalorder %s9, 1
    %p48 = scmp.ne.s32.totalorder %s43, %s45
    %p49 = scmp.eq.s32.totalorder %s9, 0
    %p50 = por %p48, %p49
    %p51 = scmp.ne.s32.totalorder %s43, %s45
    %p52 = scmp.eq.s32.totalorder %s14, 1
    %p53 = por %p51, %p52
    %p54 = scmp.ne.s32.totalorder %s45, %s46
    %p55 = scmp.eq.s32.totalorder %s14, 0
    %p56 = por %p54, %p55
    %p57 = scmp.ne.s32.totalorder %s45, %s46
    %p58 = scmp.eq.s32.totalorder %s15, 1
    %p59 = por %p57, %p58
    %p61 = scmp.ne.s32.totalorder %s46, %s60
    %p62 = scmp.eq.s32.totalorder %s15, 0
    %p63 = por %p61, %p62
    %s65 = sadd.s32 %s64, 1
    %p68 = scmp.eq.s32.totalorder %s9, 1
    %p69 = scmp.ne.s32.totalorder %s64, %s66
    %p70 = scmp.eq.s32.totalorder %s9, 0
    %p71 = por %p69, %p70
    %p72 = scmp.ne.s32.totalorder %s64, %s66
    %p73 = scmp.eq.s32.totalorder %s14, 1
    %p74 = por %p72, %p73
    %p75 = scmp.ne.s32.totalorder %s66, %s67
    %p76 = scmp.eq.s32.totalorder %s14, 0
    %p77 = por %p75, %p76
    %p78 = scmp.ne.s32.totalorder %s66, %s67
    %p79 = scmp.eq.s32.totalorder %s15, 1
    %p80 = por %p78, %p79
    %p82 = scmp.ne.s32.totalorder %s67, %s81
    %p83 = scmp.eq.s32.totalorder %s15, 0
    %p84 = por %p82, %p83
    %s85 = ssub.s32 %s9, %s16
    %p86 = scmp.eq.s32.totalorder %s85, 0
    %s88 = sadd.s32 %s87, 1
    %s89 = scalar_select %p86, %s87, %s88
    %p92 = pneg %p86
    %p93 = scmp.eq.s32.totalorder %s9, 1
    %p94 = por %p92, %p93
    %p95 = scmp.ne.s32.totalorder %s87, %s90
    %p96 = scmp.eq.s32.totalorder %s9, 0
    %p97 = por %p95, %p96
    %p98 = scmp.ne.s32.totalorder %s87, %s90
    %p99 = scmp.eq.s32.totalorder %s14, 1
    %p100 = por %p98, %p99
    %p101 = scmp.ne.s32.totalorder %s90, %s91
    %p102 = scmp.eq.s32.totalorder %s14, 0
    %p103 = por %p101, %p102
    %p104 = scmp.ne.s32.totalorder %s90, %s91
    %p105 = scmp.eq.s32.totalorder %s15, 1
    %p106 = por %p104, %p105
    %p108 = scmp.ne.s32.totalorder %s91, %s107
    %p109 = scmp.eq.s32.totalorder %s15, 0
    %p110 = por %p108, %p109
    %p111 = scmp.le.s32.totalorder 1, %s9
    %p112 = scmp.lt.s32.totalorder %s9, 3
    %p113 = pnand %p111, %p112
    %p114 = pneg %p113
    // Predicated region
    $region9: #{block_forward.5} parent=5 // pred_check
      _
    $region10: #{block_forward.5} parent=5 // pred_check_branch
      %116 = sbr.rel (%p113) target = $region12
    $region11: #{block_forward.5} parent=5 // pred_region
      %s117 = ssub.s32 %s9, 1
      // Predicated region
      $region13: #{block_forward.5} parent=11 // pred_check
        %p118 = pneg %p56
      $region14: #{block_forward.5} parent=11 // pred_check_branch
        %120 = sbr.rel (%p118) target = $region16
      $region15: #{block_forward.5} parent=11 // pred_region
        _
      $region16: #{block_forward.5} parent=11 // pred_fallthru
        _
      // Predicated region
      $region17: #{block_forward.5} parent=11 // pred_check
        %p121 = pneg %p77
      $region18: #{block_forward.5} parent=11 // pred_check_branch
        %123 = sbr.rel (%p121) target = $region20
      $region19: #{block_forward.5} parent=11 // pred_region
        _
      $region20: #{block_forward.5} parent=11 // pred_fallthru
        _
    $region12: #{block_forward.5} parent=5 // pred_fallthru
      _
    %p124 = scmp.lt.s32.totalorder %s9, 2
    // Predicated region
    $region21: #{block_forward.5} parent=5 // pred_check
      %p125 = pneg %p124
    $region22: #{block_forward.5} parent=5 // pred_check_branch
      %127 = sbr.rel (%p125) target = $region24
    $region23: #{block_forward.5} parent=5 // pred_region
      // Predicated region
      $region25: #{block_forward.5} parent=23 // pred_check
        %p128 = pneg %p29
      $region26: #{block_forward.5} parent=23 // pred_check_branch
        %130 = sbr.rel (%p128) target = $region28
      $region27: #{block_forward.5} parent=23 // pred_region
        %p131 = scmp.lt.s32.totalorder %s9, 1
        %s132 = scalar_select %p131, %s9, 1
        %s133 = smul.addr %s132, 8
        %s134 = scalar_lea.vmem %s0, %s133
      $region28: #{block_forward.5} parent=23 // pred_fallthru
        _
    $region24: #{block_forward.5} parent=5 // pred_fallthru
      _
    %p135 = scmp.le.s32.totalorder 1, %s9
    %p136 = scmp.lt.s32.totalorder %s9, 3
    %p137 = pnand %p135, %p136
    %p138 = pneg %p137
    // Predicated region
    $region29: #{block_forward.5} parent=5 // pred_check
      _
    $region30: #{block_forward.5} parent=5 // pred_check_branch
      %140 = sbr.rel (%p137) target = $region32
    $region31: #{block_forward.5} parent=5 // pred_region
      %s141 = ssub.s32 %s9, 1
      %p142 = scmp.lt.s32.totalorder %s14, 1
      %s143 = scalar_select %p142, %s14, 1
      %s144 = smul.addr %s143, 8
      %s145 = scalar_lea.vmem %s0, %s144
      %p146 = pneg %p35
      %p147 = pneg %p32
      %p148 = pneg %p56
      %p149 = pneg %p53
      %p150 = pneg %p77
      %p151 = pneg %p74
      %p152 = pneg %p103
      %p153 = pneg %p100
      %p154 = scmp.lt.s32.totalorder %s14, 1
      %s155 = scalar_select %p154, %s14, 1
      %s156 = smul.addr %s155, 8
      %s157 = scalar_lea.vmem %s3, %s156
      %p158 = scmp.lt.s32.totalorder %s14, 1
      %s159 = scalar_select %p158, %s14, 1
      %s160 = smul.addr %s159, 8
      %s161 = scalar_lea.vmem %s0, %s160
      %p162 = scmp.lt.s32.totalorder %s14, 1
      %s163 = scalar_select %p162, %s14, 1
      %s164 = smul.addr %s163, 8
      %s165 = scalar_lea.vmem %s3, %s164
      %v166 = vld [vmem:[%s161] sm:$0xff]
      %v167 = vld [vmem:[%s1] sm:$0x1]
      %v169 = vlaneseq
      %v170 = vshrl.u32 %v169, 7
      %v171 = vsub.s32 0, %v170
      %v172 = vrot.slane %v167, %v171
      %v174 = vmul.f32 %v166, %v172
      %v175 = vld [vmem:[%s2] sm:$0x1]
      %v177 = vlaneseq
      %v178 = vshrl.u32 %v177, 7
      %v179 = vsub.s32 0, %v178
      %v180 = vrot.slane %v175, %v179
      %v182 = vadd.f32 %v174, %v180
      %183 = vst [vmem:[%s165] sm:$0xff] %v182
      %p184 = scmp.lt.s32.totalorder %s14, 1
      %s185 = scalar_select %p184, %s14, 1
      %s186 = smul.addr %s185, 8
      %s187 = scalar_lea.vmem %s3, %s186
      // Predicated region
      $region33: #{block_forward.5} parent=31 // pred_check
        %p188 = pneg %p100
      $region34: #{block_forward.5} parent=31 // pred_check_branch
        %190 = sbr.rel (%p188) target = $region36
      $region35: #{block_forward.5} parent=31 // pred_region
        _
      $region36: #{block_forward.5} parent=31 // pred_fallthru
        _
    $region32: #{block_forward.5} parent=5 // pred_fallthru
      _
    %p191 = scmp.le.s32.totalorder 2, %s9
    // Predicated region
    $region37: #{block_forward.5} parent=5 // pred_check
      %p192 = pneg %p191
    $region38: #{block_forward.5} parent=5 // pred_check_branch
      %194 = sbr.rel (%p192) target = $region40
    $region39: #{block_forward.5} parent=5 // pred_region
      %s195 = ssub.s32 %s9, 2
      // Predicated region
      $region41: #{block_forward.5} parent=39 // pred_check
        %p196 = pneg %p106
      $region42: #{block_forward.5} parent=39 // pred_check_branch
        %198 = sbr.rel (%p196) target = $region44
      $region43: #{block_forward.5} parent=39 // pred_region
        %p199 = scmp.lt.s32.totalorder %s15, 1
        %s200 = scalar_select %p199, %s15, 1
        %s201 = smul.addr %s200, 8
        %s202 = scalar_lea.vmem %s3, %s201
      $region44: #{block_forward.5} parent=39 // pred_fallthru
        _
    $region40: #{block_forward.5} parent=5 // pred_fallthru
      _
  $region6: #{block_forward.5} parent=0 // loop_footer
    %s13 = sadd.s32 1, %s9
  $region7: #{block_forward.5} parent=0 // loop_footer_branch
    %8 = sbr.rel target = $region3
  $region8: #{block_forward.5} parent=0 // loop_exit
    _

// kernel: block_forward.3
$region0: #{block_forward.3}
  #allocation0 [shape = 'u32[]', space=smem, size = 0x4, offset = 0x4, fixed_abs, tag = 'smem constant byte address 0x4 - core index']
  #allocation1 [shape = 'u32[144,128]{1,0:T(1,128)}', space=vmem, size = 0x12000, scoped, tag = 'internal scratch']
  #allocation2 [shape = 'f32[18,18,4]{2,1,0:T(8,128)}', space=vmem, size = 0x36000, scoped, tag = 'scratch operand']
  %s0 = inlined_call_operand.vmem [shape: f32[2,256,4], index: 0, kind: input, shape index: {}]
  %s1 = inlined_call_operand.vmem [shape: f32[1,4], index: 1, kind: input, shape index: {}]
  %s2 = inlined_call_operand.vmem [shape: f32[1,4], index: 2, kind: input, shape index: {}]
  %s3 = inlined_call_operand.vmem [shape: bf16[36,8], index: 3, kind: input, shape index: {}]
  %s4 = inlined_call_operand.vmem [shape: f32[1,8], index: 4, kind: input, shape index: {}]
  %s5 = inlined_call_operand.vmem [shape: f32[2,256,8], index: 5, kind: output, shape index: {0}]
  %s6 = inlined_call_operand.vmem [shape: f32[2,2,8], index: 6, kind: output, shape index: {1}]
  %7 = xla_tuple %s5, %s6
  %s8 = sld [smem:[#allocation0]]
  $region61: #{block_forward.3} parent=0
    _
  %s10 = ssub.s32 1, %s8
  %s11 = scalar_select 0, %s10, %s8
  loop: start=0, step=1, limit=4
  $region2: #{block_forward.3} parent=0 // loop_pre_header
    _
  $region3: #{block_forward.3} parent=0 // loop_header
    %s13 = sphi 0, %s17
    %p14 = scmp.ge.s32.totalorder %s13, 4
    %s23 = sphi 0, %s25
    %s26 = sphi 0, %s23
    %s27 = sphi 0, %s26
    %s43 = sphi 0, %s27
    %s47 = sphi 0, %s47
    %s49 = sphi 0, %s47
    %s50 = sphi 0, %s49
    %s64 = sphi 0, %s50
    %s68 = sphi 0, %s68
    %s70 = sphi 0, %s68
    %s71 = sphi 0, %s70
    %s85 = sphi 0, %s71
    %s89 = sphi 0, %s89
    %s91 = sphi 0, %s89
    %s92 = sphi 0, %s91
    %s106 = sphi 0, %s92
    %s110 = sphi 0, %s110
    %s112 = sphi 0, %s110
    %s113 = sphi 0, %s112
    %s127 = sphi 0, %s113
    %s133 = sphi 0, %s135
    %s136 = sphi 0, %s133
    %s137 = sphi 0, %s136
    %s153 = sphi 0, %s137
    %s159 = sphi 0, %s161
    %s162 = sphi 0, %s159
    %s163 = sphi 0, %s162
    %s179 = sphi 0, %s163
  $region4: #{block_forward.3} parent=0 // loop_header_branch
    %16 = sbr.rel (%p14) target = $region8
  $region5: #{block_forward.3} parent=0 // loop_body
    %s18 = ssub.s32 %s13, 1
    %s19 = ssub.s32 %s13, 2
    %s20 = sadd.s32 %s13, 1
    %s21 = ssub.s32 %s13, %s20
    %p22 = scmp.eq.s32.totalorder %s21, 0
    %s24 = sadd.s32 %s23, 1
    %s25 = scalar_select %p22, %s23, %s24
    %p28 = pneg %p22
    %p29 = scmp.eq.s32.totalorder %s13, 1
    %p30 = por %p28, %p29
    %p31 = scmp.ne.s32.totalorder %s23, %s26
    %p32 = scmp.eq.s32.totalorder %s13, 0
    %p33 = por %p31, %p32
    %p34 = scmp.ne.s32.totalorder %s23, %s26
    %p35 = scmp.eq.s32.totalorder %s18, 1
    %p36 = por %p34, %p35
    %p37 = scmp.ne.s32.totalorder %s26, %s27
    %p38 = scmp.eq.s32.totalorder %s18, 0
    %p39 = por %p37, %p38
    %p40 = scmp.ne.s32.totalorder %s26, %s27
    %p41 = scmp.eq.s32.totalorder %s19, 1
    %p42 = por %p40, %p41
    %p44 = scmp.ne.s32.totalorder %s27, %s43
    %p45 = scmp.eq.s32.totalorder %s19, 0
    %p46 = por %p44, %p45
    %s48 = sadd.s32 %s47, 1
    %p51 = scmp.eq.s32.totalorder %s13, 1
    %p52 = scmp.ne.s32.totalorder %s47, %s49
    %p53 = scmp.eq.s32.totalorder %s13, 0
    %p54 = por %p52, %p53
    %p55 = scmp.ne.s32.totalorder %s47, %s49
    %p56 = scmp.eq.s32.totalorder %s18, 1
    %p57 = por %p55, %p56
    %p58 = scmp.ne.s32.totalorder %s49, %s50
    %p59 = scmp.eq.s32.totalorder %s18, 0
    %p60 = por %p58, %p59
    %p61 = scmp.ne.s32.totalorder %s49, %s50
    %p62 = scmp.eq.s32.totalorder %s19, 1
    %p63 = por %p61, %p62
    %p65 = scmp.ne.s32.totalorder %s50, %s64
    %p66 = scmp.eq.s32.totalorder %s19, 0
    %p67 = por %p65, %p66
    %s69 = sadd.s32 %s68, 1
    %p72 = scmp.eq.s32.totalorder %s13, 1
    %p73 = scmp.ne.s32.totalorder %s68, %s70
    %p74 = scmp.eq.s32.totalorder %s13, 0
    %p75 = por %p73, %p74
    %p76 = scmp.ne.s32.totalorder %s68, %s70
    %p77 = scmp.eq.s32.totalorder %s18, 1
    %p78 = por %p76, %p77
    %p79 = scmp.ne.s32.totalorder %s70, %s71
    %p80 = scmp.eq.s32.totalorder %s18, 0
    %p81 = por %p79, %p80
    %p82 = scmp.ne.s32.totalorder %s70, %s71
    %p83 = scmp.eq.s32.totalorder %s19, 1
    %p84 = por %p82, %p83
    %p86 = scmp.ne.s32.totalorder %s71, %s85
    %p87 = scmp.eq.s32.totalorder %s19, 0
    %p88 = por %p86, %p87
    %s90 = sadd.s32 %s89, 1
    %p93 = scmp.eq.s32.totalorder %s13, 1
    %p94 = scmp.ne.s32.totalorder %s89, %s91
    %p95 = scmp.eq.s32.totalorder %s13, 0
    %p96 = por %p94, %p95
    %p97 = scmp.ne.s32.totalorder %s89, %s91
    %p98 = scmp.eq.s32.totalorder %s18, 1
    %p99 = por %p97, %p98
    %p100 = scmp.ne.s32.totalorder %s91, %s92
    %p101 = scmp.eq.s32.totalorder %s18, 0
    %p102 = por %p100, %p101
    %p103 = scmp.ne.s32.totalorder %s91, %s92
    %p104 = scmp.eq.s32.totalorder %s19, 1
    %p105 = por %p103, %p104
    %p107 = scmp.ne.s32.totalorder %s92, %s106
    %p108 = scmp.eq.s32.totalorder %s19, 0
    %p109 = por %p107, %p108
    %s111 = sadd.s32 %s110, 1
    %p114 = scmp.eq.s32.totalorder %s13, 1
    %p115 = scmp.ne.s32.totalorder %s110, %s112
    %p116 = scmp.eq.s32.totalorder %s13, 0
    %p117 = por %p115, %p116
    %p118 = scmp.ne.s32.totalorder %s110, %s112
    %p119 = scmp.eq.s32.totalorder %s18, 1
    %p120 = por %p118, %p119
    %p121 = scmp.ne.s32.totalorder %s112, %s113
    %p122 = scmp.eq.s32.totalorder %s18, 0
    %p123 = por %p121, %p122
    %p124 = scmp.ne.s32.totalorder %s112, %s113
    %p125 = scmp.eq.s32.totalorder %s19, 1
    %p126 = por %p124, %p125
    %p128 = scmp.ne.s32.totalorder %s113, %s127
    %p129 = scmp.eq.s32.totalorder %s19, 0
    %p130 = por %p128, %p129
    %s131 = ssub.s32 %s13, %s20
    %p132 = scmp.eq.s32.totalorder %s131, 0
    %s134 = sadd.s32 %s133, 1
    %s135 = scalar_select %p132, %s133, %s134
    %p138 = pneg %p132
    %p139 = scmp.eq.s32.totalorder %s13, 1
    %p140 = por %p138, %p139
    %p141 = scmp.ne.s32.totalorder %s133, %s136
    %p142 = scmp.eq.s32.totalorder %s13, 0
    %p143 = por %p141, %p142
    %p144 = scmp.ne.s32.totalorder %s133, %s136
    %p145 = scmp.eq.s32.totalorder %s18, 1
    %p146 = por %p144, %p145
    %p147 = scmp.ne.s32.totalorder %s136, %s137
    %p148 = scmp.eq.s32.totalorder %s18, 0
    %p149 = por %p147, %p148
    %p150 = scmp.ne.s32.totalorder %s136, %s137
    %p151 = scmp.eq.s32.totalorder %s19, 1
    %p152 = por %p150, %p151
    %p154 = scmp.ne.s32.totalorder %s137, %s153
    %p155 = scmp.eq.s32.totalorder %s19, 0
    %p156 = por %p154, %p155
    %s157 = ssub.s32 %s13, %s20
    %p158 = scmp.eq.s32.totalorder %s157, 0
    %s160 = sadd.s32 %s159, 1
    %s161 = scalar_select %p158, %s159, %s160
    %p164 = pneg %p158
    %p165 = scmp.eq.s32.totalorder %s13, 1
    %p166 = por %p164, %p165
    %p167 = scmp.ne.s32.totalorder %s159, %s162
    %p168 = scmp.eq.s32.totalorder %s13, 0
    %p169 = por %p167, %p168
    %p170 = scmp.ne.s32.totalorder %s159, %s162
    %p171 = scmp.eq.s32.totalorder %s18, 1
    %p172 = por %p170, %p171
    %p173 = scmp.ne.s32.totalorder %s162, %s163
    %p174 = scmp.eq.s32.totalorder %s18, 0
    %p175 = por %p173, %p174
    %p176 = scmp.ne.s32.totalorder %s162, %s163
    %p177 = scmp.eq.s32.totalorder %s19, 1
    %p178 = por %p176, %p177
    %p180 = scmp.ne.s32.totalorder %s163, %s179
    %p181 = scmp.eq.s32.totalorder %s19, 0
    %p182 = por %p180, %p181
    %p183 = scmp.le.s32.totalorder 1, %s13
    %p184 = scmp.lt.s32.totalorder %s13, 3
    %p185 = pnand %p183, %p184
    %p186 = pneg %p185
    // Predicated region
    $region9: #{block_forward.3} parent=5 // pred_check
      _
    $region10: #{block_forward.3} parent=5 // pred_check_branch
      %188 = sbr.rel (%p185) target = $region12
    $region11: #{block_forward.3} parent=5 // pred_region
      %s189 = ssub.s32 %s13, 1
      // Predicated region
      $region13: #{block_forward.3} parent=11 // pred_check
        %p190 = pneg %p60
      $region14: #{block_forward.3} parent=11 // pred_check_branch
        %192 = sbr.rel (%p190) target = $region16
      $region15: #{block_forward.3} parent=11 // pred_region
        _
      $region16: #{block_forward.3} parent=11 // pred_fallthru
        _
      // Predicated region
      $region17: #{block_forward.3} parent=11 // pred_check
        %p193 = pneg %p81
      $region18: #{block_forward.3} parent=11 // pred_check_branch
        %195 = sbr.rel (%p193) target = $region20
      $region19: #{block_forward.3} parent=11 // pred_region
        _
      $region20: #{block_forward.3} parent=11 // pred_fallthru
        _
      // Predicated region
      $region21: #{block_forward.3} parent=11 // pred_check
        %p196 = pneg %p102
      $region22: #{block_forward.3} parent=11 // pred_check_branch
        %198 = sbr.rel (%p196) target = $region24
      $region23: #{block_forward.3} parent=11 // pred_region
        _
      $region24: #{block_forward.3} parent=11 // pred_fallthru
        _
      // Predicated region
      $region25: #{block_forward.3} parent=11 // pred_check
        %p199 = pneg %p123
      $region26: #{block_forward.3} parent=11 // pred_check_branch
        %201 = sbr.rel (%p199) target = $region28
      $region27: #{block_forward.3} parent=11 // pred_region
        _
      $region28: #{block_forward.3} parent=11 // pred_fallthru
        _
    $region12: #{block_forward.3} parent=5 // pred_fallthru
      _
    %p202 = scmp.lt.s32.totalorder %s13, 2
    // Predicated region
    $region29: #{block_forward.3} parent=5 // pred_check
      %p203 = pneg %p202
    $region30: #{block_forward.3} parent=5 // pred_check_branch
      %205 = sbr.rel (%p203) target = $region32
    $region31: #{block_forward.3} parent=5 // pred_region
      // Predicated region
      $region33: #{block_forward.3} parent=31 // pred_check
        %p206 = pneg %p33
      $region34: #{block_forward.3} parent=31 // pred_check_branch
        %208 = sbr.rel (%p206) target = $region36
      $region35: #{block_forward.3} parent=31 // pred_region
        %p209 = scmp.lt.s32.totalorder %s13, 1
        %s210 = scalar_select %p209, %s13, 1
        %s211 = smul.addr %s210, 32
        %s212 = smul.addr %s211, 8
        %s213 = scalar_lea.vmem %s0, %s212
      $region36: #{block_forward.3} parent=31 // pred_fallthru
        _
    $region32: #{block_forward.3} parent=5 // pred_fallthru
      _
    %p214 = scmp.le.s32.totalorder 1, %s13
    %p215 = scmp.lt.s32.totalorder %s13, 3
    %p216 = pnand %p214, %p215
    %p217 = pneg %p216
    // Predicated region
    $region37: #{block_forward.3} parent=5 // pred_check
      _
    $region38: #{block_forward.3} parent=5 // pred_check_branch
      %219 = sbr.rel (%p216) target = $region40
    $region39: #{block_forward.3} parent=5 // pred_region
      %s220 = ssub.s32 %s13, 1
      %p221 = scmp.lt.s32.totalorder %s18, 1
      %s222 = scalar_select %p221, %s18, 1
      %s223 = smul.addr %s222, 32
      %s224 = smul.addr %s223, 8
      %s225 = scalar_lea.vmem %s0, %s224
      %p226 = pneg %p39
      %p227 = pneg %p36
      %p228 = pneg %p60
      %p229 = pneg %p57
      %p230 = pneg %p81
      %p231 = pneg %p78
      %p232 = pneg %p102
      %p233 = pneg %p99
      %p234 = pneg %p123
      %p235 = pneg %p120
      %p236 = pneg %p149
      %p237 = pneg %p146
      %p238 = scmp.lt.s32.totalorder %s18, 1
      %s239 = scalar_select %p238, %s18, 1
      %s240 = smul.addr %s239, 32
      %s241 = smul.addr %s240, 8
      %s242 = scalar_lea.vmem %s5, %s241
      %p243 = pneg %p175
      %p244 = pneg %p172
      %p245 = scmp.lt.s32.totalorder %s18, 1
      %s246 = scalar_select %p245, %s18, 1
      %s247 = smul.addr %s246, 2
      %s248 = scalar_lea.vmem %s6, %s247
      %p249 = scmp.lt.s32.totalorder %s18, 1
      %s250 = scalar_select %p249, %s18, 1
      %s251 = smul.addr %s250, 32
      %s252 = smul.addr %s251, 8
      %s253 = scalar_lea.vmem %s0, %s252
      %p254 = scmp.lt.s32.totalorder %s18, 1
      %s255 = scalar_select %p254, %s18, 1
      %s256 = smul.addr %s255, 32
      %s257 = smul.addr %s256, 8
      %s258 = scalar_lea.vmem %s5, %s257
      %p259 = scmp.lt.s32.totalorder %s18, 1
      %s260 = scalar_select %p259, %s18, 1
      %s261 = smul.addr %s260, 2
      %s262 = scalar_lea.vmem %s6, %s261
      %v264 = vld [vmem:[%s253] sm:$0xff]
      %v265 = vld [vmem:[%s253 + $0x8] sm:$0xff]
      %v266 = vld [vmem:[%s253 + $0x10] sm:$0xff]
      %v267 = vld [vmem:[%s253 + $0x18] sm:$0xff]
      %v268 = vld [vmem:[%s253 + $0x20] sm:$0xff]
      %v269 = vld [vmem:[%s253 + $0x28] sm:$0xff]
      %v270 = vld [vmem:[%s253 + $0x30] sm:$0xff]
      %v271 = vld [vmem:[%s253 + $0x38] sm:$0xff]
      %v272 = vld [vmem:[%s253 + $0x40] sm:$0xff]
      %v273 = vld [vmem:[%s253 + $0x48] sm:$0xff]
      %v274 = vld [vmem:[%s253 + $0x50] sm:$0xff]
      %v275 = vld [vmem:[%s253 + $0x58] sm:$0xff]
      %v276 = vld [vmem:[%s253 + $0x60] sm:$0xff]
      %v277 = vld [vmem:[%s253 + $0x68] sm:$0xff]
      %v278 = vld [vmem:[%s253 + $0x70] sm:$0xff]
      %v279 = vld [vmem:[%s253 + $0x78] sm:$0xff]
      %v280 = vld [vmem:[%s253 + $0x80] sm:$0xff]
      %v281 = vld [vmem:[%s253 + $0x88] sm:$0xff]
      %v282 = vld [vmem:[%s253 + $0x90] sm:$0xff]
      %v283 = vld [vmem:[%s253 + $0x98] sm:$0xff]
      %v284 = vld [vmem:[%s253 + $0xa0] sm:$0xff]
      %v285 = vld [vmem:[%s253 + $0xa8] sm:$0xff]
      %v286 = vld [vmem:[%s253 + $0xb0] sm:$0xff]
      %v287 = vld [vmem:[%s253 + $0xb8] sm:$0xff]
      %v288 = vld [vmem:[%s253 + $0xc0] sm:$0xff]
      %v289 = vld [vmem:[%s253 + $0xc8] sm:$0xff]
      %v290 = vld [vmem:[%s253 + $0xd0] sm:$0xff]
      %v291 = vld [vmem:[%s253 + $0xd8] sm:$0xff]
      %v292 = vld [vmem:[%s253 + $0xe0] sm:$0xff]
      %v293 = vld [vmem:[%s253 + $0xe8] sm:$0xff]
      %v294 = vld [vmem:[%s253 + $0xf0] sm:$0xff]
      %v295 = vld [vmem:[%s253 + $0xf8] sm:$0xff]
      %v296 = vld [vmem:[%s1] sm:$0x1]
      %v298 = vlaneseq
      %v299 = vshrl.u32 %v298, 7
      %v300 = vsub.s32 0, %v299
      %v301 = vrot.slane %v296, %v300
      %v303 = vmul.f32 %v264, %v301
      %v304 = vmul.f32 %v265, %v301
      %v305 = vmul.f32 %v266, %v301
      %v306 = vmul.f32 %v267, %v301
      %v307 = vmul.f32 %v268, %v301
      %v308 = vmul.f32 %v269, %v301
      %v309 = vmul.f32 %v270, %v301
      %v310 = vmul.f32 %v271, %v301
      %v311 = vmul.f32 %v272, %v301
      %v312 = vmul.f32 %v273, %v301
      %v313 = vmul.f32 %v274, %v301
      %v314 = vmul.f32 %v275, %v301
      %v315 = vmul.f32 %v276, %v301
      %v316 = vmul.f32 %v277, %v301
      %v317 = vmul.f32 %v278, %v301
      %v318 = vmul.f32 %v279, %v301
      %v319 = vmul.f32 %v280, %v301
      %v320 = vmul.f32 %v281, %v301
      %v321 = vmul.f32 %v282, %v301
      %v322 = vmul.f32 %v283, %v301
      %v323 = vmul.f32 %v284, %v301
      %v324 = vmul.f32 %v285, %v301
      %v325 = vmul.f32 %v286, %v301
      %v326 = vmul.f32 %v287, %v301
      %v327 = vmul.f32 %v288, %v301
      %v328 = vmul.f32 %v289, %v301
      %v329 = vmul.f32 %v290, %v301
      %v330 = vmul.f32 %v291, %v301
      %v331 = vmul.f32 %v292, %v301
      %v332 = vmul.f32 %v293, %v301
      %v333 = vmul.f32 %v294, %v301
      %v334 = vmul.f32 %v295, %v301
      %v335 = vld [vmem:[%s2] sm:$0x1]
      %v337 = vlaneseq
      %v338 = vshrl.u32 %v337, 7
      %v339 = vsub.s32 0, %v338
      %v340 = vrot.slane %v335, %v339
      %v342 = vadd.f32 %v303, %v340
      %v343 = vadd.f32 %v304, %v340
      %v344 = vadd.f32 %v305, %v340
      %v345 = vadd.f32 %v306, %v340
      %v346 = vadd.f32 %v307, %v340
      %v347 = vadd.f32 %v308, %v340
      %v348 = vadd.f32 %v309, %v340
      %v349 = vadd.f32 %v310, %v340
      %v350 = vadd.f32 %v311, %v340
      %v351 = vadd.f32 %v312, %v340
      %v352 = vadd.f32 %v313, %v340
      %v353 = vadd.f32 %v314, %v340
      %v354 = vadd.f32 %v315, %v340
      %v355 = vadd.f32 %v316, %v340
      %v356 = vadd.f32 %v317, %v340
      %v357 = vadd.f32 %v318, %v340
      %v358 = vadd.f32 %v319, %v340
      %v359 = vadd.f32 %v320, %v340
      %v360 = vadd.f32 %v321, %v340
      %v361 = vadd.f32 %v322, %v340
      %v362 = vadd.f32 %v323, %v340
      %v363 = vadd.f32 %v324, %v340
      %v364 = vadd.f32 %v325, %v340
      %v365 = vadd.f32 %v326, %v340
      %v366 = vadd.f32 %v327, %v340
      %v367 = vadd.f32 %v328, %v340
      %v368 = vadd.f32 %v329, %v340
      %v369 = vadd.f32 %v330, %v340
      %v370 = vadd.f32 %v331, %v340
      %v371 = vadd.f32 %v332, %v340
      %v372 = vadd.f32 %v333, %v340
      %v373 = vadd.f32 %v334, %v340
      %v374 = vmax.f32 %v342, 0.0
      %v375 = vmax.f32 %v343, 0.0
      %v376 = vmax.f32 %v344, 0.0
      %v377 = vmax.f32 %v345, 0.0
      %v378 = vmax.f32 %v346, 0.0
      %v379 = vmax.f32 %v347, 0.0
      %v380 = vmax.f32 %v348, 0.0
      %v381 = vmax.f32 %v349, 0.0
      %v382 = vmax.f32 %v350, 0.0
      %v383 = vmax.f32 %v351, 0.0
      %v384 = vmax.f32 %v352, 0.0
      %v385 = vmax.f32 %v353, 0.0
      %v386 = vmax.f32 %v354, 0.0
      %v387 = vmax.f32 %v355, 0.0
      %v388 = vmax.f32 %v356, 0.0
      %v389 = vmax.f32 %v357, 0.0
      %v390 = vmax.f32 %v358, 0.0
      %v391 = vmax.f32 %v359, 0.0
      %v392 = vmax.f32 %v360, 0.0
      %v393 = vmax.f32 %v361, 0.0
      %v394 = vmax.f32 %v362, 0.0
      %v395 = vmax.f32 %v363, 0.0
      %v396 = vmax.f32 %v364, 0.0
      %v397 = vmax.f32 %v365, 0.0
      %v398 = vmax.f32 %v366, 0.0
      %v399 = vmax.f32 %v367, 0.0
      %v400 = vmax.f32 %v368, 0.0
      %v401 = vmax.f32 %v369, 0.0
      %v402 = vmax.f32 %v370, 0.0
      %v403 = vmax.f32 %v371, 0.0
      %v404 = vmax.f32 %v372, 0.0
      %v405 = vmax.f32 %v373, 0.0
      %vm406 = vcmask 31744
      %407 = vst.msk [vmem:[#allocation2] sm:$0xff] %vm406, 0.0
      %408 = vst.msk [vmem:[#allocation2 + $0x8] sm:$0xff] %vm406, 0.0
      %vm409 = vcmask 25600
      %410 = vst.msk [vmem:[#allocation2 + $0x10] sm:$0x3] %vm409, 0.0
      %s411 = scalar_lea.vmem [#allocation2], 408
      %412 = vst.msk [vmem:[%s411] sm:$0xff] %vm406, 0.0
      %413 = vst.msk [vmem:[%s411 + $0x8] sm:$0xff] %vm406, 0.0
      %414 = vst.msk [vmem:[%s411 + $0x10] sm:$0x3] %vm409, 0.0
      %vm415 = vcmask 24576
      %416 = vst.msk [vmem:[#allocation2] sm:$0x1] %vm415, 0.0
      %417 = vst.msk [vmem:[#allocation2 + $0x18] sm:$0x1] %vm415, 0.0
      %418 = vst.msk [vmem:[#allocation2 + $0x30] sm:$0x1] %vm415, 0.0
      %419 = vst.msk [vmem:[#allocation2 + $0x48] sm:$0x1] %vm415, 0.0
      %420 = vst.msk [vmem:[#allocation2 + $0x60] sm:$0x1] %vm415, 0.0
      %421 = vst.msk [vmem:[#allocation2 + $0x78] sm:$0x1] %vm415, 0.0
      %422 = vst.msk [vmem:[#allocation2 + $0x90] sm:$0x1] %vm415, 0.0
      %423 = vst.msk [vmem:[#allocation2 + $0xa8] sm:$0x1] %vm415, 0.0
      %424 = vst.msk [vmem:[#allocation2 + $0xc0] sm:$0x1] %vm415, 0.0
      %425 = vst.msk [vmem:[#allocation2 + $0xd8] sm:$0x1] %vm415, 0.0
      %426 = vst.msk [vmem:[#allocation2 + $0xf0] sm:$0x1] %vm415, 0.0
      %427 = vst.msk [vmem:[#allocation2 + $0x108] sm:$0x1] %vm415, 0.0
      %428 = vst.msk [vmem:[#allocation2 + $0x120] sm:$0x1] %vm415, 0.0
      %429 = vst.msk [vmem:[#allocation2 + $0x138] sm:$0x1] %vm415, 0.0
      %430 = vst.msk [vmem:[#allocation2 + $0x150] sm:$0x1] %vm415, 0.0
      %431 = vst.msk [vmem:[#allocation2 + $0x168] sm:$0x1] %vm415, 0.0
      %432 = vst.msk [vmem:[#allocation2 + $0x180] sm:$0x1] %vm415, 0.0
      %433 = vst.msk [vmem:[#allocation2 + $0x198] sm:$0x1] %vm415, 0.0
      %434 = vst.msk [vmem:[#allocation2 + $0x11] sm:$0x1] %vm415, 0.0
      %435 = vst.msk [vmem:[#allocation2 + $0x29] sm:$0x1] %vm415, 0.0
      %436 = vst.msk [vmem:[#allocation2 + $0x41] sm:$0x1] %vm415, 0.0
      %437 = vst.msk [vmem:[#allocation2 + $0x59] sm:$0x1] %vm415, 0.0
      %438 = vst.msk [vmem:[#allocation2 + $0x71] sm:$0x1] %vm415, 0.0
      %439 = vst.msk [vmem:[#allocation2 + $0x89] sm:$0x1] %vm415, 0.0
      %440 = vst.msk [vmem:[#allocation2 + $0xa1] sm:$0x1] %vm415, 0.0
      %441 = vst.msk [vmem:[#allocation2 + $0xb9] sm:$0x1] %vm415, 0.0
      %442 = vst.msk [vmem:[#allocation2 + $0xd1] sm:$0x1] %vm415, 0.0
      %443 = vst.msk [vmem:[#allocation2 + $0xe9] sm:$0x1] %vm415, 0.0
      %444 = vst.msk [vmem:[#allocation2 + $0x101] sm:$0x1] %vm415, 0.0
      %445 = vst.msk [vmem:[#allocation2 + $0x119] sm:$0x1] %vm415, 0.0
      %446 = vst.msk [vmem:[#allocation2 + $0x131] sm:$0x1] %vm415, 0.0
      %447 = vst.msk [vmem:[#allocation2 + $0x149] sm:$0x1] %vm415, 0.0
      %448 = vst.msk [vmem:[#allocation2 + $0x161] sm:$0x1] %vm415, 0.0
      %449 = vst.msk [vmem:[#allocation2 + $0x179] sm:$0x1] %vm415, 0.0
      %450 = vst.msk [vmem:[#allocation2 + $0x191] sm:$0x1] %vm415, 0.0
      %451 = vst.msk [vmem:[#allocation2 + $0x1a9] sm:$0x1] %vm415, 0.0
      %s452 = scalar_lea.vmem [#allocation2], 24
      %453 = vst.msk [vmem:[%s452 + $0x1] sm:$0xff] %vm406, %v374
      %454 = vst.msk [vmem:[%s452 + $0x9] sm:$0xff] %vm406, %v375
      %455 = vst.msk [vmem:[%s452 + $0x19] sm:$0xff] %vm406, %v376
      %456 = vst.msk [vmem:[%s452 + $0x21] sm:$0xff] %vm406, %v377
      %457 = vst.msk [vmem:[%s452 + $0x31] sm:$0xff] %vm406, %v378
      %458 = vst.msk [vmem:[%s452 + $0x39] sm:$0xff] %vm406, %v379
      %459 = vst.msk [vmem:[%s452 + $0x49] sm:$0xff] %vm406, %v380
      %460 = vst.msk [vmem:[%s452 + $0x51] sm:$0xff] %vm406, %v381
      %461 = vst.msk [vmem:[%s452 + $0x61] sm:$0xff] %vm406, %v382
      %462 = vst.msk [vmem:[%s452 + $0x69] sm:$0xff] %vm406, %v383
      %463 = vst.msk [vmem:[%s452 + $0x79] sm:$0xff] %vm406, %v384
      %464 = vst.msk [vmem:[%s452 + $0x81] sm:$0xff] %vm406, %v385
      %465 = vst.msk [vmem:[%s452 + $0x91] sm:$0xff] %vm406, %v386
      %466 = vst.msk [vmem:[%s452 + $0x99] sm:$0xff] %vm406, %v387
      %467 = vst.msk [vmem:[%s452 + $0xa9] sm:$0xff] %vm406, %v388
      %468 = vst.msk [vmem:[%s452 + $0xb1] sm:$0xff] %vm406, %v389
      %469 = vst.msk [vmem:[%s452 + $0xc1] sm:$0xff] %vm406, %v390
      %470 = vst.msk [vmem:[%s452 + $0xc9] sm:$0xff] %vm406, %v391
      %471 = vst.msk [vmem:[%s452 + $0xd9] sm:$0xff] %vm406, %v392
      %472 = vst.msk [vmem:[%s452 + $0xe1] sm:$0xff] %vm406, %v393
      %473 = vst.msk [vmem:[%s452 + $0xf1] sm:$0xff] %vm406, %v394
      %474 = vst.msk [vmem:[%s452 + $0xf9] sm:$0xff] %vm406, %v395
      %475 = vst.msk [vmem:[%s452 + $0x109] sm:$0xff] %vm406, %v396
      %476 = vst.msk [vmem:[%s452 + $0x111] sm:$0xff] %vm406, %v397
      %477 = vst.msk [vmem:[%s452 + $0x121] sm:$0xff] %vm406, %v398
      %478 = vst.msk [vmem:[%s452 + $0x129] sm:$0xff] %vm406, %v399
      %479 = vst.msk [vmem:[%s452 + $0x139] sm:$0xff] %vm406, %v400
      %480 = vst.msk [vmem:[%s452 + $0x141] sm:$0xff] %vm406, %v401
      %481 = vst.msk [vmem:[%s452 + $0x151] sm:$0xff] %vm406, %v402
      %482 = vst.msk [vmem:[%s452 + $0x159] sm:$0xff] %vm406, %v403
      %483 = vst.msk [vmem:[%s452 + $0x169] sm:$0xff] %vm406, %v404
      %484 = vst.msk [vmem:[%s452 + $0x171] sm:$0xff] %vm406, %v405
      %v485 = vld [vmem:[#allocation2] sm:$0xff]
      %v486 = vld [vmem:[#allocation2 + $0x8] sm:$0xff]
      %v487 = vld [vmem:[#allocation2 + $0x18] sm:$0xff]
      %v488 = vld [vmem:[#allocation2 + $0x20] sm:$0xff]
      %v489 = vld [vmem:[#allocation2 + $0x30] sm:$0xff]
      %v490 = vld [vmem:[#allocation2 + $0x38] sm:$0xff]
      %v491 = vld [vmem:[#allocation2 + $0x48] sm:$0xff]
      %v492 = vld [vmem:[#allocation2 + $0x50] sm:$0xff]
      %v493 = vld [vmem:[#allocation2 + $0x60] sm:$0xff]
      %v494 = vld [vmem:[#allocation2 + $0x68] sm:$0xff]
      %v495 = vld [vmem:[#allocation2 + $0x78] sm:$0xff]
      %v496 = vld [vmem:[#allocation2 + $0x80] sm:$0xff]
      %v497 = vld [vmem:[#allocation2 + $0x90] sm:$0xff]
      %v498 = vld [vmem:[#allocation2 + $0x98] sm:$0xff]
      %v499 = vld [vmem:[#allocation2 + $0xa8] sm:$0xff]
      %v500 = vld [vmem:[#allocation2 + $0xb0] sm:$0xff]
      %v501 = vld [vmem:[#allocation2 + $0xc0] sm:$0xff]
      %v502 = vld [vmem:[#allocation2 + $0xc8] sm:$0xff]
      %v503 = vld [vmem:[#allocation2 + $0xd8] sm:$0xff]
      %v504 = vld [vmem:[#allocation2 + $0xe0] sm:$0xff]
      %v505 = vld [vmem:[#allocation2 + $0xf0] sm:$0xff]
      %v506 = vld [vmem:[#allocation2 + $0xf8] sm:$0xff]
      %v507 = vld [vmem:[#allocation2 + $0x108] sm:$0xff]
      %v508 = vld [vmem:[#allocation2 + $0x110] sm:$0xff]
      %v509 = vld [vmem:[#allocation2 + $0x120] sm:$0xff]
      %v510 = vld [vmem:[#allocation2 + $0x128] sm:$0xff]
      %v511 = vld [vmem:[#allocation2 + $0x138] sm:$0xff]
      %v512 = vld [vmem:[#allocation2 + $0x140] sm:$0xff]
      %v513 = vld [vmem:[#allocation2 + $0x150] sm:$0xff]
      %v514 = vld [vmem:[#allocation2 + $0x158] sm:$0xff]
      %v515 = vld [vmem:[#allocation2 + $0x168] sm:$0xff]
      %v516 = vld [vmem:[#allocation2 + $0x170] sm:$0xff]
      %v517 = vld [vmem:[#allocation2 + $0x1] sm:$0xff]
      %v518 = vld [vmem:[#allocation2 + $0x9] sm:$0xff]
      %v519 = vld [vmem:[#allocation2 + $0x19] sm:$0xff]
      %v520 = vld [vmem:[#allocation2 + $0x21] sm:$0xff]
      %v521 = vld [vmem:[#allocation2 + $0x31] sm:$0xff]
      %v522 = vld [vmem:[#allocation2 + $0x39] sm:$0xff]
      %v523 = vld [vmem:[#allocation2 + $0x49] sm:$0xff]
      %v524 = vld [vmem:[#allocation2 + $0x51] sm:$0xff]
      %v525 = vld [vmem:[#allocation2 + $0x61] sm:$0xff]
      %v526 = vld [vmem:[#allocation2 + $0x69] sm:$0xff]
      %v527 = vld [vmem:[#allocation2 + $0x79] sm:$0xff]
      %v528 = vld [vmem:[#allocation2 + $0x81] sm:$0xff]
      %v529 = vld [vmem:[#allocation2 + $0x91] sm:$0xff]
      %v530 = vld [vmem:[#allocation2 + $0x99] sm:$0xff]
      %v531 = vld [vmem:[#allocation2 + $0xa9] sm:$0xff]
      %v532 = vld [vmem:[#allocation2 + $0xb1] sm:$0xff]
      %v533 = vld [vmem:[#allocation2 + $0xc1] sm:$0xff]
      %v534 = vld [vmem:[#allocation2 + $0xc9] sm:$0xff]
      %v535 = vld [vmem:[#allocation2 + $0xd9] sm:$0xff]
      %v536 = vld [vmem:[#allocation2 + $0xe1] sm:$0xff]
      %v537 = vld [vmem:[#allocation2 + $0xf1] sm:$0xff]
      %v538 = vld [vmem:[#allocation2 + $0xf9] sm:$0xff]
      %v539 = vld [vmem:[#allocation2 + $0x109] sm:$0xff]
      %v540 = vld [vmem:[#allocation2 + $0x111] sm:$0xff]
      %v541 = vld [vmem:[#allocation2 + $0x121] sm:$0xff]
      %v542 = vld [vmem:[#allocation2 + $0x129] sm:$0xff]
      %v543 = vld [vmem:[#allocation2 + $0x139] sm:$0xff]
      %v544 = vld [vmem:[#allocation2 + $0x141] sm:$0xff]
      %v545 = vld [vmem:[#allocation2 + $0x151] sm:$0xff]
      %v546 = vld [vmem:[#allocation2 + $0x159] sm:$0xff]
      %v547 = vld [vmem:[#allocation2 + $0x169] sm:$0xff]
      %v548 = vld [vmem:[#allocation2 + $0x171] sm:$0xff]
      %v549 = vld [vmem:[#allocation2 + $0x2] sm:$0xff]
      %v550 = vld [vmem:[#allocation2 + $0xa] sm:$0xff]
      %v551 = vld [vmem:[#allocation2 + $0x1a] sm:$0xff]
      %v552 = vld [vmem:[#allocation2 + $0x22] sm:$0xff]
      %v553 = vld [vmem:[#allocation2 + $0x32] sm:$0xff]
      %v554 = vld [vmem:[#allocation2 + $0x3a] sm:$0xff]
      %v555 = vld [vmem:[#allocation2 + $0x4a] sm:$0xff]
      %v556 = vld [vmem:[#allocation2 + $0x52] sm:$0xff]
      %v557 = vld [vmem:[#allocation2 + $0x62] sm:$0xff]
      %v558 = vld [vmem:[#allocation2 + $0x6a] sm:$0xff]
      %v559 = vld [vmem:[#allocation2 + $0x7a] sm:$0xff]
      %v560 = vld [vmem:[#allocation2 + $0x82] sm:$0xff]
      %v561 = vld [vmem:[#allocation2 + $0x92] sm:$0xff]
      %v562 = vld [vmem:[#allocation2 + $0x9a] sm:$0xff]
      %v563 = vld [vmem:[#allocation2 + $0xaa] sm:$0xff]
      %v564 = vld [vmem:[#allocation2 + $0xb2] sm:$0xff]
      %v565 = vld [vmem:[#allocation2 + $0xc2] sm:$0xff]
      %v566 = vld [vmem:[#allocation2 + $0xca] sm:$0xff]
      %v567 = vld [vmem:[#allocation2 + $0xda] sm:$0xff]
      %v568 = vld [vmem:[#allocation2 + $0xe2] sm:$0xff]
      %v569 = vld [vmem:[#allocation2 + $0xf2] sm:$0xff]
      %v570 = vld [vmem:[#allocation2 + $0xfa] sm:$0xff]
      %v571 = vld [vmem:[#allocation2 + $0x10a] sm:$0xff]
      %v572 = vld [vmem:[#allocation2 + $0x112] sm:$0xff]
      %v573 = vld [vmem:[#allocation2 + $0x122] sm:$0xff]
      %v574 = vld [vmem:[#allocation2 + $0x12a] sm:$0xff]
      %v575 = vld [vmem:[#allocation2 + $0x13a] sm:$0xff]
      %v576 = vld [vmem:[#allocation2 + $0x142] sm:$0xff]
      %v577 = vld [vmem:[#allocation2 + $0x152] sm:$0xff]
      %v578 = vld [vmem:[#allocation2 + $0x15a] sm:$0xff]
      %v579 = vld [vmem:[#allocation2 + $0x16a] sm:$0xff]
      %v580 = vld [vmem:[#allocation2 + $0x172] sm:$0xff]
      %v581 = vld [vmem:[%s452] sm:$0xff]
      %v582 = vld [vmem:[%s452 + $0x8] sm:$0xff]
      %v583 = vld [vmem:[%s452 + $0x18] sm:$0xff]
      %v584 = vld [vmem:[%s452 + $0x20] sm:$0xff]
      %v585 = vld [vmem:[%s452 + $0x30] sm:$0xff]
      %v586 = vld [vmem:[%s452 + $0x38] sm:$0xff]
      %v587 = vld [vmem:[%s452 + $0x48] sm:$0xff]
      %v588 = vld [vmem:[%s452 + $0x50] sm:$0xff]
      %v589 = vld [vmem:[%s452 + $0x60] sm:$0xff]
      %v590 = vld [vmem:[%s452 + $0x68] sm:$0xff]
      %v591 = vld [vmem:[%s452 + $0x78] sm:$0xff]
      %v592 = vld [vmem:[%s452 + $0x80] sm:$0xff]
      %v593 = vld [vmem:[%s452 + $0x90] sm:$0xff]
      %v594 = vld [vmem:[%s452 + $0x98] sm:$0xff]
      %v595 = vld [vmem:[%s452 + $0xa8] sm:$0xff]
      %v596 = vld [vmem:[%s452 + $0xb0] sm:$0xff]
      %v597 = vld [vmem:[%s452 + $0xc0] sm:$0xff]
      %v598 = vld [vmem:[%s452 + $0xc8] sm:$0xff]
      %v599 = vld [vmem:[%s452 + $0xd8] sm:$0xff]
      %v600 = vld [vmem:[%s452 + $0xe0] sm:$0xff]
      %v601 = vld [vmem:[%s452 + $0xf0] sm:$0xff]
      %v602 = vld [vmem:[%s452 + $0xf8] sm:$0xff]
      %v603 = vld [vmem:[%s452 + $0x108] sm:$0xff]
      %v604 = vld [vmem:[%s452 + $0x110] sm:$0xff]
      %v605 = vld [vmem:[%s452 + $0x120] sm:$0xff]
      %v606 = vld [vmem:[%s452 + $0x128] sm:$0xff]
      %v607 = vld [vmem:[%s452 + $0x138] sm:$0xff]
      %v608 = vld [vmem:[%s452 + $0x140] sm:$0xff]
      %v609 = vld [vmem:[%s452 + $0x150] sm:$0xff]
      %v610 = vld [vmem:[%s452 + $0x158] sm:$0xff]
      %v611 = vld [vmem:[%s452 + $0x168] sm:$0xff]
      %v612 = vld [vmem:[%s452 + $0x170] sm:$0xff]
      %v613 = vld [vmem:[%s452 + $0x1] sm:$0xff]
      %v614 = vld [vmem:[%s452 + $0x9] sm:$0xff]
      %v615 = vld [vmem:[%s452 + $0x19] sm:$0xff]
      %v616 = vld [vmem:[%s452 + $0x21] sm:$0xff]
      %v617 = vld [vmem:[%s452 + $0x31] sm:$0xff]
      %v618 = vld [vmem:[%s452 + $0x39] sm:$0xff]
      %v619 = vld [vmem:[%s452 + $0x49] sm:$0xff]
      %v620 = vld [vmem:[%s452 + $0x51] sm:$0xff]
      %v621 = vld [vmem:[%s452 + $0x61] sm:$0xff]
      %v622 = vld [vmem:[%s452 + $0x69] sm:$0xff]
      %v623 = vld [vmem:[%s452 + $0x79] sm:$0xff]
      %v624 = vld [vmem:[%s452 + $0x81] sm:$0xff]
      %v625 = vld [vmem:[%s452 + $0x91] sm:$0xff]
      %v626 = vld [vmem:[%s452 + $0x99] sm:$0xff]
      %v627 = vld [vmem:[%s452 + $0xa9] sm:$0xff]
      %v628 = vld [vmem:[%s452 + $0xb1] sm:$0xff]
      %v629 = vld [vmem:[%s452 + $0xc1] sm:$0xff]
      %v630 = vld [vmem:[%s452 + $0xc9] sm:$0xff]
      %v631 = vld [vmem:[%s452 + $0xd9] sm:$0xff]
      %v632 = vld [vmem:[%s452 + $0xe1] sm:$0xff]
      %v633 = vld [vmem:[%s452 + $0xf1] sm:$0xff]
      %v634 = vld [vmem:[%s452 + $0xf9] sm:$0xff]
      %v635 = vld [vmem:[%s452 + $0x109] sm:$0xff]
      %v636 = vld [vmem:[%s452 + $0x111] sm:$0xff]
      %v637 = vld [vmem:[%s452 + $0x121] sm:$0xff]
      %v638 = vld [vmem:[%s452 + $0x129] sm:$0xff]
      %v639 = vld [vmem:[%s452 + $0x139] sm:$0xff]
      %v640 = vld [vmem:[%s452 + $0x141] sm:$0xff]
      %v641 = vld [vmem:[%s452 + $0x151] sm:$0xff]
      %v642 = vld [vmem:[%s452 + $0x159] sm:$0xff]
      %v643 = vld [vmem:[%s452 + $0x169] sm:$0xff]
      %v644 = vld [vmem:[%s452 + $0x171] sm:$0xff]
      %v645 = vld [vmem:[%s452 + $0x2] sm:$0xff]
      %v646 = vld [vmem:[%s452 + $0xa] sm:$0xff]
      %v647 = vld [vmem:[%s452 + $0x1a] sm:$0xff]
      %v648 = vld [vmem:[%s452 + $0x22] sm:$0xff]
      %v649 = vld [vmem:[%s452 + $0x32] sm:$0xff]
      %v650 = vld [vmem:[%s452 + $0x3a] sm:$0xff]
      %v651 = vld [vmem:[%s452 + $0x4a] sm:$0xff]
      %v652 = vld [vmem:[%s452 + $0x52] sm:$0xff]
      %v653 = vld [vmem:[%s452 + $0x62] sm:$0xff]
      %v654 = vld [vmem:[%s452 + $0x6a] sm:$0xff]
      %v655 = vld [vmem:[%s452 + $0x7a] sm:$0xff]
      %v656 = vld [vmem:[%s452 + $0x82] sm:$0xff]
      %v657 = vld [vmem:[%s452 + $0x92] sm:$0xff]
      %v658 = vld [vmem:[%s452 + $0x9a] sm:$0xff]
      %v659 = vld [vmem:[%s452 + $0xaa] sm:$0xff]
      %v660 = vld [vmem:[%s452 + $0xb2] sm:$0xff]
      %v661 = vld [vmem:[%s452 + $0xc2] sm:$0xff]
      %v662 = vld [vmem:[%s452 + $0xca] sm:$0xff]
      %v663 = vld [vmem:[%s452 + $0xda] sm:$0xff]
      %v664 = vld [vmem:[%s452 + $0xe2] sm:$0xff]
      %v665 = vld [vmem:[%s452 + $0xf2] sm:$0xff]
      %v666 = vld [vmem:[%s452 + $0xfa] sm:$0xff]
      %v667 = vld [vmem:[%s452 + $0x10a] sm:$0xff]
      %v668 = vld [vmem:[%s452 + $0x112] sm:$0xff]
      %v669 = vld [vmem:[%s452 + $0x122] sm:$0xff]
      %v670 = vld [vmem:[%s452 + $0x12a] sm:$0xff]
      %v671 = vld [vmem:[%s452 + $0x13a] sm:$0xff]
      %v672 = vld [vmem:[%s452 + $0x142] sm:$0xff]
      %v673 = vld [vmem:[%s452 + $0x152] sm:$0xff]
      %v674 = vld [vmem:[%s452 + $0x15a] sm:$0xff]
      %v675 = vld [vmem:[%s452 + $0x16a] sm:$0xff]
      %v676 = vld [vmem:[%s452 + $0x172] sm:$0xff]
      %s677 = scalar_lea.vmem [#allocation2], 48
      %v678 = vld [vmem:[%s677] sm:$0xff]
      %v679 = vld [vmem:[%s677 + $0x8] sm:$0xff]
      %v680 = vld [vmem:[%s677 + $0x18] sm:$0xff]
      %v681 = vld [vmem:[%s677 + $0x20] sm:$0xff]
      %v682 = vld [vmem:[%s677 + $0x30] sm:$0xff]
      %v683 = vld [vmem:[%s677 + $0x38] sm:$0xff]
      %v684 = vld [vmem:[%s677 + $0x48] sm:$0xff]
      %v685 = vld [vmem:[%s677 + $0x50] sm:$0xff]
      %v686 = vld [vmem:[%s677 + $0x60] sm:$0xff]
      %v687 = vld [vmem:[%s677 + $0x68] sm:$0xff]
      %v688 = vld [vmem:[%s677 + $0x78] sm:$0xff]
      %v689 = vld [vmem:[%s677 + $0x80] sm:$0xff]
      %v690 = vld [vmem:[%s677 + $0x90] sm:$0xff]
      %v691 = vld [vmem:[%s677 + $0x98] sm:$0xff]
      %v692 = vld [vmem:[%s677 + $0xa8] sm:$0xff]
      %v693 = vld [vmem:[%s677 + $0xb0] sm:$0xff]
      %v694 = vld [vmem:[%s677 + $0xc0] sm:$0xff]
      %v695 = vld [vmem:[%s677 + $0xc8] sm:$0xff]
      %v696 = vld [vmem:[%s677 + $0xd8] sm:$0xff]
      %v697 = vld [vmem:[%s677 + $0xe0] sm:$0xff]
      %v698 = vld [vmem:[%s677 + $0xf0] sm:$0xff]
      %v699 = vld [vmem:[%s677 + $0xf8] sm:$0xff]
      %v700 = vld [vmem:[%s677 + $0x108] sm:$0xff]
      %v701 = vld [vmem:[%s677 + $0x110] sm:$0xff]
      %v702 = vld [vmem:[%s677 + $0x120] sm:$0xff]
      %v703 = vld [vmem:[%s677 + $0x128] sm:$0xff]
      %v704 = vld [vmem:[%s677 + $0x138] sm:$0xff]
      %v705 = vld [vmem:[%s677 + $0x140] sm:$0xff]
      %v706 = vld [vmem:[%s677 + $0x150] sm:$0xff]
      %v707 = vld [vmem:[%s677 + $0x158] sm:$0xff]
      %v708 = vld [vmem:[%s677 + $0x168] sm:$0xff]
      %v709 = vld [vmem:[%s677 + $0x170] sm:$0xff]
      %v710 = vld [vmem:[%s677 + $0x1] sm:$0xff]
      %v711 = vld [vmem:[%s677 + $0x9] sm:$0xff]
      %v712 = vld [vmem:[%s677 + $0x19] sm:$0xff]
      %v713 = vld [vmem:[%s677 + $0x21] sm:$0xff]
      %v714 = vld [vmem:[%s677 + $0x31] sm:$0xff]
      %v715 = vld [vmem:[%s677 + $0x39] sm:$0xff]
      %v716 = vld [vmem:[%s677 + $0x49] sm:$0xff]
      %v717 = vld [vmem:[%s677 + $0x51] sm:$0xff]
      %v718 = vld [vmem:[%s677 + $0x61] sm:$0xff]
      %v719 = vld [vmem:[%s677 + $0x69] sm:$0xff]
      %v720 = vld [vmem:[%s677 + $0x79] sm:$0xff]
      %v721 = vld [vmem:[%s677 + $0x81] sm:$0xff]
      %v722 = vld [vmem:[%s677 + $0x91] sm:$0xff]
      %v723 = vld [vmem:[%s677 + $0x99] sm:$0xff]
      %v724 = vld [vmem:[%s677 + $0xa9] sm:$0xff]
      %v725 = vld [vmem:[%s677 + $0xb1] sm:$0xff]
      %v726 = vld [vmem:[%s677 + $0xc1] sm:$0xff]
      %v727 = vld [vmem:[%s677 + $0xc9] sm:$0xff]
      %v728 = vld [vmem:[%s677 + $0xd9] sm:$0xff]
      %v729 = vld [vmem:[%s677 + $0xe1] sm:$0xff]
      %v730 = vld [vmem:[%s677 + $0xf1] sm:$0xff]
      %v731 = vld [vmem:[%s677 + $0xf9] sm:$0xff]
      %v732 = vld [vmem:[%s677 + $0x109] sm:$0xff]
      %v733 = vld [vmem:[%s677 + $0x111] sm:$0xff]
      %v734 = vld [vmem:[%s677 + $0x121] sm:$0xff]
      %v735 = vld [vmem:[%s677 + $0x129] sm:$0xff]
      %v736 = vld [vmem:[%s677 + $0x139] sm:$0xff]
      %v737 = vld [vmem:[%s677 + $0x141] sm:$0xff]
      %v738 = vld [vmem:[%s677 + $0x151] sm:$0xff]
      %v739 = vld [vmem:[%s677 + $0x159] sm:$0xff]
      %v740 = vld [vmem:[%s677 + $0x169] sm:$0xff]
      %v741 = vld [vmem:[%s677 + $0x171] sm:$0xff]
      %v742 = vld [vmem:[%s677 + $0x2] sm:$0xff]
      %v743 = vld [vmem:[%s677 + $0xa] sm:$0xff]
      %v744 = vld [vmem:[%s677 + $0x1a] sm:$0xff]
      %v745 = vld [vmem:[%s677 + $0x22] sm:$0xff]
      %v746 = vld [vmem:[%s677 + $0x32] sm:$0xff]
      %v747 = vld [vmem:[%s677 + $0x3a] sm:$0xff]
      %v748 = vld [vmem:[%s677 + $0x4a] sm:$0xff]
      %v749 = vld [vmem:[%s677 + $0x52] sm:$0xff]
      %v750 = vld [vmem:[%s677 + $0x62] sm:$0xff]
      %v751 = vld [vmem:[%s677 + $0x6a] sm:$0xff]
      %v752 = vld [vmem:[%s677 + $0x7a] sm:$0xff]
      %v753 = vld [vmem:[%s677 + $0x82] sm:$0xff]
      %v754 = vld [vmem:[%s677 + $0x92] sm:$0xff]
      %v755 = vld [vmem:[%s677 + $0x9a] sm:$0xff]
      %v756 = vld [vmem:[%s677 + $0xaa] sm:$0xff]
      %v757 = vld [vmem:[%s677 + $0xb2] sm:$0xff]
      %v758 = vld [vmem:[%s677 + $0xc2] sm:$0xff]
      %v759 = vld [vmem:[%s677 + $0xca] sm:$0xff]
      %v760 = vld [vmem:[%s677 + $0xda] sm:$0xff]
      %v761 = vld [vmem:[%s677 + $0xe2] sm:$0xff]
      %v762 = vld [vmem:[%s677 + $0xf2] sm:$0xff]
      %v763 = vld [vmem:[%s677 + $0xfa] sm:$0xff]
      %v764 = vld [vmem:[%s677 + $0x10a] sm:$0xff]
      %v765 = vld [vmem:[%s677 + $0x112] sm:$0xff]
      %v766 = vld [vmem:[%s677 + $0x122] sm:$0xff]
      %v767 = vld [vmem:[%s677 + $0x12a] sm:$0xff]
      %v768 = vld [vmem:[%s677 + $0x13a] sm:$0xff]
      %v769 = vld [vmem:[%s677 + $0x142] sm:$0xff]
      %v770 = vld [vmem:[%s677 + $0x152] sm:$0xff]
      %v771 = vld [vmem:[%s677 + $0x15a] sm:$0xff]
      %v772 = vld [vmem:[%s677 + $0x16a] sm:$0xff]
      %v773 = vld [vmem:[%s677 + $0x172] sm:$0xff]
      %806 = vrot.lane.b32.xlu0 %v517, 4
      %v807 = vpop.permute.xlu0 %806
      %808 = vrot.lane.b32.xlu0 %v518, 4
      %v809 = vpop.permute.xlu0 %808
      %810 = vrot.lane.b32.xlu0 %v519, 4
      %v811 = vpop.permute.xlu0 %810
      %812 = vrot.lane.b32.xlu0 %v520, 4
      %v813 = vpop.permute.xlu0 %812
      %814 = vrot.lane.b32.xlu0 %v521, 4
      %v815 = vpop.permute.xlu0 %814
      %816 = vrot.lane.b32.xlu0 %v522, 4
      %v817 = vpop.permute.xlu0 %816
      %818 = vrot.lane.b32.xlu0 %v523, 4
      %v819 = vpop.permute.xlu0 %818
      %820 = vrot.lane.b32.xlu0 %v524, 4
      %v821 = vpop.permute.xlu0 %820
      %822 = vrot.lane.b32.xlu0 %v525, 4
      %v823 = vpop.permute.xlu0 %822
      %824 = vrot.lane.b32.xlu0 %v526, 4
      %v825 = vpop.permute.xlu0 %824
      %826 = vrot.lane.b32.xlu0 %v527, 4
      %v827 = vpop.permute.xlu0 %826
      %828 = vrot.lane.b32.xlu0 %v528, 4
      %v829 = vpop.permute.xlu0 %828
      %830 = vrot.lane.b32.xlu0 %v529, 4
      %v831 = vpop.permute.xlu0 %830
      %832 = vrot.lane.b32.xlu0 %v530, 4
      %v833 = vpop.permute.xlu0 %832
      %834 = vrot.lane.b32.xlu0 %v531, 4
      %v835 = vpop.permute.xlu0 %834
      %836 = vrot.lane.b32.xlu0 %v532, 4
      %v837 = vpop.permute.xlu0 %836
      %838 = vrot.lane.b32.xlu0 %v533, 4
      %v839 = vpop.permute.xlu0 %838
      %840 = vrot.lane.b32.xlu0 %v534, 4
      %v841 = vpop.permute.xlu0 %840
      %842 = vrot.lane.b32.xlu0 %v535, 4
      %v843 = vpop.permute.xlu0 %842
      %844 = vrot.lane.b32.xlu0 %v536, 4
      %v845 = vpop.permute.xlu0 %844
      %846 = vrot.lane.b32.xlu0 %v537, 4
      %v847 = vpop.permute.xlu0 %846
      %848 = vrot.lane.b32.xlu0 %v538, 4
      %v849 = vpop.permute.xlu0 %848
      %850 = vrot.lane.b32.xlu0 %v539, 4
      %v851 = vpop.permute.xlu0 %850
      %852 = vrot.lane.b32.xlu0 %v540, 4
      %v853 = vpop.permute.xlu0 %852
      %854 = vrot.lane.b32.xlu0 %v541, 4
      %v855 = vpop.permute.xlu0 %854
      %856 = vrot.lane.b32.xlu0 %v542, 4
      %v857 = vpop.permute.xlu0 %856
      %858 = vrot.lane.b32.xlu0 %v543, 4
      %v859 = vpop.permute.xlu0 %858
      %860 = vrot.lane.b32.xlu0 %v544, 4
      %v861 = vpop.permute.xlu0 %860
      %862 = vrot.lane.b32.xlu0 %v545, 4
      %v863 = vpop.permute.xlu0 %862
      %864 = vrot.lane.b32.xlu0 %v546, 4
      %v865 = vpop.permute.xlu0 %864
      %866 = vrot.lane.b32.xlu0 %v547, 4
      %v867 = vpop.permute.xlu0 %866
      %868 = vrot.lane.b32.xlu0 %v548, 4
      %v869 = vpop.permute.xlu0 %868
      %934 = vrot.lane.b32.xlu0 %v549, 8
      %v935 = vpop.permute.xlu0 %934
      %936 = vrot.lane.b32.xlu0 %v550, 8
      %v937 = vpop.permute.xlu0 %936
      %938 = vrot.lane.b32.xlu0 %v551, 8
      %v939 = vpop.permute.xlu0 %938
      %940 = vrot.lane.b32.xlu0 %v552, 8
      %v941 = vpop.permute.xlu0 %940
      %942 = vrot.lane.b32.xlu0 %v553, 8
      %v943 = vpop.permute.xlu0 %942
      %944 = vrot.lane.b32.xlu0 %v554, 8
      %v945 = vpop.permute.xlu0 %944
      %946 = vrot.lane.b32.xlu0 %v555, 8
      %v947 = vpop.permute.xlu0 %946
      %948 = vrot.lane.b32.xlu0 %v556, 8
      %v949 = vpop.permute.xlu0 %948
      %950 = vrot.lane.b32.xlu0 %v557, 8
      %v951 = vpop.permute.xlu0 %950
      %952 = vrot.lane.b32.xlu0 %v558, 8
      %v953 = vpop.permute.xlu0 %952
      %954 = vrot.lane.b32.xlu0 %v559, 8
      %v955 = vpop.permute.xlu0 %954
      %956 = vrot.lane.b32.xlu0 %v560, 8
      %v957 = vpop.permute.xlu0 %956
      %958 = vrot.lane.b32.xlu0 %v561, 8
      %v959 = vpop.permute.xlu0 %958
      %960 = vrot.lane.b32.xlu0 %v562, 8
      %v961 = vpop.permute.xlu0 %960
      %962 = vrot.lane.b32.xlu0 %v563, 8
      %v963 = vpop.permute.xlu0 %962
      %964 = vrot.lane.b32.xlu0 %v564, 8
      %v965 = vpop.permute.xlu0 %964
      %966 = vrot.lane.b32.xlu0 %v565, 8
      %v967 = vpop.permute.xlu0 %966
      %968 = vrot.lane.b32.xlu0 %v566, 8
      %v969 = vpop.permute.xlu0 %968
      %970 = vrot.lane.b32.xlu0 %v567, 8
      %v971 = vpop.permute.xlu0 %970
      %972 = vrot.lane.b32.xlu0 %v568, 8
      %v973 = vpop.permute.xlu0 %972
      %974 = vrot.lane.b32.xlu0 %v569, 8
      %v975 = vpop.permute.xlu0 %974
      %976 = vrot.lane.b32.xlu0 %v570, 8
      %v977 = vpop.permute.xlu0 %976
      %978 = vrot.lane.b32.xlu0 %v571, 8
      %v979 = vpop.permute.xlu0 %978
      %980 = vrot.lane.b32.xlu0 %v572, 8
      %v981 = vpop.permute.xlu0 %980
      %982 = vrot.lane.b32.xlu0 %v573, 8
      %v983 = vpop.permute.xlu0 %982
      %984 = vrot.lane.b32.xlu0 %v574, 8
      %v985 = vpop.permute.xlu0 %984
      %986 = vrot.lane.b32.xlu0 %v575, 8
      %v987 = vpop.permute.xlu0 %986
      %988 = vrot.lane.b32.xlu0 %v576, 8
      %v989 = vpop.permute.xlu0 %988
      %990 = vrot.lane.b32.xlu0 %v577, 8
      %v991 = vpop.permute.xlu0 %990
      %992 = vrot.lane.b32.xlu0 %v578, 8
      %v993 = vpop.permute.xlu0 %992
      %994 = vrot.lane.b32.xlu0 %v579, 8
      %v995 = vpop.permute.xlu0 %994
      %996 = vrot.lane.b32.xlu0 %v580, 8
      %v997 = vpop.permute.xlu0 %996
      %1062 = vrot.lane.b32.xlu0 %v581, 12
      %v1063 = vpop.permute.xlu0 %1062
      %1064 = vrot.lane.b32.xlu0 %v582, 12
      %v1065 = vpop.permute.xlu0 %1064
      %1066 = vrot.lane.b32.xlu0 %v583, 12
      %v1067 = vpop.permute.xlu0 %1066
      %1068 = vrot.lane.b32.xlu0 %v584, 12
      %v1069 = vpop.permute.xlu0 %1068
      %1070 = vrot.lane.b32.xlu0 %v585, 12
      %v1071 = vpop.permute.xlu0 %1070
      %1072 = vrot.lane.b32.xlu0 %v586, 12
      %v1073 = vpop.permute.xlu0 %1072
      %1074 = vrot.lane.b32.xlu0 %v587, 12
      %v1075 = vpop.permute.xlu0 %1074
      %1076 = vrot.lane.b32.xlu0 %v588, 12
      %v1077 = vpop.permute.xlu0 %1076
      %1078 = vrot.lane.b32.xlu0 %v589, 12
      %v1079 = vpop.permute.xlu0 %1078
      %1080 = vrot.lane.b32.xlu0 %v590, 12
      %v1081 = vpop.permute.xlu0 %1080
      %1082 = vrot.lane.b32.xlu0 %v591, 12
      %v1083 = vpop.permute.xlu0 %1082
      %1084 = vrot.lane.b32.xlu0 %v592, 12
      %v1085 = vpop.permute.xlu0 %1084
      %1086 = vrot.lane.b32.xlu0 %v593, 12
      %v1087 = vpop.permute.xlu0 %1086
      %1088 = vrot.lane.b32.xlu0 %v594, 12
      %v1089 = vpop.permute.xlu0 %1088
      %1090 = vrot.lane.b32.xlu0 %v595, 12
      %v1091 = vpop.permute.xlu0 %1090
      %1092 = vrot.lane.b32.xlu0 %v596, 12
      %v1093 = vpop.permute.xlu0 %1092
      %1094 = vrot.lane.b32.xlu0 %v597, 12
      %v1095 = vpop.permute.xlu0 %1094
      %1096 = vrot.lane.b32.xlu0 %v598, 12
      %v1097 = vpop.permute.xlu0 %1096
      %1098 = vrot.lane.b32.xlu0 %v599, 12
      %v1099 = vpop.permute.xlu0 %1098
      %1100 = vrot.lane.b32.xlu0 %v600, 12
      %v1101 = vpop.permute.xlu0 %1100
      %1102 = vrot.lane.b32.xlu0 %v601, 12
      %v1103 = vpop.permute.xlu0 %1102
      %1104 = vrot.lane.b32.xlu0 %v602, 12
      %v1105 = vpop.permute.xlu0 %1104
      %1106 = vrot.lane.b32.xlu0 %v603, 12
      %v1107 = vpop.permute.xlu0 %1106
      %1108 = vrot.lane.b32.xlu0 %v604, 12
      %v1109 = vpop.permute.xlu0 %1108
      %1110 = vrot.lane.b32.xlu0 %v605, 12
      %v1111 = vpop.permute.xlu0 %1110
      %1112 = vrot.lane.b32.xlu0 %v606, 12
      %v1113 = vpop.permute.xlu0 %1112
      %1114 = vrot.lane.b32.xlu0 %v607, 12
      %v1115 = vpop.permute.xlu0 %1114
      %1116 = vrot.lane.b32.xlu0 %v608, 12
      %v1117 = vpop.permute.xlu0 %1116
      %1118 = vrot.lane.b32.xlu0 %v609, 12
      %v1119 = vpop.permute.xlu0 %1118
      %1120 = vrot.lane.b32.xlu0 %v610, 12
      %v1121 = vpop.permute.xlu0 %1120
      %1122 = vrot.lane.b32.xlu0 %v611, 12
      %v1123 = vpop.permute.xlu0 %1122
      %1124 = vrot.lane.b32.xlu0 %v612, 12
      %v1125 = vpop.permute.xlu0 %1124
      %1190 = vrot.lane.b32.xlu0 %v613, 16
      %v1191 = vpop.permute.xlu0 %1190
      %1192 = vrot.lane.b32.xlu0 %v614, 16
      %v1193 = vpop.permute.xlu0 %1192
      %1194 = vrot.lane.b32.xlu0 %v615, 16
      %v1195 = vpop.permute.xlu0 %1194
      %1196 = vrot.lane.b32.xlu0 %v616, 16
      %v1197 = vpop.permute.xlu0 %1196
      %1198 = vrot.lane.b32.xlu0 %v617, 16
      %v1199 = vpop.permute.xlu0 %1198
      %1200 = vrot.lane.b32.xlu0 %v618, 16
      %v1201 = vpop.permute.xlu0 %1200
      %1202 = vrot.lane.b32.xlu0 %v619, 16
      %v1203 = vpop.permute.xlu0 %1202
      %1204 = vrot.lane.b32.xlu0 %v620, 16
      %v1205 = vpop.permute.xlu0 %1204
      %1206 = vrot.lane.b32.xlu0 %v621, 16
      %v1207 = vpop.permute.xlu0 %1206
      %1208 = vrot.lane.b32.xlu0 %v622, 16
      %v1209 = vpop.permute.xlu0 %1208
      %1210 = vrot.lane.b32.xlu0 %v623, 16
      %v1211 = vpop.permute.xlu0 %1210
      %1212 = vrot.lane.b32.xlu0 %v624, 16
      %v1213 = vpop.permute.xlu0 %1212
      %1214 = vrot.lane.b32.xlu0 %v625, 16
      %v1215 = vpop.permute.xlu0 %1214
      %1216 = vrot.lane.b32.xlu0 %v626, 16
      %v1217 = vpop.permute.xlu0 %1216
      %1218 = vrot.lane.b32.xlu0 %v627, 16
      %v1219 = vpop.permute.xlu0 %1218
      %1220 = vrot.lane.b32.xlu0 %v628, 16
      %v1221 = vpop.permute.xlu0 %1220
      %1222 = vrot.lane.b32.xlu0 %v629, 16
      %v1223 = vpop.permute.xlu0 %1222
      %1224 = vrot.lane.b32.xlu0 %v630, 16
      %v1225 = vpop.permute.xlu0 %1224
      %1226 = vrot.lane.b32.xlu0 %v631, 16
      %v1227 = vpop.permute.xlu0 %1226
      %1228 = vrot.lane.b32.xlu0 %v632, 16
      %v1229 = vpop.permute.xlu0 %1228
      %1230 = vrot.lane.b32.xlu0 %v633, 16
      %v1231 = vpop.permute.xlu0 %1230
      %1232 = vrot.lane.b32.xlu0 %v634, 16
      %v1233 = vpop.permute.xlu0 %1232
      %1234 = vrot.lane.b32.xlu0 %v635, 16
      %v1235 = vpop.permute.xlu0 %1234
      %1236 = vrot.lane.b32.xlu0 %v636, 16
      %v1237 = vpop.permute.xlu0 %1236
      %1238 = vrot.lane.b32.xlu0 %v637, 16
      %v1239 = vpop.permute.xlu0 %1238
      %1240 = vrot.lane.b32.xlu0 %v638, 16
      %v1241 = vpop.permute.xlu0 %1240
      %1242 = vrot.lane.b32.xlu0 %v639, 16
      %v1243 = vpop.permute.xlu0 %1242
      %1244 = vrot.lane.b32.xlu0 %v640, 16
      %v1245 = vpop.permute.xlu0 %1244
      %1246 = vrot.lane.b32.xlu0 %v641, 16
      %v1247 = vpop.permute.xlu0 %1246
      %1248 = vrot.lane.b32.xlu0 %v642, 16
      %v1249 = vpop.permute.xlu0 %1248
      %1250 = vrot.lane.b32.xlu0 %v643, 16
      %v1251 = vpop.permute.xlu0 %1250
      %1252 = vrot.lane.b32.xlu0 %v644, 16
      %v1253 = vpop.permute.xlu0 %1252
      %1318 = vrot.lane.b32.xlu0 %v645, 20
      %v1319 = vpop.permute.xlu0 %1318
      %1320 = vrot.lane.b32.xlu0 %v646, 20
      %v1321 = vpop.permute.xlu0 %1320
      %1322 = vrot.lane.b32.xlu0 %v647, 20
      %v1323 = vpop.permute.xlu0 %1322
      %1324 = vrot.lane.b32.xlu0 %v648, 20
      %v1325 = vpop.permute.xlu0 %1324
      %1326 = vrot.lane.b32.xlu0 %v649, 20
      %v1327 = vpop.permute.xlu0 %1326
      %1328 = vrot.lane.b32.xlu0 %v650, 20
      %v1329 = vpop.permute.xlu0 %1328
      %1330 = vrot.lane.b32.xlu0 %v651, 20
      %v1331 = vpop.permute.xlu0 %1330
      %1332 = vrot.lane.b32.xlu0 %v652, 20
      %v1333 = vpop.permute.xlu0 %1332
      %1334 = vrot.lane.b32.xlu0 %v653, 20
      %v1335 = vpop.permute.xlu0 %1334
      %1336 = vrot.lane.b32.xlu0 %v654, 20
      %v1337 = vpop.permute.xlu0 %1336
      %1338 = vrot.lane.b32.xlu0 %v655, 20
      %v1339 = vpop.permute.xlu0 %1338
      %1340 = vrot.lane.b32.xlu0 %v656, 20
      %v1341 = vpop.permute.xlu0 %1340
      %1342 = vrot.lane.b32.xlu0 %v657, 20
      %v1343 = vpop.permute.xlu0 %1342
      %1344 = vrot.lane.b32.xlu0 %v658, 20
      %v1345 = vpop.permute.xlu0 %1344
      %1346 = vrot.lane.b32.xlu0 %v659, 20
      %v1347 = vpop.permute.xlu0 %1346
      %1348 = vrot.lane.b32.xlu0 %v660, 20
      %v1349 = vpop.permute.xlu0 %1348
      %1350 = vrot.lane.b32.xlu0 %v661, 20
      %v1351 = vpop.permute.xlu0 %1350
      %1352 = vrot.lane.b32.xlu0 %v662, 20
      %v1353 = vpop.permute.xlu0 %1352
      %1354 = vrot.lane.b32.xlu0 %v663, 20
      %v1355 = vpop.permute.xlu0 %1354
      %1356 = vrot.lane.b32.xlu0 %v664, 20
      %v1357 = vpop.permute.xlu0 %1356
      %1358 = vrot.lane.b32.xlu0 %v665, 20
      %v1359 = vpop.permute.xlu0 %1358
      %1360 = vrot.lane.b32.xlu0 %v666, 20
      %v1361 = vpop.permute.xlu0 %1360
      %1362 = vrot.lane.b32.xlu0 %v667, 20
      %v1363 = vpop.permute.xlu0 %1362
      %1364 = vrot.lane.b32.xlu0 %v668, 20
      %v1365 = vpop.permute.xlu0 %1364
      %1366 = vrot.lane.b32.xlu0 %v669, 20
      %v1367 = vpop.permute.xlu0 %1366
      %1368 = vrot.lane.b32.xlu0 %v670, 20
      %v1369 = vpop.permute.xlu0 %1368
      %1370 = vrot.lane.b32.xlu0 %v671, 20
      %v1371 = vpop.permute.xlu0 %1370
      %1372 = vrot.lane.b32.xlu0 %v672, 20
      %v1373 = vpop.permute.xlu0 %1372
      %1374 = vrot.lane.b32.xlu0 %v673, 20
      %v1375 = vpop.permute.xlu0 %1374
      %1376 = vrot.lane.b32.xlu0 %v674, 20
      %v1377 = vpop.permute.xlu0 %1376
      %1378 = vrot.lane.b32.xlu0 %v675, 20
      %v1379 = vpop.permute.xlu0 %1378
      %1380 = vrot.lane.b32.xlu0 %v676, 20
      %v1381 = vpop.permute.xlu0 %1380
      %1446 = vrot.lane.b32.xlu0 %v678, 24
      %v1447 = vpop.permute.xlu0 %1446
      %1448 = vrot.lane.b32.xlu0 %v679, 24
      %v1449 = vpop.permute.xlu0 %1448
      %1450 = vrot.lane.b32.xlu0 %v680, 24
      %v1451 = vpop.permute.xlu0 %1450
      %1452 = vrot.lane.b32.xlu0 %v681, 24
      %v1453 = vpop.permute.xlu0 %1452
      %1454 = vrot.lane.b32.xlu0 %v682, 24
      %v1455 = vpop.permute.xlu0 %1454
      %1456 = vrot.lane.b32.xlu0 %v683, 24
      %v1457 = vpop.permute.xlu0 %1456
      %1458 = vrot.lane.b32.xlu0 %v684, 24
      %v1459 = vpop.permute.xlu0 %1458
      %1460 = vrot.lane.b32.xlu0 %v685, 24
      %v1461 = vpop.permute.xlu0 %1460
      %1462 = vrot.lane.b32.xlu0 %v686, 24
      %v1463 = vpop.permute.xlu0 %1462
      %1464 = vrot.lane.b32.xlu0 %v687, 24
      %v1465 = vpop.permute.xlu0 %1464
      %1466 = vrot.lane.b32.xlu0 %v688, 24
      %v1467 = vpop.permute.xlu0 %1466
      %1468 = vrot.lane.b32.xlu0 %v689, 24
      %v1469 = vpop.permute.xlu0 %1468
      %1470 = vrot.lane.b32.xlu0 %v690, 24
      %v1471 = vpop.permute.xlu0 %1470
      %1472 = vrot.lane.b32.xlu0 %v691, 24
      %v1473 = vpop.permute.xlu0 %1472
      %1474 = vrot.lane.b32.xlu0 %v692, 24
      %v1475 = vpop.permute.xlu0 %1474
      %1476 = vrot.lane.b32.xlu0 %v693, 24
      %v1477 = vpop.permute.xlu0 %1476
      %1478 = vrot.lane.b32.xlu0 %v694, 24
      %v1479 = vpop.permute.xlu0 %1478
      %1480 = vrot.lane.b32.xlu0 %v695, 24
      %v1481 = vpop.permute.xlu0 %1480
      %1482 = vrot.lane.b32.xlu0 %v696, 24
      %v1483 = vpop.permute.xlu0 %1482
      %1484 = vrot.lane.b32.xlu0 %v697, 24
      %v1485 = vpop.permute.xlu0 %1484
      %1486 = vrot.lane.b32.xlu0 %v698, 24
      %v1487 = vpop.permute.xlu0 %1486
      %1488 = vrot.lane.b32.xlu0 %v699, 24
      %v1489 = vpop.permute.xlu0 %1488
      %1490 = vrot.lane.b32.xlu0 %v700, 24
      %v1491 = vpop.permute.xlu0 %1490
      %1492 = vrot.lane.b32.xlu0 %v701, 24
      %v1493 = vpop.permute.xlu0 %1492
      %1494 = vrot.lane.b32.xlu0 %v702, 24
      %v1495 = vpop.permute.xlu0 %1494
      %1496 = vrot.lane.b32.xlu0 %v703, 24
      %v1497 = vpop.permute.xlu0 %1496
      %1498 = vrot.lane.b32.xlu0 %v704, 24
      %v1499 = vpop.permute.xlu0 %1498
      %1500 = vrot.lane.b32.xlu0 %v705, 24
      %v1501 = vpop.permute.xlu0 %1500
      %1502 = vrot.lane.b32.xlu0 %v706, 24
      %v1503 = vpop.permute.xlu0 %1502
      %1504 = vrot.lane.b32.xlu0 %v707, 24
      %v1505 = vpop.permute.xlu0 %1504
      %1506 = vrot.lane.b32.xlu0 %v708, 24
      %v1507 = vpop.permute.xlu0 %1506
      %1508 = vrot.lane.b32.xlu0 %v709, 24
      %v1509 = vpop.permute.xlu0 %1508
      %1574 = vrot.lane.b32.xlu0 %v710, 28
      %v1575 = vpop.permute.xlu0 %1574
      %1576 = vrot.lane.b32.xlu0 %v711, 28
      %v1577 = vpop.permute.xlu0 %1576
      %1578 = vrot.lane.b32.xlu0 %v712, 28
      %v1579 = vpop.permute.xlu0 %1578
      %1580 = vrot.lane.b32.xlu0 %v713, 28
      %v1581 = vpop.permute.xlu0 %1580
      %1582 = vrot.lane.b32.xlu0 %v714, 28
      %v1583 = vpop.permute.xlu0 %1582
      %1584 = vrot.lane.b32.xlu0 %v715, 28
      %v1585 = vpop.permute.xlu0 %1584
      %1586 = vrot.lane.b32.xlu0 %v716, 28
      %v1587 = vpop.permute.xlu0 %1586
      %1588 = vrot.lane.b32.xlu0 %v717, 28
      %v1589 = vpop.permute.xlu0 %1588
      %1590 = vrot.lane.b32.xlu0 %v718, 28
      %v1591 = vpop.permute.xlu0 %1590
      %1592 = vrot.lane.b32.xlu0 %v719, 28
      %v1593 = vpop.permute.xlu0 %1592
      %1594 = vrot.lane.b32.xlu0 %v720, 28
      %v1595 = vpop.permute.xlu0 %1594
      %1596 = vrot.lane.b32.xlu0 %v721, 28
      %v1597 = vpop.permute.xlu0 %1596
      %1598 = vrot.lane.b32.xlu0 %v722, 28
      %v1599 = vpop.permute.xlu0 %1598
      %1600 = vrot.lane.b32.xlu0 %v723, 28
      %v1601 = vpop.permute.xlu0 %1600
      %1602 = vrot.lane.b32.xlu0 %v724, 28
      %v1603 = vpop.permute.xlu0 %1602
      %1604 = vrot.lane.b32.xlu0 %v725, 28
      %v1605 = vpop.permute.xlu0 %1604
      %1606 = vrot.lane.b32.xlu0 %v726, 28
      %v1607 = vpop.permute.xlu0 %1606
      %1608 = vrot.lane.b32.xlu0 %v727, 28
      %v1609 = vpop.permute.xlu0 %1608
      %1610 = vrot.lane.b32.xlu0 %v728, 28
      %v1611 = vpop.permute.xlu0 %1610
      %1612 = vrot.lane.b32.xlu0 %v729, 28
      %v1613 = vpop.permute.xlu0 %1612
      %1614 = vrot.lane.b32.xlu0 %v730, 28
      %v1615 = vpop.permute.xlu0 %1614
      %1616 = vrot.lane.b32.xlu0 %v731, 28
      %v1617 = vpop.permute.xlu0 %1616
      %1618 = vrot.lane.b32.xlu0 %v732, 28
      %v1619 = vpop.permute.xlu0 %1618
      %1620 = vrot.lane.b32.xlu0 %v733, 28
      %v1621 = vpop.permute.xlu0 %1620
      %1622 = vrot.lane.b32.xlu0 %v734, 28
      %v1623 = vpop.permute.xlu0 %1622
      %1624 = vrot.lane.b32.xlu0 %v735, 28
      %v1625 = vpop.permute.xlu0 %1624
      %1626 = vrot.lane.b32.xlu0 %v736, 28
      %v1627 = vpop.permute.xlu0 %1626
      %1628 = vrot.lane.b32.xlu0 %v737, 28
      %v1629 = vpop.permute.xlu0 %1628
      %1630 = vrot.lane.b32.xlu0 %v738, 28
      %v1631 = vpop.permute.xlu0 %1630
      %1632 = vrot.lane.b32.xlu0 %v739, 28
      %v1633 = vpop.permute.xlu0 %1632
      %1634 = vrot.lane.b32.xlu0 %v740, 28
      %v1635 = vpop.permute.xlu0 %1634
      %1636 = vrot.lane.b32.xlu0 %v741, 28
      %v1637 = vpop.permute.xlu0 %1636
      %1702 = vrot.lane.b32.xlu0 %v742, 32
      %v1703 = vpop.permute.xlu0 %1702
      %1704 = vrot.lane.b32.xlu0 %v743, 32
      %v1705 = vpop.permute.xlu0 %1704
      %1706 = vrot.lane.b32.xlu0 %v744, 32
      %v1707 = vpop.permute.xlu0 %1706
      %1708 = vrot.lane.b32.xlu0 %v745, 32
      %v1709 = vpop.permute.xlu0 %1708
      %1710 = vrot.lane.b32.xlu0 %v746, 32
      %v1711 = vpop.permute.xlu0 %1710
      %1712 = vrot.lane.b32.xlu0 %v747, 32
      %v1713 = vpop.permute.xlu0 %1712
      %1714 = vrot.lane.b32.xlu0 %v748, 32
      %v1715 = vpop.permute.xlu0 %1714
      %1716 = vrot.lane.b32.xlu0 %v749, 32
      %v1717 = vpop.permute.xlu0 %1716
      %1718 = vrot.lane.b32.xlu0 %v750, 32
      %v1719 = vpop.permute.xlu0 %1718
      %1720 = vrot.lane.b32.xlu0 %v751, 32
      %v1721 = vpop.permute.xlu0 %1720
      %1722 = vrot.lane.b32.xlu0 %v752, 32
      %v1723 = vpop.permute.xlu0 %1722
      %1724 = vrot.lane.b32.xlu0 %v753, 32
      %v1725 = vpop.permute.xlu0 %1724
      %1726 = vrot.lane.b32.xlu0 %v754, 32
      %v1727 = vpop.permute.xlu0 %1726
      %1728 = vrot.lane.b32.xlu0 %v755, 32
      %v1729 = vpop.permute.xlu0 %1728
      %1730 = vrot.lane.b32.xlu0 %v756, 32
      %v1731 = vpop.permute.xlu0 %1730
      %1732 = vrot.lane.b32.xlu0 %v757, 32
      %v1733 = vpop.permute.xlu0 %1732
      %1734 = vrot.lane.b32.xlu0 %v758, 32
      %v1735 = vpop.permute.xlu0 %1734
      %1736 = vrot.lane.b32.xlu0 %v759, 32
      %v1737 = vpop.permute.xlu0 %1736
      %1738 = vrot.lane.b32.xlu0 %v760, 32
      %v1739 = vpop.permute.xlu0 %1738
      %1740 = vrot.lane.b32.xlu0 %v761, 32
      %v1741 = vpop.permute.xlu0 %1740
      %1742 = vrot.lane.b32.xlu0 %v762, 32
      %v1743 = vpop.permute.xlu0 %1742
      %1744 = vrot.lane.b32.xlu0 %v763, 32
      %v1745 = vpop.permute.xlu0 %1744
      %1746 = vrot.lane.b32.xlu0 %v764, 32
      %v1747 = vpop.permute.xlu0 %1746
      %1748 = vrot.lane.b32.xlu0 %v765, 32
      %v1749 = vpop.permute.xlu0 %1748
      %1750 = vrot.lane.b32.xlu0 %v766, 32
      %v1751 = vpop.permute.xlu0 %1750
      %1752 = vrot.lane.b32.xlu0 %v767, 32
      %v1753 = vpop.permute.xlu0 %1752
      %1754 = vrot.lane.b32.xlu0 %v768, 32
      %v1755 = vpop.permute.xlu0 %1754
      %1756 = vrot.lane.b32.xlu0 %v769, 32
      %v1757 = vpop.permute.xlu0 %1756
      %1758 = vrot.lane.b32.xlu0 %v770, 32
      %v1759 = vpop.permute.xlu0 %1758
      %1760 = vrot.lane.b32.xlu0 %v771, 32
      %v1761 = vpop.permute.xlu0 %1760
      %1762 = vrot.lane.b32.xlu0 %v772, 32
      %v1763 = vpop.permute.xlu0 %1762
      %1764 = vrot.lane.b32.xlu0 %v773, 32
      %v1765 = vpop.permute.xlu0 %1764
      %v1798 = vsel %vm406, %v485, %v807
      %v1799 = vsel %vm406, %v486, %v809
      %v1800 = vsel %vm406, %v487, %v811
      %v1801 = vsel %vm406, %v488, %v813
      %v1802 = vsel %vm406, %v489, %v815
      %v1803 = vsel %vm406, %v490, %v817
      %v1804 = vsel %vm406, %v491, %v819
      %v1805 = vsel %vm406, %v492, %v821
      %v1806 = vsel %vm406, %v493, %v823
      %v1807 = vsel %vm406, %v494, %v825
      %v1808 = vsel %vm406, %v495, %v827
      %v1809 = vsel %vm406, %v496, %v829
      %v1810 = vsel %vm406, %v497, %v831
      %v1811 = vsel %vm406, %v498, %v833
      %v1812 = vsel %vm406, %v499, %v835
      %v1813 = vsel %vm406, %v500, %v837
      %v1814 = vsel %vm406, %v501, %v839
      %v1815 = vsel %vm406, %v502, %v841
      %v1816 = vsel %vm406, %v503, %v843
      %v1817 = vsel %vm406, %v504, %v845
      %v1818 = vsel %vm406, %v505, %v847
      %v1819 = vsel %vm406, %v506, %v849
      %v1820 = vsel %vm406, %v507, %v851
      %v1821 = vsel %vm406, %v508, %v853
      %v1822 = vsel %vm406, %v509, %v855
      %v1823 = vsel %vm406, %v510, %v857
      %v1824 = vsel %vm406, %v511, %v859
      %v1825 = vsel %vm406, %v512, %v861
      %v1826 = vsel %vm406, %v513, %v863
      %v1827 = vsel %vm406, %v514, %v865
      %v1828 = vsel %vm406, %v515, %v867
      %v1829 = vsel %vm406, %v516, %v869
      %vm1830 = vcmask 64512
      %v1831 = vsel %vm1830, %v1798, %v935
      %v1832 = vsel %vm1830, %v1799, %v937
      %v1833 = vsel %vm1830, %v1800, %v939
      %v1834 = vsel %vm1830, %v1801, %v941
      %v1835 = vsel %vm1830, %v1802, %v943
      %v1836 = vsel %vm1830, %v1803, %v945
      %v1837 = vsel %vm1830, %v1804, %v947
      %v1838 = vsel %vm1830, %v1805, %v949
      %v1839 = vsel %vm1830, %v1806, %v951
      %v1840 = vsel %vm1830, %v1807, %v953
      %v1841 = vsel %vm1830, %v1808, %v955
      %v1842 = vsel %vm1830, %v1809, %v957
      %v1843 = vsel %vm1830, %v1810, %v959
      %v1844 = vsel %vm1830, %v1811, %v961
      %v1845 = vsel %vm1830, %v1812, %v963
      %v1846 = vsel %vm1830, %v1813, %v965
      %v1847 = vsel %vm1830, %v1814, %v967
      %v1848 = vsel %vm1830, %v1815, %v969
      %v1849 = vsel %vm1830, %v1816, %v971
      %v1850 = vsel %vm1830, %v1817, %v973
      %v1851 = vsel %vm1830, %v1818, %v975
      %v1852 = vsel %vm1830, %v1819, %v977
      %v1853 = vsel %vm1830, %v1820, %v979
      %v1854 = vsel %vm1830, %v1821, %v981
      %v1855 = vsel %vm1830, %v1822, %v983
      %v1856 = vsel %vm1830, %v1823, %v985
      %v1857 = vsel %vm1830, %v1824, %v987
      %v1858 = vsel %vm1830, %v1825, %v989
      %v1859 = vsel %vm1830, %v1826, %v991
      %v1860 = vsel %vm1830, %v1827, %v993
      %v1861 = vsel %vm1830, %v1828, %v995
      %v1862 = vsel %vm1830, %v1829, %v997
      %vm1863 = vcmask 97280
      %v1864 = vsel %vm1863, %v1831, %v1063
      %v1865 = vsel %vm1863, %v1832, %v1065
      %v1866 = vsel %vm1863, %v1833, %v1067
      %v1867 = vsel %vm1863, %v1834, %v1069
      %v1868 = vsel %vm1863, %v1835, %v1071
      %v1869 = vsel %vm1863, %v1836, %v1073
      %v1870 = vsel %vm1863, %v1837, %v1075
      %v1871 = vsel %vm1863, %v1838, %v1077
      %v1872 = vsel %vm1863, %v1839, %v1079
      %v1873 = vsel %vm1863, %v1840, %v1081
      %v1874 = vsel %vm1863, %v1841, %v1083
      %v1875 = vsel %vm1863, %v1842, %v1085
      %v1876 = vsel %vm1863, %v1843, %v1087
      %v1877 = vsel %vm1863, %v1844, %v1089
      %v1878 = vsel %vm1863, %v1845, %v1091
      %v1879 = vsel %vm1863, %v1846, %v1093
      %v1880 = vsel %vm1863, %v1847, %v1095
      %v1881 = vsel %vm1863, %v1848, %v1097
      %v1882 = vsel %vm1863, %v1849, %v1099
      %v1883 = vsel %vm1863, %v1850, %v1101
      %v1884 = vsel %vm1863, %v1851, %v1103
      %v1885 = vsel %vm1863, %v1852, %v1105
      %v1886 = vsel %vm1863, %v1853, %v1107
      %v1887 = vsel %vm1863, %v1854, %v1109
      %v1888 = vsel %vm1863, %v1855, %v1111
      %v1889 = vsel %vm1863, %v1856, %v1113
      %v1890 = vsel %vm1863, %v1857, %v1115
      %v1891 = vsel %vm1863, %v1858, %v1117
      %v1892 = vsel %vm1863, %v1859, %v1119
      %v1893 = vsel %vm1863, %v1860, %v1121
      %v1894 = vsel %vm1863, %v1861, %v1123
      %v1895 = vsel %vm1863, %v1862, %v1125
      %vm1896 = vcmask 130048
      %v1897 = vsel %vm1896, %v1864, %v1191
      %v1898 = vsel %vm1896, %v1865, %v1193
      %v1899 = vsel %vm1896, %v1866, %v1195
      %v1900 = vsel %vm1896, %v1867, %v1197
      %v1901 = vsel %vm1896, %v1868, %v1199
      %v1902 = vsel %vm1896, %v1869, %v1201
      %v1903 = vsel %vm1896, %v1870, %v1203
      %v1904 = vsel %vm1896, %v1871, %v1205
      %v1905 = vsel %vm1896, %v1872, %v1207
      %v1906 = vsel %vm1896, %v1873, %v1209
      %v1907 = vsel %vm1896, %v1874, %v1211
      %v1908 = vsel %vm1896, %v1875, %v1213
      %v1909 = vsel %vm1896, %v1876, %v1215
      %v1910 = vsel %vm1896, %v1877, %v1217
      %v1911 = vsel %vm1896, %v1878, %v1219
      %v1912 = vsel %vm1896, %v1879, %v1221
      %v1913 = vsel %vm1896, %v1880, %v1223
      %v1914 = vsel %vm1896, %v1881, %v1225
      %v1915 = vsel %vm1896, %v1882, %v1227
      %v1916 = vsel %vm1896, %v1883, %v1229
      %v1917 = vsel %vm1896, %v1884, %v1231
      %v1918 = vsel %vm1896, %v1885, %v1233
      %v1919 = vsel %vm1896, %v1886, %v1235
      %v1920 = vsel %vm1896, %v1887, %v1237
      %v1921 = vsel %vm1896, %v1888, %v1239
      %v1922 = vsel %vm1896, %v1889, %v1241
      %v1923 = vsel %vm1896, %v1890, %v1243
      %v1924 = vsel %vm1896, %v1891, %v1245
      %v1925 = vsel %vm1896, %v1892, %v1247
      %v1926 = vsel %vm1896, %v1893, %v1249
      %v1927 = vsel %vm1896, %v1894, %v1251
      %v1928 = vsel %vm1896, %v1895, %v1253
      %vm1929 = vcmask 162816
      %v1930 = vsel %vm1929, %v1897, %v1319
      %v1931 = vsel %vm1929, %v1898, %v1321
      %v1932 = vsel %vm1929, %v1899, %v1323
      %v1933 = vsel %vm1929, %v1900, %v1325
      %v1934 = vsel %vm1929, %v1901, %v1327
      %v1935 = vsel %vm1929, %v1902, %v1329
      %v1936 = vsel %vm1929, %v1903, %v1331
      %v1937 = vsel %vm1929, %v1904, %v1333
      %v1938 = vsel %vm1929, %v1905, %v1335
      %v1939 = vsel %vm1929, %v1906, %v1337
      %v1940 = vsel %vm1929, %v1907, %v1339
      %v1941 = vsel %vm1929, %v1908, %v1341
      %v1942 = vsel %vm1929, %v1909, %v1343
      %v1943 = vsel %vm1929, %v1910, %v1345
      %v1944 = vsel %vm1929, %v1911, %v1347
      %v1945 = vsel %vm1929, %v1912, %v1349
      %v1946 = vsel %vm1929, %v1913, %v1351
      %v1947 = vsel %vm1929, %v1914, %v1353
      %v1948 = vsel %vm1929, %v1915, %v1355
      %v1949 = vsel %vm1929, %v1916, %v1357
      %v1950 = vsel %vm1929, %v1917, %v1359
      %v1951 = vsel %vm1929, %v1918, %v1361
      %v1952 = vsel %vm1929, %v1919, %v1363
      %v1953 = vsel %vm1929, %v1920, %v1365
      %v1954 = vsel %vm1929, %v1921, %v1367
      %v1955 = vsel %vm1929, %v1922, %v1369
      %v1956 = vsel %vm1929, %v1923, %v1371
      %v1957 = vsel %vm1929, %v1924, %v1373
      %v1958 = vsel %vm1929, %v1925, %v1375
      %v1959 = vsel %vm1929, %v1926, %v1377
      %v1960 = vsel %vm1929, %v1927, %v1379
      %v1961 = vsel %vm1929, %v1928, %v1381
      %vm1962 = vcmask 195584
      %v1963 = vsel %vm1962, %v1930, %v1447
      %v1964 = vsel %vm1962, %v1931, %v1449
      %v1965 = vsel %vm1962, %v1932, %v1451
      %v1966 = vsel %vm1962, %v1933, %v1453
      %v1967 = vsel %vm1962, %v1934, %v1455
      %v1968 = vsel %vm1962, %v1935, %v1457
      %v1969 = vsel %vm1962, %v1936, %v1459
      %v1970 = vsel %vm1962, %v1937, %v1461
      %v1971 = vsel %vm1962, %v1938, %v1463
      %v1972 = vsel %vm1962, %v1939, %v1465
      %v1973 = vsel %vm1962, %v1940, %v1467
      %v1974 = vsel %vm1962, %v1941, %v1469
      %v1975 = vsel %vm1962, %v1942, %v1471
      %v1976 = vsel %vm1962, %v1943, %v1473
      %v1977 = vsel %vm1962, %v1944, %v1475
      %v1978 = vsel %vm1962, %v1945, %v1477
      %v1979 = vsel %vm1962, %v1946, %v1479
      %v1980 = vsel %vm1962, %v1947, %v1481
      %v1981 = vsel %vm1962, %v1948, %v1483
      %v1982 = vsel %vm1962, %v1949, %v1485
      %v1983 = vsel %vm1962, %v1950, %v1487
      %v1984 = vsel %vm1962, %v1951, %v1489
      %v1985 = vsel %vm1962, %v1952, %v1491
      %v1986 = vsel %vm1962, %v1953, %v1493
      %v1987 = vsel %vm1962, %v1954, %v1495
      %v1988 = vsel %vm1962, %v1955, %v1497
      %v1989 = vsel %vm1962, %v1956, %v1499
      %v1990 = vsel %vm1962, %v1957, %v1501
      %v1991 = vsel %vm1962, %v1958, %v1503
      %v1992 = vsel %vm1962, %v1959, %v1505
      %v1993 = vsel %vm1962, %v1960, %v1507
      %v1994 = vsel %vm1962, %v1961, %v1509
      %vm1995 = vcmask 228352
      %v1996 = vsel %vm1995, %v1963, %v1575
      %v1997 = vsel %vm1995, %v1964, %v1577
      %v1998 = vsel %vm1995, %v1965, %v1579
      %v1999 = vsel %vm1995, %v1966, %v1581
      %v2000 = vsel %vm1995, %v1967, %v1583
      %v2001 = vsel %vm1995, %v1968, %v1585
      %v2002 = vsel %vm1995, %v1969, %v1587
      %v2003 = vsel %vm1995, %v1970, %v1589
      %v2004 = vsel %vm1995, %v1971, %v1591
      %v2005 = vsel %vm1995, %v1972, %v1593
      %v2006 = vsel %vm1995, %v1973, %v1595
      %v2007 = vsel %vm1995, %v1974, %v1597
      %v2008 = vsel %vm1995, %v1975, %v1599
      %v2009 = vsel %vm1995, %v1976, %v1601
      %v2010 = vsel %vm1995, %v1977, %v1603
      %v2011 = vsel %vm1995, %v1978, %v1605
      %v2012 = vsel %vm1995, %v1979, %v1607
      %v2013 = vsel %vm1995, %v1980, %v1609
      %v2014 = vsel %vm1995, %v1981, %v1611
      %v2015 = vsel %vm1995, %v1982, %v1613
      %v2016 = vsel %vm1995, %v1983, %v1615
      %v2017 = vsel %vm1995, %v1984, %v1617
      %v2018 = vsel %vm1995, %v1985, %v1619
      %v2019 = vsel %vm1995, %v1986, %v1621
      %v2020 = vsel %vm1995, %v1987, %v1623
      %v2021 = vsel %vm1995, %v1988, %v1625
      %v2022 = vsel %vm1995, %v1989, %v1627
      %v2023 = vsel %vm1995, %v1990, %v1629
      %v2024 = vsel %vm1995, %v1991, %v1631
      %v2025 = vsel %vm1995, %v1992, %v1633
      %v2026 = vsel %vm1995, %v1993, %v1635
      %v2027 = vsel %vm1995, %v1994, %v1637
      %vm2028 = vcmask 261120
      %v2029 = vsel %vm2028, %v1996, %v1703
      %v2030 = vsel %vm2028, %v1997, %v1705
      %v2031 = vsel %vm2028, %v1998, %v1707
      %v2032 = vsel %vm2028, %v1999, %v1709
      %v2033 = vsel %vm2028, %v2000, %v1711
      %v2034 = vsel %vm2028, %v2001, %v1713
      %v2035 = vsel %vm2028, %v2002, %v1715
      %v2036 = vsel %vm2028, %v2003, %v1717
      %v2037 = vsel %vm2028, %v2004, %v1719
      %v2038 = vsel %vm2028, %v2005, %v1721
      %v2039 = vsel %vm2028, %v2006, %v1723
      %v2040 = vsel %vm2028, %v2007, %v1725
      %v2041 = vsel %vm2028, %v2008, %v1727
      %v2042 = vsel %vm2028, %v2009, %v1729
      %v2043 = vsel %vm2028, %v2010, %v1731
      %v2044 = vsel %vm2028, %v2011, %v1733
      %v2045 = vsel %vm2028, %v2012, %v1735
      %v2046 = vsel %vm2028, %v2013, %v1737
      %v2047 = vsel %vm2028, %v2014, %v1739
      %v2048 = vsel %vm2028, %v2015, %v1741
      %v2049 = vsel %vm2028, %v2016, %v1743
      %v2050 = vsel %vm2028, %v2017, %v1745
      %v2051 = vsel %vm2028, %v2018, %v1747
      %v2052 = vsel %vm2028, %v2019, %v1749
      %v2053 = vsel %vm2028, %v2020, %v1751
      %v2054 = vsel %vm2028, %v2021, %v1753
      %v2055 = vsel %vm2028, %v2022, %v1755
      %v2056 = vsel %vm2028, %v2023, %v1757
      %v2057 = vsel %vm2028, %v2024, %v1759
      %v2058 = vsel %vm2028, %v2025, %v1761
      %v2059 = vsel %vm2028, %v2026, %v1763
      %v2060 = vsel %vm2028, %v2027, %v1765
      %v2061 = vpack.c.bf16 %v2030, %v2029
      %v2062 = vpack.c.bf16 %v2032, %v2031
      %v2063 = vpack.c.bf16 %v2034, %v2033
      %v2064 = vpack.c.bf16 %v2036, %v2035
      %v2065 = vpack.c.bf16 %v2038, %v2037
      %v2066 = vpack.c.bf16 %v2040, %v2039
      %v2067 = vpack.c.bf16 %v2042, %v2041
      %v2068 = vpack.c.bf16 %v2044, %v2043
      %v2069 = vpack.c.bf16 %v2046, %v2045
      %v2070 = vpack.c.bf16 %v2048, %v2047
      %v2071 = vpack.c.bf16 %v2050, %v2049
      %v2072 = vpack.c.bf16 %v2052, %v2051
      %v2073 = vpack.c.bf16 %v2054, %v2053
      %v2074 = vpack.c.bf16 %v2056, %v2055
      %v2075 = vpack.c.bf16 %v2058, %v2057
      %v2076 = vpack.c.bf16 %v2060, %v2059
      %v2077 = vld [vmem:[%s3] sm:$0xf]
      %v2078 = vld [vmem:[%s3 + $0x4] sm:$0xf]
      %v2079 = vld [vmem:[%s3 + $0x8] sm:$0xf]
      %v2080 = vld [vmem:[%s3 + $0xc] sm:$0xf]
      %v2081 = vld [vmem:[%s3 + $0x10] sm:$0x3]
      %v2082 = vld [vmem:[%s4] sm:$0x1]
      %v2084 = vlaneseq
      %v2085 = vshrl.u32 %v2084, 7
      %v2086 = vsub.s32 0, %v2085
      %v2087 = vrot.slane %v2082, %v2086
      %v2094 = vunpack.c.l.b16 %v2077
      %v2095 = vunpack.c.l.b16 %v2078
      %v2096 = vunpack.c.l.b16 %v2079
      %v2097 = vunpack.c.l.b16 %v2080
      %v2098 = vunpack.c.l.b16 %v2081
      %v2099 = vpack.c.b16 %v2095, %v2094
      %v2100 = vpack.c.b16 %v2097, %v2096
      %v2101 = vpack.c.b16 %v2098, %v2098
      %vm2104 = vcmask 293888
      %v2106 = vsel %vm2104, %v2061, 0
      %v2109 = vsel %vm2104, %v2062, 0
      %v2112 = vsel %vm2104, %v2063, 0
      %v2115 = vsel %vm2104, %v2064, 0
      %v2118 = vsel %vm2104, %v2065, 0
      %v2121 = vsel %vm2104, %v2066, 0
      %v2124 = vsel %vm2104, %v2067, 0
      %v2127 = vsel %vm2104, %v2068, 0
      %v2130 = vsel %vm2104, %v2069, 0
      %v2133 = vsel %vm2104, %v2070, 0
      %v2136 = vsel %vm2104, %v2071, 0
      %v2139 = vsel %vm2104, %v2072, 0
      %v2142 = vsel %vm2104, %v2073, 0
      %v2145 = vsel %vm2104, %v2074, 0
      %v2148 = vsel %vm2104, %v2075, 0
      %v2151 = vsel %vm2104, %v2076, 0
      %vm2153 = vcmask 1041408
      %v2155 = vsel %vm2153, %v2101, 0
      %2157 = vmatprep.subr.bf16.mxu0 0
      %2158 = vmatpush1.bf16.msra.mxu0 %v2099
      %2159 = vmatprep.subr.bf16.mxu0 0
      %2160 = vmatpush1.bf16.msra.mxu0 %v2100
      %2161 = vmatprep.subr.bf16.mxu0 0
      %2162 = vmatpush1.bf16.msra.mxu0 %v2155
      %2163 = vmatprep.subr.bf16.mxu0 0
      %2164 = vmatpush1.bf16.msra.mxu0 0
      %2165 = vmatprep.subr.bf16.mxu0 0
      %2166 = vmatpush1.bf16.msra.mxu0 0
      %2167 = vmatprep.subr.bf16.mxu0 0
      %2168 = vmatpush1.bf16.msra.mxu0 0
      %2169 = vmatprep.subr.bf16.mxu0 0
      %2170 = vmatpush1.bf16.msra.mxu0 0
      %2171 = vmatprep.subr.bf16.mxu0 0
      %2172 = vmatpush1.bf16.msra.mxu0 0
      %2173 = vmatprep.subr.bf16.mxu0 0
      %2174 = vmatpush1.bf16.msra.mxu0 0
      %2175 = vmatprep.subr.bf16.mxu0 0
      %2176 = vmatpush1.bf16.msra.mxu0 0
      %2177 = vmatprep.subr.bf16.mxu0 0
      %2178 = vmatpush1.bf16.msra.mxu0 0
      %2179 = vmatprep.subr.bf16.mxu0 0
      %2180 = vmatpush1.bf16.msra.mxu0 0
      %2181 = vmatprep.subr.bf16.mxu0 0
      %2182 = vmatpush1.bf16.msra.mxu0 0
      %2183 = vmatprep.subr.bf16.mxu0 0
      %2184 = vmatpush1.bf16.msra.mxu0 0
      %2185 = vmatprep.subr.bf16.mxu0 0
      %2186 = vmatpush1.bf16.msra.mxu0 0
      %2187 = vmatprep.subr.bf16.mxu0 0
      %2188 = vmatpush1.bf16.msra.mxu0 0
      %2189 = vmatprep.mubr.bf16.mxu0 0
      %2190 = vmatmul.mubr.bf16.gmra.mrb[0].mxu0 %v2106
      %v2191 = vpop.f32.mrb[0].mxu0
      %v2192 = vadd.f32 %v2087, %v2191
      %v2193 = vpop.f32.mrb[0].mxu0
      %v2194 = vpop.f32.mrb[0].mxu0
      %v2195 = vadd.f32 %v2087, %v2194
      %v2196 = vpop.f32.mrb[0].mxu0
      %2197 = vmatprep.mubr.bf16.mxu0 0
      %2198 = vmatmul.mubr.bf16.gmra.mrb[0].mxu0 %v2109
      %v2199 = vpop.f32.mrb[0].mxu0
      %v2200 = vadd.f32 %v2087, %v2199
      %v2201 = vpop.f32.mrb[0].mxu0
      %v2202 = vpop.f32.mrb[0].mxu0
      %v2203 = vadd.f32 %v2087, %v2202
      %v2204 = vpop.f32.mrb[0].mxu0
      %2205 = vmatprep.mubr.bf16.mxu0 0
      %2206 = vmatmul.mubr.bf16.gmra.mrb[0].mxu0 %v2112
      %v2207 = vpop.f32.mrb[0].mxu0
      %v2208 = vadd.f32 %v2087, %v2207
      %v2209 = vpop.f32.mrb[0].mxu0
      %v2210 = vpop.f32.mrb[0].mxu0
      %v2211 = vadd.f32 %v2087, %v2210
      %v2212 = vpop.f32.mrb[0].mxu0
      %2213 = vmatprep.mubr.bf16.mxu0 0
      %2214 = vmatmul.mubr.bf16.gmra.mrb[0].mxu0 %v2115
      %v2215 = vpop.f32.mrb[0].mxu0
      %v2216 = vadd.f32 %v2087, %v2215
      %v2217 = vpop.f32.mrb[0].mxu0
      %v2218 = vpop.f32.mrb[0].mxu0
      %v2219 = vadd.f32 %v2087, %v2218
      %v2220 = vpop.f32.mrb[0].mxu0
      %2221 = vmatprep.mubr.bf16.mxu0 0
      %2222 = vmatmul.mubr.bf16.gmra.mrb[0].mxu0 %v2118
      %v2223 = vpop.f32.mrb[0].mxu0
      %v2224 = vadd.f32 %v2087, %v2223
      %v2225 = vpop.f32.mrb[0].mxu0
      %v2226 = vpop.f32.mrb[0].mxu0
      %v2227 = vadd.f32 %v2087, %v2226
      %v2228 = vpop.f32.mrb[0].mxu0
      %2229 = vmatprep.mubr.bf16.mxu0 0
      %2230 = vmatmul.mubr.bf16.gmra.mrb[0].mxu0 %v2121
      %v2231 = vpop.f32.mrb[0].mxu0
      %v2232 = vadd.f32 %v2087, %v2231
      %v2233 = vpop.f32.mrb[0].mxu0
      %v2234 = vpop.f32.mrb[0].mxu0
      %v2235 = vadd.f32 %v2087, %v2234
      %v2236 = vpop.f32.mrb[0].mxu0
      %2237 = vmatprep.mubr.bf16.mxu0 0
      %2238 = vmatmul.mubr.bf16.gmra.mrb[0].mxu0 %v2124
      %v2239 = vpop.f32.mrb[0].mxu0
      %v2240 = vadd.f32 %v2087, %v2239
      %v2241 = vpop.f32.mrb[0].mxu0
      %v2242 = vpop.f32.mrb[0].mxu0
      %v2243 = vadd.f32 %v2087, %v2242
      %v2244 = vpop.f32.mrb[0].mxu0
      %2245 = vmatprep.mubr.bf16.mxu0 0
      %2246 = vmatmul.mubr.bf16.gmra.mrb[0].mxu0 %v2127
      %v2247 = vpop.f32.mrb[0].mxu0
      %v2248 = vadd.f32 %v2087, %v2247
      %v2249 = vpop.f32.mrb[0].mxu0
      %v2250 = vpop.f32.mrb[0].mxu0
      %v2251 = vadd.f32 %v2087, %v2250
      %v2252 = vpop.f32.mrb[0].mxu0
      %2253 = vmatprep.mubr.bf16.mxu0 0
      %2254 = vmatmul.mubr.bf16.gmra.mrb[0].mxu0 %v2130
      %v2255 = vpop.f32.mrb[0].mxu0
      %v2256 = vadd.f32 %v2087, %v2255
      %v2257 = vpop.f32.mrb[0].mxu0
      %v2258 = vpop.f32.mrb[0].mxu0
      %v2259 = vadd.f32 %v2087, %v2258
      %v2260 = vpop.f32.mrb[0].mxu0
      %2261 = vmatprep.mubr.bf16.mxu0 0
      %2262 = vmatmul.mubr.bf16.gmra.mrb[0].mxu0 %v2133
      %v2263 = vpop.f32.mrb[0].mxu0
      %v2264 = vadd.f32 %v2087, %v2263
      %v2265 = vpop.f32.mrb[0].mxu0
      %v2266 = vpop.f32.mrb[0].mxu0
      %v2267 = vadd.f32 %v2087, %v2266
      %v2268 = vpop.f32.mrb[0].mxu0
      %2269 = vmatprep.mubr.bf16.mxu0 0
      %2270 = vmatmul.mubr.bf16.gmra.mrb[0].mxu0 %v2136
      %v2271 = vpop.f32.mrb[0].mxu0
      %v2272 = vadd.f32 %v2087, %v2271
      %v2273 = vpop.f32.mrb[0].mxu0
      %v2274 = vpop.f32.mrb[0].mxu0
      %v2275 = vadd.f32 %v2087, %v2274
      %v2276 = vpop.f32.mrb[0].mxu0
      %2277 = vmatprep.mubr.bf16.mxu0 0
      %2278 = vmatmul.mubr.bf16.gmra.mrb[0].mxu0 %v2139
      %v2279 = vpop.f32.mrb[0].mxu0
      %v2280 = vadd.f32 %v2087, %v2279
      %v2281 = vpop.f32.mrb[0].mxu0
      %v2282 = vpop.f32.mrb[0].mxu0
      %v2283 = vadd.f32 %v2087, %v2282
      %v2284 = vpop.f32.mrb[0].mxu0
      %2285 = vmatprep.mubr.bf16.mxu0 0
      %2286 = vmatmul.mubr.bf16.gmra.mrb[0].mxu0 %v2142
      %v2287 = vpop.f32.mrb[0].mxu0
      %v2288 = vadd.f32 %v2087, %v2287
      %v2289 = vpop.f32.mrb[0].mxu0
      %v2290 = vpop.f32.mrb[0].mxu0
      %v2291 = vadd.f32 %v2087, %v2290
      %v2292 = vpop.f32.mrb[0].mxu0
      %2293 = vmatprep.mubr.bf16.mxu0 0
      %2294 = vmatmul.mubr.bf16.gmra.mrb[0].mxu0 %v2145
      %v2295 = vpop.f32.mrb[0].mxu0
      %v2296 = vadd.f32 %v2087, %v2295
      %v2297 = vpop.f32.mrb[0].mxu0
      %v2298 = vpop.f32.mrb[0].mxu0
      %v2299 = vadd.f32 %v2087, %v2298
      %v2300 = vpop.f32.mrb[0].mxu0
      %2301 = vmatprep.mubr.bf16.mxu0 0
      %2302 = vmatmul.mubr.bf16.gmra.mrb[0].mxu0 %v2148
      %v2303 = vpop.f32.mrb[0].mxu0
      %v2304 = vadd.f32 %v2087, %v2303
      %v2305 = vpop.f32.mrb[0].mxu0
      %v2306 = vpop.f32.mrb[0].mxu0
      %v2307 = vadd.f32 %v2087, %v2306
      %v2308 = vpop.f32.mrb[0].mxu0
      %2309 = vmatprep.mubr.bf16.mxu0 0
      %2310 = vmatmul.mubr.bf16.gmra.mrb[0].mxu0 %v2151
      %v2311 = vpop.f32.mrb[0].mxu0
      %v2312 = vadd.f32 %v2087, %v2311
      %v2313 = vpop.f32.mrb[0].mxu0
      %v2314 = vpop.f32.mrb[0].mxu0
      %v2315 = vadd.f32 %v2087, %v2314
      %v2316 = vpop.f32.mrb[0].mxu0
      %2317 = vdwg.mxu0
      %2318 = vst.msk [vmem:[%s258] sm:$0xff] %vm1830, %v2192
      %2319 = vst.msk [vmem:[%s258 + $0x8] sm:$0xff] %vm1830, %v2195
      %2320 = vst.msk [vmem:[%s258 + $0x10] sm:$0xff] %vm1830, %v2200
      %2321 = vst.msk [vmem:[%s258 + $0x18] sm:$0xff] %vm1830, %v2203
      %2322 = vst.msk [vmem:[%s258 + $0x20] sm:$0xff] %vm1830, %v2208
      %2323 = vst.msk [vmem:[%s258 + $0x28] sm:$0xff] %vm1830, %v2211
      %2324 = vst.msk [vmem:[%s258 + $0x30] sm:$0xff] %vm1830, %v2216
      %2325 = vst.msk [vmem:[%s258 + $0x38] sm:$0xff] %vm1830, %v2219
      %2326 = vst.msk [vmem:[%s258 + $0x40] sm:$0xff] %vm1830, %v2224
      %2327 = vst.msk [vmem:[%s258 + $0x48] sm:$0xff] %vm1830, %v2227
      %2328 = vst.msk [vmem:[%s258 + $0x50] sm:$0xff] %vm1830, %v2232
      %2329 = vst.msk [vmem:[%s258 + $0x58] sm:$0xff] %vm1830, %v2235
      %2330 = vst.msk [vmem:[%s258 + $0x60] sm:$0xff] %vm1830, %v2240
      %2331 = vst.msk [vmem:[%s258 + $0x68] sm:$0xff] %vm1830, %v2243
      %2332 = vst.msk [vmem:[%s258 + $0x70] sm:$0xff] %vm1830, %v2248
      %2333 = vst.msk [vmem:[%s258 + $0x78] sm:$0xff] %vm1830, %v2251
      %2334 = vst.msk [vmem:[%s258 + $0x80] sm:$0xff] %vm1830, %v2256
      %2335 = vst.msk [vmem:[%s258 + $0x88] sm:$0xff] %vm1830, %v2259
      %2336 = vst.msk [vmem:[%s258 + $0x90] sm:$0xff] %vm1830, %v2264
      %2337 = vst.msk [vmem:[%s258 + $0x98] sm:$0xff] %vm1830, %v2267
      %2338 = vst.msk [vmem:[%s258 + $0xa0] sm:$0xff] %vm1830, %v2272
      %2339 = vst.msk [vmem:[%s258 + $0xa8] sm:$0xff] %vm1830, %v2275
      %2340 = vst.msk [vmem:[%s258 + $0xb0] sm:$0xff] %vm1830, %v2280
      %2341 = vst.msk [vmem:[%s258 + $0xb8] sm:$0xff] %vm1830, %v2283
      %2342 = vst.msk [vmem:[%s258 + $0xc0] sm:$0xff] %vm1830, %v2288
      %2343 = vst.msk [vmem:[%s258 + $0xc8] sm:$0xff] %vm1830, %v2291
      %2344 = vst.msk [vmem:[%s258 + $0xd0] sm:$0xff] %vm1830, %v2296
      %2345 = vst.msk [vmem:[%s258 + $0xd8] sm:$0xff] %vm1830, %v2299
      %2346 = vst.msk [vmem:[%s258 + $0xe0] sm:$0xff] %vm1830, %v2304
      %2347 = vst.msk [vmem:[%s258 + $0xe8] sm:$0xff] %vm1830, %v2307
      %2348 = vst.msk [vmem:[%s258 + $0xf0] sm:$0xff] %vm1830, %v2312
      %2349 = vst.msk [vmem:[%s258 + $0xf8] sm:$0xff] %vm1830, %v2315
      %v2350 = vsel %vm1830, %v2192, 0.0
      %v2351 = vsel %vm1830, %v2195, 0.0
      %v2352 = vadd.f32 %v2350, %v2351
      %v2353 = vsel %vm1830, %v2200, 0.0
      %v2354 = vadd.f32 %v2352, %v2353
      %v2355 = vsel %vm1830, %v2203, 0.0
      %v2356 = vadd.f32 %v2354, %v2355
      %v2357 = vsel %vm1830, %v2208, 0.0
      %v2358 = vadd.f32 %v2356, %v2357
      %v2359 = vsel %vm1830, %v2211, 0.0
      %v2360 = vadd.f32 %v2358, %v2359
      %v2361 = vsel %vm1830, %v2216, 0.0
      %v2362 = vadd.f32 %v2360, %v2361
      %v2363 = vsel %vm1830, %v2219, 0.0
      %v2364 = vadd.f32 %v2362, %v2363
      %v2365 = vsel %vm1830, %v2224, 0.0
      %v2366 = vadd.f32 %v2364, %v2365
      %v2367 = vsel %vm1830, %v2227, 0.0
      %v2368 = vadd.f32 %v2366, %v2367
      %v2369 = vsel %vm1830, %v2232, 0.0
      %v2370 = vadd.f32 %v2368, %v2369
      %v2371 = vsel %vm1830, %v2235, 0.0
      %v2372 = vadd.f32 %v2370, %v2371
      %v2373 = vsel %vm1830, %v2240, 0.0
      %v2374 = vadd.f32 %v2372, %v2373
      %v2375 = vsel %vm1830, %v2243, 0.0
      %v2376 = vadd.f32 %v2374, %v2375
      %v2377 = vsel %vm1830, %v2248, 0.0
      %v2378 = vadd.f32 %v2376, %v2377
      %v2379 = vsel %vm1830, %v2251, 0.0
      %v2380 = vadd.f32 %v2378, %v2379
      %v2381 = vsel %vm1830, %v2256, 0.0
      %v2382 = vadd.f32 %v2380, %v2381
      %v2383 = vsel %vm1830, %v2259, 0.0
      %v2384 = vadd.f32 %v2382, %v2383
      %v2385 = vsel %vm1830, %v2264, 0.0
      %v2386 = vadd.f32 %v2384, %v2385
      %v2387 = vsel %vm1830, %v2267, 0.0
      %v2388 = vadd.f32 %v2386, %v2387
      %v2389 = vsel %vm1830, %v2272, 0.0
      %v2390 = vadd.f32 %v2388, %v2389
      %v2391 = vsel %vm1830, %v2275, 0.0
      %v2392 = vadd.f32 %v2390, %v2391
      %v2393 = vsel %vm1830, %v2280, 0.0
      %v2394 = vadd.f32 %v2392, %v2393
      %v2395 = vsel %vm1830, %v2283, 0.0
      %v2396 = vadd.f32 %v2394, %v2395
      %v2397 = vsel %vm1830, %v2288, 0.0
      %v2398 = vadd.f32 %v2396, %v2397
      %v2399 = vsel %vm1830, %v2291, 0.0
      %v2400 = vadd.f32 %v2398, %v2399
      %v2401 = vsel %vm1830, %v2296, 0.0
      %v2402 = vadd.f32 %v2400, %v2401
      %v2403 = vsel %vm1830, %v2299, 0.0
      %v2404 = vadd.f32 %v2402, %v2403
      %v2405 = vsel %vm1830, %v2304, 0.0
      %v2406 = vadd.f32 %v2404, %v2405
      %v2407 = vsel %vm1830, %v2307, 0.0
      %v2408 = vadd.f32 %v2406, %v2407
      %v2409 = vsel %vm1830, %v2312, 0.0
      %v2410 = vadd.f32 %v2408, %v2409
      %v2411 = vsel %vm1830, %v2315, 0.0
      %v2412 = vadd.f32 %v2410, %v2411
      %v2413 = vrot.slane %v2412, 4
      %v2414 = vadd.f32 %v2412, %v2413
      %v2415 = vrot.slane %v2414, 2
      %v2416 = vadd.f32 %v2414, %v2415
      %v2417 = vrot.slane %v2416, 1
      %v2418 = vadd.f32 %v2416, %v2417
      %v2419 = vmul.f32 %v2192, %v2192
      %v2420 = vmul.f32 %v2195, %v2195
      %v2421 = vmul.f32 %v2200, %v2200
      %v2422 = vmul.f32 %v2203, %v2203
      %v2423 = vmul.f32 %v2208, %v2208
      %v2424 = vmul.f32 %v2211, %v2211
      %v2425 = vmul.f32 %v2216, %v2216
      %v2426 = vmul.f32 %v2219, %v2219
      %v2427 = vmul.f32 %v2224, %v2224
      %v2428 = vmul.f32 %v2227, %v2227
      %v2429 = vmul.f32 %v2232, %v2232
      %v2430 = vmul.f32 %v2235, %v2235
      %v2431 = vmul.f32 %v2240, %v2240
      %v2432 = vmul.f32 %v2243, %v2243
      %v2433 = vmul.f32 %v2248, %v2248
      %v2434 = vmul.f32 %v2251, %v2251
      %v2435 = vmul.f32 %v2256, %v2256
      %v2436 = vmul.f32 %v2259, %v2259
      %v2437 = vmul.f32 %v2264, %v2264
      %v2438 = vmul.f32 %v2267, %v2267
      %v2439 = vmul.f32 %v2272, %v2272
      %v2440 = vmul.f32 %v2275, %v2275
      %v2441 = vmul.f32 %v2280, %v2280
      %v2442 = vmul.f32 %v2283, %v2283
      %v2443 = vmul.f32 %v2288, %v2288
      %v2444 = vmul.f32 %v2291, %v2291
      %v2445 = vmul.f32 %v2296, %v2296
      %v2446 = vmul.f32 %v2299, %v2299
      %v2447 = vmul.f32 %v2304, %v2304
      %v2448 = vmul.f32 %v2307, %v2307
      %v2449 = vmul.f32 %v2312, %v2312
      %v2450 = vmul.f32 %v2315, %v2315
      %v2451 = vsel %vm1830, %v2419, 0.0
      %v2452 = vsel %vm1830, %v2420, 0.0
      %v2453 = vadd.f32 %v2451, %v2452
      %v2454 = vsel %vm1830, %v2421, 0.0
      %v2455 = vadd.f32 %v2453, %v2454
      %v2456 = vsel %vm1830, %v2422, 0.0
      %v2457 = vadd.f32 %v2455, %v2456
      %v2458 = vsel %vm1830, %v2423, 0.0
      %v2459 = vadd.f32 %v2457, %v2458
      %v2460 = vsel %vm1830, %v2424, 0.0
      %v2461 = vadd.f32 %v2459, %v2460
      %v2462 = vsel %vm1830, %v2425, 0.0
      %v2463 = vadd.f32 %v2461, %v2462
      %v2464 = vsel %vm1830, %v2426, 0.0
      %v2465 = vadd.f32 %v2463, %v2464
      %v2466 = vsel %vm1830, %v2427, 0.0
      %v2467 = vadd.f32 %v2465, %v2466
      %v2468 = vsel %vm1830, %v2428, 0.0
      %v2469 = vadd.f32 %v2467, %v2468
      %v2470 = vsel %vm1830, %v2429, 0.0
      %v2471 = vadd.f32 %v2469, %v2470
      %v2472 = vsel %vm1830, %v2430, 0.0
      %v2473 = vadd.f32 %v2471, %v2472
      %v2474 = vsel %vm1830, %v2431, 0.0
      %v2475 = vadd.f32 %v2473, %v2474
      %v2476 = vsel %vm1830, %v2432, 0.0
      %v2477 = vadd.f32 %v2475, %v2476
      %v2478 = vsel %vm1830, %v2433, 0.0
      %v2479 = vadd.f32 %v2477, %v2478
      %v2480 = vsel %vm1830, %v2434, 0.0
      %v2481 = vadd.f32 %v2479, %v2480
      %v2482 = vsel %vm1830, %v2435, 0.0
      %v2483 = vadd.f32 %v2481, %v2482
      %v2484 = vsel %vm1830, %v2436, 0.0
      %v2485 = vadd.f32 %v2483, %v2484
      %v2486 = vsel %vm1830, %v2437, 0.0
      %v2487 = vadd.f32 %v2485, %v2486
      %v2488 = vsel %vm1830, %v2438, 0.0
      %v2489 = vadd.f32 %v2487, %v2488
      %v2490 = vsel %vm1830, %v2439, 0.0
      %v2491 = vadd.f32 %v2489, %v2490
      %v2492 = vsel %vm1830, %v2440, 0.0
      %v2493 = vadd.f32 %v2491, %v2492
      %v2494 = vsel %vm1830, %v2441, 0.0
      %v2495 = vadd.f32 %v2493, %v2494
      %v2496 = vsel %vm1830, %v2442, 0.0
      %v2497 = vadd.f32 %v2495, %v2496
      %v2498 = vsel %vm1830, %v2443, 0.0
      %v2499 = vadd.f32 %v2497, %v2498
      %v2500 = vsel %vm1830, %v2444, 0.0
      %v2501 = vadd.f32 %v2499, %v2500
      %v2502 = vsel %vm1830, %v2445, 0.0
      %v2503 = vadd.f32 %v2501, %v2502
      %v2504 = vsel %vm1830, %v2446, 0.0
      %v2505 = vadd.f32 %v2503, %v2504
      %v2506 = vsel %vm1830, %v2447, 0.0
      %v2507 = vadd.f32 %v2505, %v2506
      %v2508 = vsel %vm1830, %v2448, 0.0
      %v2509 = vadd.f32 %v2507, %v2508
      %v2510 = vsel %vm1830, %v2449, 0.0
      %v2511 = vadd.f32 %v2509, %v2510
      %v2512 = vsel %vm1830, %v2450, 0.0
      %v2513 = vadd.f32 %v2511, %v2512
      %v2514 = vrot.slane %v2513, 4
      %v2515 = vadd.f32 %v2513, %v2514
      %v2516 = vrot.slane %v2515, 2
      %v2517 = vadd.f32 %v2515, %v2516
      %v2518 = vrot.slane %v2517, 1
      %v2519 = vadd.f32 %v2517, %v2518
      %vm2520 = vcmask 1040384
      %v2521 = vsel %vm2520, %v2418, %v2519
      %vm2522 = vcmask 58368
      %2523 = vst.msk [vmem:[%s262] sm:$0x3] %vm2522, %v2521
      %p2524 = scmp.lt.s32.totalorder %s18, 1
      %s2525 = scalar_select %p2524, %s18, 1
      %s2526 = smul.addr %s2525, 32
      %s2527 = smul.addr %s2526, 8
      %s2528 = scalar_lea.vmem %s5, %s2527
      %p2529 = scmp.lt.s32.totalorder %s18, 1
      %s2530 = scalar_select %p2529, %s18, 1
      %s2531 = smul.addr %s2530, 2
      %s2532 = scalar_lea.vmem %s6, %s2531
      // Predicated region
      $region41: #{block_forward.3} parent=39 // pred_check
        %p2533 = pneg %p146
      $region42: #{block_forward.3} parent=39 // pred_check_branch
        %2535 = sbr.rel (%p2533) target = $region44
      $region43: #{block_forward.3} parent=39 // pred_region
        _
      $region44: #{block_forward.3} parent=39 // pred_fallthru
        _
      // Predicated region
      $region45: #{block_forward.3} parent=39 // pred_check
        %p2536 = pneg %p172
      $region46: #{block_forward.3} parent=39 // pred_check_branch
        %2538 = sbr.rel (%p2536) target = $region48
      $region47: #{block_forward.3} parent=39 // pred_region
        _
      $region48: #{block_forward.3} parent=39 // pred_fallthru
        _
    $region40: #{block_forward.3} parent=5 // pred_fallthru
      _
    %p2539 = scmp.le.s32.totalorder 2, %s13
    // Predicated region
    $region49: #{block_forward.3} parent=5 // pred_check
      %p2540 = pneg %p2539
    $region50: #{block_forward.3} parent=5 // pred_check_branch
      %2542 = sbr.rel (%p2540) target = $region52
    $region51: #{block_forward.3} parent=5 // pred_region
      %s2543 = ssub.s32 %s13, 2
      // Predicated region
      $region53: #{block_forward.3} parent=51 // pred_check
        %p2544 = pneg %p152
      $region54: #{block_forward.3} parent=51 // pred_check_branch
        %2546 = sbr.rel (%p2544) target = $region56
      $region55: #{block_forward.3} parent=51 // pred_region
        %p2547 = scmp.lt.s32.totalorder %s19, 1
        %s2548 = scalar_select %p2547, %s19, 1
        %s2549 = smul.addr %s2548, 32
        %s2550 = smul.addr %s2549, 8
        %s2551 = scalar_lea.vmem %s5, %s2550
      $region56: #{block_forward.3} parent=51 // pred_fallthru
        _
      // Predicated region
      $region57: #{block_forward.3} parent=51 // pred_check
        %p2552 = pneg %p178
      $region58: #{block_forward.3} parent=51 // pred_check_branch
        %2554 = sbr.rel (%p2552) target = $region60
      $region59: #{block_forward.3} parent=51 // pred_region
        %p2555 = scmp.lt.s32.totalorder %s19, 1
        %s2556 = scalar_select %p2555, %s19, 1
        %s2557 = smul.addr %s2556, 2
        %s2558 = scalar_lea.vmem %s6, %s2557
      $region60: #{block_forward.3} parent=51 // pred_fallthru
        _
    $region52: #{block_forward.3} parent=5 // pred_fallthru
      _
  $region6: #{block_forward.3} parent=0 // loop_footer
    %s17 = sadd.s32 1, %s13
  $region7: #{block_forward.3} parent=0 // loop_footer_branch
    %12 = sbr.rel target = $region3
  $region8: #{block_forward.3} parent=0 // loop_exit
    _

// kernel: block_forward.4
$region0: #{block_forward.4}
  #allocation0 [shape = 'u32[]', space=smem, size = 0x4, offset = 0x4, fixed_abs, tag = 'smem constant byte address 0x4 - core index']
  #allocation1 [shape = 'u32[144,128]{1,0:T(1,128)}', space=vmem, size = 0x12000, scoped, tag = 'internal scratch']
  #allocation2 [shape = 'f32[18,18,8]{2,1,0:T(8,128)}', space=vmem, size = 0x36000, scoped, tag = 'scratch operand']
  %s0 = inlined_call_operand.vmem [shape: f32[2,256,8], index: 0, kind: input, shape index: {}]
  %s1 = inlined_call_operand.vmem [shape: f32[1,8], index: 1, kind: input, shape index: {}]
  %s2 = inlined_call_operand.vmem [shape: f32[1,8], index: 2, kind: input, shape index: {}]
  %s3 = inlined_call_operand.vmem [shape: bf16[72,4], index: 3, kind: input, shape index: {}]
  %s4 = inlined_call_operand.vmem [shape: f32[1,4], index: 4, kind: input, shape index: {}]
  %s5 = inlined_call_operand.vmem [shape: f32[2,256,4], index: 5, kind: output, shape index: {0}]
  %s6 = inlined_call_operand.vmem [shape: f32[2,2,4], index: 6, kind: output, shape index: {1}]
  %7 = xla_tuple %s5, %s6
  %s8 = sld [smem:[#allocation0]]
  $region61: #{block_forward.4} parent=0
    _
  %s10 = ssub.s32 1, %s8
  %s11 = scalar_select 0, %s10, %s8
  loop: start=0, step=1, limit=4
  $region2: #{block_forward.4} parent=0 // loop_pre_header
    _
  $region3: #{block_forward.4} parent=0 // loop_header
    %s13 = sphi 0, %s17
    %p14 = scmp.ge.s32.totalorder %s13, 4
    %s23 = sphi 0, %s25
    %s26 = sphi 0, %s23
    %s27 = sphi 0, %s26
    %s43 = sphi 0, %s27
    %s47 = sphi 0, %s47
    %s49 = sphi 0, %s47
    %s50 = sphi 0, %s49
    %s64 = sphi 0, %s50
    %s68 = sphi 0, %s68
    %s70 = sphi 0, %s68
    %s71 = sphi 0, %s70
    %s85 = sphi 0, %s71
    %s89 = sphi 0, %s89
    %s91 = sphi 0, %s89
    %s92 = sphi 0, %s91
    %s106 = sphi 0, %s92
    %s110 = sphi 0, %s110
    %s112 = sphi 0, %s110
    %s113 = sphi 0, %s112
    %s127 = sphi 0, %s113
    %s133 = sphi 0, %s135
    %s136 = sphi 0, %s133
    %s137 = sphi 0, %s136
    %s153 = sphi 0, %s137
    %s159 = sphi 0, %s161
    %s162 = sphi 0, %s159
    %s163 = sphi 0, %s162
    %s179 = sphi 0, %s163
  $region4: #{block_forward.4} parent=0 // loop_header_branch
    %16 = sbr.rel (%p14) target = $region8
  $region5: #{block_forward.4} parent=0 // loop_body
    %s18 = ssub.s32 %s13, 1
    %s19 = ssub.s32 %s13, 2
    %s20 = sadd.s32 %s13, 1
    %s21 = ssub.s32 %s13, %s20
    %p22 = scmp.eq.s32.totalorder %s21, 0
    %s24 = sadd.s32 %s23, 1
    %s25 = scalar_select %p22, %s23, %s24
    %p28 = pneg %p22
    %p29 = scmp.eq.s32.totalorder %s13, 1
    %p30 = por %p28, %p29
    %p31 = scmp.ne.s32.totalorder %s23, %s26
    %p32 = scmp.eq.s32.totalorder %s13, 0
    %p33 = por %p31, %p32
    %p34 = scmp.ne.s32.totalorder %s23, %s26
    %p35 = scmp.eq.s32.totalorder %s18, 1
    %p36 = por %p34, %p35
    %p37 = scmp.ne.s32.totalorder %s26, %s27
    %p38 = scmp.eq.s32.totalorder %s18, 0
    %p39 = por %p37, %p38
    %p40 = scmp.ne.s32.totalorder %s26, %s27
    %p41 = scmp.eq.s32.totalorder %s19, 1
    %p42 = por %p40, %p41
    %p44 = scmp.ne.s32.totalorder %s27, %s43
    %p45 = scmp.eq.s32.totalorder %s19, 0
    %p46 = por %p44, %p45
    %s48 = sadd.s32 %s47, 1
    %p51 = scmp.eq.s32.totalorder %s13, 1
    %p52 = scmp.ne.s32.totalorder %s47, %s49
    %p53 = scmp.eq.s32.totalorder %s13, 0
    %p54 = por %p52, %p53
    %p55 = scmp.ne.s32.totalorder %s47, %s49
    %p56 = scmp.eq.s32.totalorder %s18, 1
    %p57 = por %p55, %p56
    %p58 = scmp.ne.s32.totalorder %s49, %s50
    %p59 = scmp.eq.s32.totalorder %s18, 0
    %p60 = por %p58, %p59
    %p61 = scmp.ne.s32.totalorder %s49, %s50
    %p62 = scmp.eq.s32.totalorder %s19, 1
    %p63 = por %p61, %p62
    %p65 = scmp.ne.s32.totalorder %s50, %s64
    %p66 = scmp.eq.s32.totalorder %s19, 0
    %p67 = por %p65, %p66
    %s69 = sadd.s32 %s68, 1
    %p72 = scmp.eq.s32.totalorder %s13, 1
    %p73 = scmp.ne.s32.totalorder %s68, %s70
    %p74 = scmp.eq.s32.totalorder %s13, 0
    %p75 = por %p73, %p74
    %p76 = scmp.ne.s32.totalorder %s68, %s70
    %p77 = scmp.eq.s32.totalorder %s18, 1
    %p78 = por %p76, %p77
    %p79 = scmp.ne.s32.totalorder %s70, %s71
    %p80 = scmp.eq.s32.totalorder %s18, 0
    %p81 = por %p79, %p80
    %p82 = scmp.ne.s32.totalorder %s70, %s71
    %p83 = scmp.eq.s32.totalorder %s19, 1
    %p84 = por %p82, %p83
    %p86 = scmp.ne.s32.totalorder %s71, %s85
    %p87 = scmp.eq.s32.totalorder %s19, 0
    %p88 = por %p86, %p87
    %s90 = sadd.s32 %s89, 1
    %p93 = scmp.eq.s32.totalorder %s13, 1
    %p94 = scmp.ne.s32.totalorder %s89, %s91
    %p95 = scmp.eq.s32.totalorder %s13, 0
    %p96 = por %p94, %p95
    %p97 = scmp.ne.s32.totalorder %s89, %s91
    %p98 = scmp.eq.s32.totalorder %s18, 1
    %p99 = por %p97, %p98
    %p100 = scmp.ne.s32.totalorder %s91, %s92
    %p101 = scmp.eq.s32.totalorder %s18, 0
    %p102 = por %p100, %p101
    %p103 = scmp.ne.s32.totalorder %s91, %s92
    %p104 = scmp.eq.s32.totalorder %s19, 1
    %p105 = por %p103, %p104
    %p107 = scmp.ne.s32.totalorder %s92, %s106
    %p108 = scmp.eq.s32.totalorder %s19, 0
    %p109 = por %p107, %p108
    %s111 = sadd.s32 %s110, 1
    %p114 = scmp.eq.s32.totalorder %s13, 1
    %p115 = scmp.ne.s32.totalorder %s110, %s112
    %p116 = scmp.eq.s32.totalorder %s13, 0
    %p117 = por %p115, %p116
    %p118 = scmp.ne.s32.totalorder %s110, %s112
    %p119 = scmp.eq.s32.totalorder %s18, 1
    %p120 = por %p118, %p119
    %p121 = scmp.ne.s32.totalorder %s112, %s113
    %p122 = scmp.eq.s32.totalorder %s18, 0
    %p123 = por %p121, %p122
    %p124 = scmp.ne.s32.totalorder %s112, %s113
    %p125 = scmp.eq.s32.totalorder %s19, 1
    %p126 = por %p124, %p125
    %p128 = scmp.ne.s32.totalorder %s113, %s127
    %p129 = scmp.eq.s32.totalorder %s19, 0
    %p130 = por %p128, %p129
    %s131 = ssub.s32 %s13, %s20
    %p132 = scmp.eq.s32.totalorder %s131, 0
    %s134 = sadd.s32 %s133, 1
    %s135 = scalar_select %p132, %s133, %s134
    %p138 = pneg %p132
    %p139 = scmp.eq.s32.totalorder %s13, 1
    %p140 = por %p138, %p139
    %p141 = scmp.ne.s32.totalorder %s133, %s136
    %p142 = scmp.eq.s32.totalorder %s13, 0
    %p143 = por %p141, %p142
    %p144 = scmp.ne.s32.totalorder %s133, %s136
    %p145 = scmp.eq.s32.totalorder %s18, 1
    %p146 = por %p144, %p145
    %p147 = scmp.ne.s32.totalorder %s136, %s137
    %p148 = scmp.eq.s32.totalorder %s18, 0
    %p149 = por %p147, %p148
    %p150 = scmp.ne.s32.totalorder %s136, %s137
    %p151 = scmp.eq.s32.totalorder %s19, 1
    %p152 = por %p150, %p151
    %p154 = scmp.ne.s32.totalorder %s137, %s153
    %p155 = scmp.eq.s32.totalorder %s19, 0
    %p156 = por %p154, %p155
    %s157 = ssub.s32 %s13, %s20
    %p158 = scmp.eq.s32.totalorder %s157, 0
    %s160 = sadd.s32 %s159, 1
    %s161 = scalar_select %p158, %s159, %s160
    %p164 = pneg %p158
    %p165 = scmp.eq.s32.totalorder %s13, 1
    %p166 = por %p164, %p165
    %p167 = scmp.ne.s32.totalorder %s159, %s162
    %p168 = scmp.eq.s32.totalorder %s13, 0
    %p169 = por %p167, %p168
    %p170 = scmp.ne.s32.totalorder %s159, %s162
    %p171 = scmp.eq.s32.totalorder %s18, 1
    %p172 = por %p170, %p171
    %p173 = scmp.ne.s32.totalorder %s162, %s163
    %p174 = scmp.eq.s32.totalorder %s18, 0
    %p175 = por %p173, %p174
    %p176 = scmp.ne.s32.totalorder %s162, %s163
    %p177 = scmp.eq.s32.totalorder %s19, 1
    %p178 = por %p176, %p177
    %p180 = scmp.ne.s32.totalorder %s163, %s179
    %p181 = scmp.eq.s32.totalorder %s19, 0
    %p182 = por %p180, %p181
    %p183 = scmp.le.s32.totalorder 1, %s13
    %p184 = scmp.lt.s32.totalorder %s13, 3
    %p185 = pnand %p183, %p184
    %p186 = pneg %p185
    // Predicated region
    $region9: #{block_forward.4} parent=5 // pred_check
      _
    $region10: #{block_forward.4} parent=5 // pred_check_branch
      %188 = sbr.rel (%p185) target = $region12
    $region11: #{block_forward.4} parent=5 // pred_region
      %s189 = ssub.s32 %s13, 1
      // Predicated region
      $region13: #{block_forward.4} parent=11 // pred_check
        %p190 = pneg %p60
      $region14: #{block_forward.4} parent=11 // pred_check_branch
        %192 = sbr.rel (%p190) target = $region16
      $region15: #{block_forward.4} parent=11 // pred_region
        _
      $region16: #{block_forward.4} parent=11 // pred_fallthru
        _
      // Predicated region
      $region17: #{block_forward.4} parent=11 // pred_check
        %p193 = pneg %p81
      $region18: #{block_forward.4} parent=11 // pred_check_branch
        %195 = sbr.rel (%p193) target = $region20
      $region19: #{block_forward.4} parent=11 // pred_region
        _
      $region20: #{block_forward.4} parent=11 // pred_fallthru
        _
      // Predicated region
      $region21: #{block_forward.4} parent=11 // pred_check
        %p196 = pneg %p102
      $region22: #{block_forward.4} parent=11 // pred_check_branch
        %198 = sbr.rel (%p196) target = $region24
      $region23: #{block_forward.4} parent=11 // pred_region
        _
      $region24: #{block_forward.4} parent=11 // pred_fallthru
        _
      // Predicated region
      $region25: #{block_forward.4} parent=11 // pred_check
        %p199 = pneg %p123
      $region26: #{block_forward.4} parent=11 // pred_check_branch
        %201 = sbr.rel (%p199) target = $region28
      $region27: #{block_forward.4} parent=11 // pred_region
        _
      $region28: #{block_forward.4} parent=11 // pred_fallthru
        _
    $region12: #{block_forward.4} parent=5 // pred_fallthru
      _
    %p202 = scmp.lt.s32.totalorder %s13, 2
    // Predicated region
    $region29: #{block_forward.4} parent=5 // pred_check
      %p203 = pneg %p202
    $region30: #{block_forward.4} parent=5 // pred_check_branch
      %205 = sbr.rel (%p203) target = $region32
    $region31: #{block_forward.4} parent=5 // pred_region
      // Predicated region
      $region33: #{block_forward.4} parent=31 // pred_check
        %p206 = pneg %p33
      $region34: #{block_forward.4} parent=31 // pred_check_branch
        %208 = sbr.rel (%p206) target = $region36
      $region35: #{block_forward.4} parent=31 // pred_region
        %p209 = scmp.lt.s32.totalorder %s13, 1
        %s210 = scalar_select %p209, %s13, 1
        %s211 = smul.addr %s210, 32
        %s212 = smul.addr %s211, 8
        %s213 = scalar_lea.vmem %s0, %s212
      $region36: #{block_forward.4} parent=31 // pred_fallthru
        _
    $region32: #{block_forward.4} parent=5 // pred_fallthru
      _
    %p214 = scmp.le.s32.totalorder 1, %s13
    %p215 = scmp.lt.s32.totalorder %s13, 3
    %p216 = pnand %p214, %p215
    %p217 = pneg %p216
    // Predicated region
    $region37: #{block_forward.4} parent=5 // pred_check
      _
    $region38: #{block_forward.4} parent=5 // pred_check_branch
      %219 = sbr.rel (%p216) target = $region40
    $region39: #{block_forward.4} parent=5 // pred_region
      %s220 = ssub.s32 %s13, 1
      %p221 = scmp.lt.s32.totalorder %s18, 1
      %s222 = scalar_select %p221, %s18, 1
      %s223 = smul.addr %s222, 32
      %s224 = smul.addr %s223, 8
      %s225 = scalar_lea.vmem %s0, %s224
      %p226 = pneg %p39
      %p227 = pneg %p36
      %p228 = pneg %p60
      %p229 = pneg %p57
      %p230 = pneg %p81
      %p231 = pneg %p78
      %p232 = pneg %p102
      %p233 = pneg %p99
      %p234 = pneg %p123
      %p235 = pneg %p120
      %p236 = pneg %p149
      %p237 = pneg %p146
      %p238 = scmp.lt.s32.totalorder %s18, 1
      %s239 = scalar_select %p238, %s18, 1
      %s240 = smul.addr %s239, 32
      %s241 = smul.addr %s240, 8
      %s242 = scalar_lea.vmem %s5, %s241
      %p243 = pneg %p175
      %p244 = pneg %p172
      %p245 = scmp.lt.s32.totalorder %s18, 1
      %s246 = scalar_select %p245, %s18, 1
      %s247 = smul.addr %s246, 2
      %s248 = scalar_lea.vmem %s6, %s247
      %p249 = scmp.lt.s32.totalorder %s18, 1
      %s250 = scalar_select %p249, %s18, 1
      %s251 = smul.addr %s250, 32
      %s252 = smul.addr %s251, 8
      %s253 = scalar_lea.vmem %s0, %s252
      %p254 = scmp.lt.s32.totalorder %s18, 1
      %s255 = scalar_select %p254, %s18, 1
      %s256 = smul.addr %s255, 32
      %s257 = smul.addr %s256, 8
      %s258 = scalar_lea.vmem %s5, %s257
      %p259 = scmp.lt.s32.totalorder %s18, 1
      %s260 = scalar_select %p259, %s18, 1
      %s261 = smul.addr %s260, 2
      %s262 = scalar_lea.vmem %s6, %s261
      %v264 = vld [vmem:[%s253] sm:$0xff]
      %v265 = vld [vmem:[%s253 + $0x8] sm:$0xff]
      %v266 = vld [vmem:[%s253 + $0x10] sm:$0xff]
      %v267 = vld [vmem:[%s253 + $0x18] sm:$0xff]
      %v268 = vld [vmem:[%s253 + $0x20] sm:$0xff]
      %v269 = vld [vmem:[%s253 + $0x28] sm:$0xff]
      %v270 = vld [vmem:[%s253 + $0x30] sm:$0xff]
      %v271 = vld [vmem:[%s253 + $0x38] sm:$0xff]
      %v272 = vld [vmem:[%s253 + $0x40] sm:$0xff]
      %v273 = vld [vmem:[%s253 + $0x48] sm:$0xff]
      %v274 = vld [vmem:[%s253 + $0x50] sm:$0xff]
      %v275 = vld [vmem:[%s253 + $0x58] sm:$0xff]
      %v276 = vld [vmem:[%s253 + $0x60] sm:$0xff]
      %v277 = vld [vmem:[%s253 + $0x68] sm:$0xff]
      %v278 = vld [vmem:[%s253 + $0x70] sm:$0xff]
      %v279 = vld [vmem:[%s253 + $0x78] sm:$0xff]
      %v280 = vld [vmem:[%s253 + $0x80] sm:$0xff]
      %v281 = vld [vmem:[%s253 + $0x88] sm:$0xff]
      %v282 = vld [vmem:[%s253 + $0x90] sm:$0xff]
      %v283 = vld [vmem:[%s253 + $0x98] sm:$0xff]
      %v284 = vld [vmem:[%s253 + $0xa0] sm:$0xff]
      %v285 = vld [vmem:[%s253 + $0xa8] sm:$0xff]
      %v286 = vld [vmem:[%s253 + $0xb0] sm:$0xff]
      %v287 = vld [vmem:[%s253 + $0xb8] sm:$0xff]
      %v288 = vld [vmem:[%s253 + $0xc0] sm:$0xff]
      %v289 = vld [vmem:[%s253 + $0xc8] sm:$0xff]
      %v290 = vld [vmem:[%s253 + $0xd0] sm:$0xff]
      %v291 = vld [vmem:[%s253 + $0xd8] sm:$0xff]
      %v292 = vld [vmem:[%s253 + $0xe0] sm:$0xff]
      %v293 = vld [vmem:[%s253 + $0xe8] sm:$0xff]
      %v294 = vld [vmem:[%s253 + $0xf0] sm:$0xff]
      %v295 = vld [vmem:[%s253 + $0xf8] sm:$0xff]
      %v296 = vld [vmem:[%s1] sm:$0x1]
      %v298 = vlaneseq
      %v299 = vshrl.u32 %v298, 7
      %v300 = vsub.s32 0, %v299
      %v301 = vrot.slane %v296, %v300
      %v303 = vmul.f32 %v264, %v301
      %v304 = vmul.f32 %v265, %v301
      %v305 = vmul.f32 %v266, %v301
      %v306 = vmul.f32 %v267, %v301
      %v307 = vmul.f32 %v268, %v301
      %v308 = vmul.f32 %v269, %v301
      %v309 = vmul.f32 %v270, %v301
      %v310 = vmul.f32 %v271, %v301
      %v311 = vmul.f32 %v272, %v301
      %v312 = vmul.f32 %v273, %v301
      %v313 = vmul.f32 %v274, %v301
      %v314 = vmul.f32 %v275, %v301
      %v315 = vmul.f32 %v276, %v301
      %v316 = vmul.f32 %v277, %v301
      %v317 = vmul.f32 %v278, %v301
      %v318 = vmul.f32 %v279, %v301
      %v319 = vmul.f32 %v280, %v301
      %v320 = vmul.f32 %v281, %v301
      %v321 = vmul.f32 %v282, %v301
      %v322 = vmul.f32 %v283, %v301
      %v323 = vmul.f32 %v284, %v301
      %v324 = vmul.f32 %v285, %v301
      %v325 = vmul.f32 %v286, %v301
      %v326 = vmul.f32 %v287, %v301
      %v327 = vmul.f32 %v288, %v301
      %v328 = vmul.f32 %v289, %v301
      %v329 = vmul.f32 %v290, %v301
      %v330 = vmul.f32 %v291, %v301
      %v331 = vmul.f32 %v292, %v301
      %v332 = vmul.f32 %v293, %v301
      %v333 = vmul.f32 %v294, %v301
      %v334 = vmul.f32 %v295, %v301
      %v335 = vld [vmem:[%s2] sm:$0x1]
      %v337 = vlaneseq
      %v338 = vshrl.u32 %v337, 7
      %v339 = vsub.s32 0, %v338
      %v340 = vrot.slane %v335, %v339
      %v342 = vadd.f32 %v303, %v340
      %v343 = vadd.f32 %v304, %v340
      %v344 = vadd.f32 %v305, %v340
      %v345 = vadd.f32 %v306, %v340
      %v346 = vadd.f32 %v307, %v340
      %v347 = vadd.f32 %v308, %v340
      %v348 = vadd.f32 %v309, %v340
      %v349 = vadd.f32 %v310, %v340
      %v350 = vadd.f32 %v311, %v340
      %v351 = vadd.f32 %v312, %v340
      %v352 = vadd.f32 %v313, %v340
      %v353 = vadd.f32 %v314, %v340
      %v354 = vadd.f32 %v315, %v340
      %v355 = vadd.f32 %v316, %v340
      %v356 = vadd.f32 %v317, %v340
      %v357 = vadd.f32 %v318, %v340
      %v358 = vadd.f32 %v319, %v340
      %v359 = vadd.f32 %v320, %v340
      %v360 = vadd.f32 %v321, %v340
      %v361 = vadd.f32 %v322, %v340
      %v362 = vadd.f32 %v323, %v340
      %v363 = vadd.f32 %v324, %v340
      %v364 = vadd.f32 %v325, %v340
      %v365 = vadd.f32 %v326, %v340
      %v366 = vadd.f32 %v327, %v340
      %v367 = vadd.f32 %v328, %v340
      %v368 = vadd.f32 %v329, %v340
      %v369 = vadd.f32 %v330, %v340
      %v370 = vadd.f32 %v331, %v340
      %v371 = vadd.f32 %v332, %v340
      %v372 = vadd.f32 %v333, %v340
      %v373 = vadd.f32 %v334, %v340
      %vm374 = vcmask 64512
      %375 = vst.msk [vmem:[#allocation2] sm:$0xff] %vm374, 0.0
      %376 = vst.msk [vmem:[#allocation2 + $0x8] sm:$0xff] %vm374, 0.0
      %vm377 = vcmask 58368
      %378 = vst.msk [vmem:[#allocation2 + $0x10] sm:$0x3] %vm377, 0.0
      %s379 = scalar_lea.vmem [#allocation2], 408
      %380 = vst.msk [vmem:[%s379] sm:$0xff] %vm374, 0.0
      %381 = vst.msk [vmem:[%s379 + $0x8] sm:$0xff] %vm374, 0.0
      %382 = vst.msk [vmem:[%s379 + $0x10] sm:$0x3] %vm377, 0.0
      %vm383 = vcmask 57344
      %384 = vst.msk [vmem:[#allocation2] sm:$0x1] %vm383, 0.0
      %385 = vst.msk [vmem:[#allocation2 + $0x18] sm:$0x1] %vm383, 0.0
      %386 = vst.msk [vmem:[#allocation2 + $0x30] sm:$0x1] %vm383, 0.0
      %387 = vst.msk [vmem:[#allocation2 + $0x48] sm:$0x1] %vm383, 0.0
      %388 = vst.msk [vmem:[#allocation2 + $0x60] sm:$0x1] %vm383, 0.0
      %389 = vst.msk [vmem:[#allocation2 + $0x78] sm:$0x1] %vm383, 0.0
      %390 = vst.msk [vmem:[#allocation2 + $0x90] sm:$0x1] %vm383, 0.0
      %391 = vst.msk [vmem:[#allocation2 + $0xa8] sm:$0x1] %vm383, 0.0
      %392 = vst.msk [vmem:[#allocation2 + $0xc0] sm:$0x1] %vm383, 0.0
      %393 = vst.msk [vmem:[#allocation2 + $0xd8] sm:$0x1] %vm383, 0.0
      %394 = vst.msk [vmem:[#allocation2 + $0xf0] sm:$0x1] %vm383, 0.0
      %395 = vst.msk [vmem:[#allocation2 + $0x108] sm:$0x1] %vm383, 0.0
      %396 = vst.msk [vmem:[#allocation2 + $0x120] sm:$0x1] %vm383, 0.0
      %397 = vst.msk [vmem:[#allocation2 + $0x138] sm:$0x1] %vm383, 0.0
      %398 = vst.msk [vmem:[#allocation2 + $0x150] sm:$0x1] %vm383, 0.0
      %399 = vst.msk [vmem:[#allocation2 + $0x168] sm:$0x1] %vm383, 0.0
      %400 = vst.msk [vmem:[#allocation2 + $0x180] sm:$0x1] %vm383, 0.0
      %401 = vst.msk [vmem:[#allocation2 + $0x198] sm:$0x1] %vm383, 0.0
      %402 = vst.msk [vmem:[#allocation2 + $0x11] sm:$0x1] %vm383, 0.0
      %403 = vst.msk [vmem:[#allocation2 + $0x29] sm:$0x1] %vm383, 0.0
      %404 = vst.msk [vmem:[#allocation2 + $0x41] sm:$0x1] %vm383, 0.0
      %405 = vst.msk [vmem:[#allocation2 + $0x59] sm:$0x1] %vm383, 0.0
      %406 = vst.msk [vmem:[#allocation2 + $0x71] sm:$0x1] %vm383, 0.0
      %407 = vst.msk [vmem:[#allocation2 + $0x89] sm:$0x1] %vm383, 0.0
      %408 = vst.msk [vmem:[#allocation2 + $0xa1] sm:$0x1] %vm383, 0.0
      %409 = vst.msk [vmem:[#allocation2 + $0xb9] sm:$0x1] %vm383, 0.0
      %410 = vst.msk [vmem:[#allocation2 + $0xd1] sm:$0x1] %vm383, 0.0
      %411 = vst.msk [vmem:[#allocation2 + $0xe9] sm:$0x1] %vm383, 0.0
      %412 = vst.msk [vmem:[#allocation2 + $0x101] sm:$0x1] %vm383, 0.0
      %413 = vst.msk [vmem:[#allocation2 + $0x119] sm:$0x1] %vm383, 0.0
      %414 = vst.msk [vmem:[#allocation2 + $0x131] sm:$0x1] %vm383, 0.0
      %415 = vst.msk [vmem:[#allocation2 + $0x149] sm:$0x1] %vm383, 0.0
      %416 = vst.msk [vmem:[#allocation2 + $0x161] sm:$0x1] %vm383, 0.0
      %417 = vst.msk [vmem:[#allocation2 + $0x179] sm:$0x1] %vm383, 0.0
      %418 = vst.msk [vmem:[#allocation2 + $0x191] sm:$0x1] %vm383, 0.0
      %419 = vst.msk [vmem:[#allocation2 + $0x1a9] sm:$0x1] %vm383, 0.0
      %s420 = scalar_lea.vmem [#allocation2], 24
      %421 = vst.msk [vmem:[%s420 + $0x1] sm:$0xff] %vm374, %v342
      %422 = vst.msk [vmem:[%s420 + $0x9] sm:$0xff] %vm374, %v343
      %423 = vst.msk [vmem:[%s420 + $0x19] sm:$0xff] %vm374, %v344
      %424 = vst.msk [vmem:[%s420 + $0x21] sm:$0xff] %vm374, %v345
      %425 = vst.msk [vmem:[%s420 + $0x31] sm:$0xff] %vm374, %v346
      %426 = vst.msk [vmem:[%s420 + $0x39] sm:$0xff] %vm374, %v347
      %427 = vst.msk [vmem:[%s420 + $0x49] sm:$0xff] %vm374, %v348
      %428 = vst.msk [vmem:[%s420 + $0x51] sm:$0xff] %vm374, %v349
      %429 = vst.msk [vmem:[%s420 + $0x61] sm:$0xff] %vm374, %v350
      %430 = vst.msk [vmem:[%s420 + $0x69] sm:$0xff] %vm374, %v351
      %431 = vst.msk [vmem:[%s420 + $0x79] sm:$0xff] %vm374, %v352
      %432 = vst.msk [vmem:[%s420 + $0x81] sm:$0xff] %vm374, %v353
      %433 = vst.msk [vmem:[%s420 + $0x91] sm:$0xff] %vm374, %v354
      %434 = vst.msk [vmem:[%s420 + $0x99] sm:$0xff] %vm374, %v355
      %435 = vst.msk [vmem:[%s420 + $0xa9] sm:$0xff] %vm374, %v356
      %436 = vst.msk [vmem:[%s420 + $0xb1] sm:$0xff] %vm374, %v357
      %437 = vst.msk [vmem:[%s420 + $0xc1] sm:$0xff] %vm374, %v358
      %438 = vst.msk [vmem:[%s420 + $0xc9] sm:$0xff] %vm374, %v359
      %439 = vst.msk [vmem:[%s420 + $0xd9] sm:$0xff] %vm374, %v360
      %440 = vst.msk [vmem:[%s420 + $0xe1] sm:$0xff] %vm374, %v361
      %441 = vst.msk [vmem:[%s420 + $0xf1] sm:$0xff] %vm374, %v362
      %442 = vst.msk [vmem:[%s420 + $0xf9] sm:$0xff] %vm374, %v363
      %443 = vst.msk [vmem:[%s420 + $0x109] sm:$0xff] %vm374, %v364
      %444 = vst.msk [vmem:[%s420 + $0x111] sm:$0xff] %vm374, %v365
      %445 = vst.msk [vmem:[%s420 + $0x121] sm:$0xff] %vm374, %v366
      %446 = vst.msk [vmem:[%s420 + $0x129] sm:$0xff] %vm374, %v367
      %447 = vst.msk [vmem:[%s420 + $0x139] sm:$0xff] %vm374, %v368
      %448 = vst.msk [vmem:[%s420 + $0x141] sm:$0xff] %vm374, %v369
      %449 = vst.msk [vmem:[%s420 + $0x151] sm:$0xff] %vm374, %v370
      %450 = vst.msk [vmem:[%s420 + $0x159] sm:$0xff] %vm374, %v371
      %451 = vst.msk [vmem:[%s420 + $0x169] sm:$0xff] %vm374, %v372
      %452 = vst.msk [vmem:[%s420 + $0x171] sm:$0xff] %vm374, %v373
      %v453 = vld [vmem:[#allocation2] sm:$0xff]
      %v454 = vld [vmem:[#allocation2 + $0x8] sm:$0xff]
      %v455 = vld [vmem:[#allocation2 + $0x18] sm:$0xff]
      %v456 = vld [vmem:[#allocation2 + $0x20] sm:$0xff]
      %v457 = vld [vmem:[#allocation2 + $0x30] sm:$0xff]
      %v458 = vld [vmem:[#allocation2 + $0x38] sm:$0xff]
      %v459 = vld [vmem:[#allocation2 + $0x48] sm:$0xff]
      %v460 = vld [vmem:[#allocation2 + $0x50] sm:$0xff]
      %v461 = vld [vmem:[#allocation2 + $0x60] sm:$0xff]
      %v462 = vld [vmem:[#allocation2 + $0x68] sm:$0xff]
      %v463 = vld [vmem:[#allocation2 + $0x78] sm:$0xff]
      %v464 = vld [vmem:[#allocation2 + $0x80] sm:$0xff]
      %v465 = vld [vmem:[#allocation2 + $0x90] sm:$0xff]
      %v466 = vld [vmem:[#allocation2 + $0x98] sm:$0xff]
      %v467 = vld [vmem:[#allocation2 + $0xa8] sm:$0xff]
      %v468 = vld [vmem:[#allocation2 + $0xb0] sm:$0xff]
      %v469 = vld [vmem:[#allocation2 + $0xc0] sm:$0xff]
      %v470 = vld [vmem:[#allocation2 + $0xc8] sm:$0xff]
      %v471 = vld [vmem:[#allocation2 + $0xd8] sm:$0xff]
      %v472 = vld [vmem:[#allocation2 + $0xe0] sm:$0xff]
      %v473 = vld [vmem:[#allocation2 + $0xf0] sm:$0xff]
      %v474 = vld [vmem:[#allocation2 + $0xf8] sm:$0xff]
      %v475 = vld [vmem:[#allocation2 + $0x108] sm:$0xff]
      %v476 = vld [vmem:[#allocation2 + $0x110] sm:$0xff]
      %v477 = vld [vmem:[#allocation2 + $0x120] sm:$0xff]
      %v478 = vld [vmem:[#allocation2 + $0x128] sm:$0xff]
      %v479 = vld [vmem:[#allocation2 + $0x138] sm:$0xff]
      %v480 = vld [vmem:[#allocation2 + $0x140] sm:$0xff]
      %v481 = vld [vmem:[#allocation2 + $0x150] sm:$0xff]
      %v482 = vld [vmem:[#allocation2 + $0x158] sm:$0xff]
      %v483 = vld [vmem:[#allocation2 + $0x168] sm:$0xff]
      %v484 = vld [vmem:[#allocation2 + $0x170] sm:$0xff]
      %v485 = vld [vmem:[#allocation2 + $0x1] sm:$0xff]
      %v486 = vld [vmem:[#allocation2 + $0x9] sm:$0xff]
      %v487 = vld [vmem:[#allocation2 + $0x19] sm:$0xff]
      %v488 = vld [vmem:[#allocation2 + $0x21] sm:$0xff]
      %v489 = vld [vmem:[#allocation2 + $0x31] sm:$0xff]
      %v490 = vld [vmem:[#allocation2 + $0x39] sm:$0xff]
      %v491 = vld [vmem:[#allocation2 + $0x49] sm:$0xff]
      %v492 = vld [vmem:[#allocation2 + $0x51] sm:$0xff]
      %v493 = vld [vmem:[#allocation2 + $0x61] sm:$0xff]
      %v494 = vld [vmem:[#allocation2 + $0x69] sm:$0xff]
      %v495 = vld [vmem:[#allocation2 + $0x79] sm:$0xff]
      %v496 = vld [vmem:[#allocation2 + $0x81] sm:$0xff]
      %v497 = vld [vmem:[#allocation2 + $0x91] sm:$0xff]
      %v498 = vld [vmem:[#allocation2 + $0x99] sm:$0xff]
      %v499 = vld [vmem:[#allocation2 + $0xa9] sm:$0xff]
      %v500 = vld [vmem:[#allocation2 + $0xb1] sm:$0xff]
      %v501 = vld [vmem:[#allocation2 + $0xc1] sm:$0xff]
      %v502 = vld [vmem:[#allocation2 + $0xc9] sm:$0xff]
      %v503 = vld [vmem:[#allocation2 + $0xd9] sm:$0xff]
      %v504 = vld [vmem:[#allocation2 + $0xe1] sm:$0xff]
      %v505 = vld [vmem:[#allocation2 + $0xf1] sm:$0xff]
      %v506 = vld [vmem:[#allocation2 + $0xf9] sm:$0xff]
      %v507 = vld [vmem:[#allocation2 + $0x109] sm:$0xff]
      %v508 = vld [vmem:[#allocation2 + $0x111] sm:$0xff]
      %v509 = vld [vmem:[#allocation2 + $0x121] sm:$0xff]
      %v510 = vld [vmem:[#allocation2 + $0x129] sm:$0xff]
      %v511 = vld [vmem:[#allocation2 + $0x139] sm:$0xff]
      %v512 = vld [vmem:[#allocation2 + $0x141] sm:$0xff]
      %v513 = vld [vmem:[#allocation2 + $0x151] sm:$0xff]
      %v514 = vld [vmem:[#allocation2 + $0x159] sm:$0xff]
      %v515 = vld [vmem:[#allocation2 + $0x169] sm:$0xff]
      %v516 = vld [vmem:[#allocation2 + $0x171] sm:$0xff]
      %v517 = vld [vmem:[#allocation2 + $0x2] sm:$0xff]
      %v518 = vld [vmem:[#allocation2 + $0xa] sm:$0xff]
      %v519 = vld [vmem:[#allocation2 + $0x1a] sm:$0xff]
      %v520 = vld [vmem:[#allocation2 + $0x22] sm:$0xff]
      %v521 = vld [vmem:[#allocation2 + $0x32] sm:$0xff]
      %v522 = vld [vmem:[#allocation2 + $0x3a] sm:$0xff]
      %v523 = vld [vmem:[#allocation2 + $0x4a] sm:$0xff]
      %v524 = vld [vmem:[#allocation2 + $0x52] sm:$0xff]
      %v525 = vld [vmem:[#allocation2 + $0x62] sm:$0xff]
      %v526 = vld [vmem:[#allocation2 + $0x6a] sm:$0xff]
      %v527 = vld [vmem:[#allocation2 + $0x7a] sm:$0xff]
      %v528 = vld [vmem:[#allocation2 + $0x82] sm:$0xff]
      %v529 = vld [vmem:[#allocation2 + $0x92] sm:$0xff]
      %v530 = vld [vmem:[#allocation2 + $0x9a] sm:$0xff]
      %v531 = vld [vmem:[#allocation2 + $0xaa] sm:$0xff]
      %v532 = vld [vmem:[#allocation2 + $0xb2] sm:$0xff]
      %v533 = vld [vmem:[#allocation2 + $0xc2] sm:$0xff]
      %v534 = vld [vmem:[#allocation2 + $0xca] sm:$0xff]
      %v535 = vld [vmem:[#allocation2 + $0xda] sm:$0xff]
      %v536 = vld [vmem:[#allocation2 + $0xe2] sm:$0xff]
      %v537 = vld [vmem:[#allocation2 + $0xf2] sm:$0xff]
      %v538 = vld [vmem:[#allocation2 + $0xfa] sm:$0xff]
      %v539 = vld [vmem:[#allocation2 + $0x10a] sm:$0xff]
      %v540 = vld [vmem:[#allocation2 + $0x112] sm:$0xff]
      %v541 = vld [vmem:[#allocation2 + $0x122] sm:$0xff]
      %v542 = vld [vmem:[#allocation2 + $0x12a] sm:$0xff]
      %v543 = vld [vmem:[#allocation2 + $0x13a] sm:$0xff]
      %v544 = vld [vmem:[#allocation2 + $0x142] sm:$0xff]
      %v545 = vld [vmem:[#allocation2 + $0x152] sm:$0xff]
      %v546 = vld [vmem:[#allocation2 + $0x15a] sm:$0xff]
      %v547 = vld [vmem:[#allocation2 + $0x16a] sm:$0xff]
      %v548 = vld [vmem:[#allocation2 + $0x172] sm:$0xff]
      %v549 = vld [vmem:[%s420] sm:$0xff]
      %v550 = vld [vmem:[%s420 + $0x8] sm:$0xff]
      %v551 = vld [vmem:[%s420 + $0x18] sm:$0xff]
      %v552 = vld [vmem:[%s420 + $0x20] sm:$0xff]
      %v553 = vld [vmem:[%s420 + $0x30] sm:$0xff]
      %v554 = vld [vmem:[%s420 + $0x38] sm:$0xff]
      %v555 = vld [vmem:[%s420 + $0x48] sm:$0xff]
      %v556 = vld [vmem:[%s420 + $0x50] sm:$0xff]
      %v557 = vld [vmem:[%s420 + $0x60] sm:$0xff]
      %v558 = vld [vmem:[%s420 + $0x68] sm:$0xff]
      %v559 = vld [vmem:[%s420 + $0x78] sm:$0xff]
      %v560 = vld [vmem:[%s420 + $0x80] sm:$0xff]
      %v561 = vld [vmem:[%s420 + $0x90] sm:$0xff]
      %v562 = vld [vmem:[%s420 + $0x98] sm:$0xff]
      %v563 = vld [vmem:[%s420 + $0xa8] sm:$0xff]
      %v564 = vld [vmem:[%s420 + $0xb0] sm:$0xff]
      %v565 = vld [vmem:[%s420 + $0xc0] sm:$0xff]
      %v566 = vld [vmem:[%s420 + $0xc8] sm:$0xff]
      %v567 = vld [vmem:[%s420 + $0xd8] sm:$0xff]
      %v568 = vld [vmem:[%s420 + $0xe0] sm:$0xff]
      %v569 = vld [vmem:[%s420 + $0xf0] sm:$0xff]
      %v570 = vld [vmem:[%s420 + $0xf8] sm:$0xff]
      %v571 = vld [vmem:[%s420 + $0x108] sm:$0xff]
      %v572 = vld [vmem:[%s420 + $0x110] sm:$0xff]
      %v573 = vld [vmem:[%s420 + $0x120] sm:$0xff]
      %v574 = vld [vmem:[%s420 + $0x128] sm:$0xff]
      %v575 = vld [vmem:[%s420 + $0x138] sm:$0xff]
      %v576 = vld [vmem:[%s420 + $0x140] sm:$0xff]
      %v577 = vld [vmem:[%s420 + $0x150] sm:$0xff]
      %v578 = vld [vmem:[%s420 + $0x158] sm:$0xff]
      %v579 = vld [vmem:[%s420 + $0x168] sm:$0xff]
      %v580 = vld [vmem:[%s420 + $0x170] sm:$0xff]
      %v581 = vld [vmem:[%s420 + $0x1] sm:$0xff]
      %v582 = vld [vmem:[%s420 + $0x9] sm:$0xff]
      %v583 = vld [vmem:[%s420 + $0x19] sm:$0xff]
      %v584 = vld [vmem:[%s420 + $0x21] sm:$0xff]
      %v585 = vld [vmem:[%s420 + $0x31] sm:$0xff]
      %v586 = vld [vmem:[%s420 + $0x39] sm:$0xff]
      %v587 = vld [vmem:[%s420 + $0x49] sm:$0xff]
      %v588 = vld [vmem:[%s420 + $0x51] sm:$0xff]
      %v589 = vld [vmem:[%s420 + $0x61] sm:$0xff]
      %v590 = vld [vmem:[%s420 + $0x69] sm:$0xff]
      %v591 = vld [vmem:[%s420 + $0x79] sm:$0xff]
      %v592 = vld [vmem:[%s420 + $0x81] sm:$0xff]
      %v593 = vld [vmem:[%s420 + $0x91] sm:$0xff]
      %v594 = vld [vmem:[%s420 + $0x99] sm:$0xff]
      %v595 = vld [vmem:[%s420 + $0xa9] sm:$0xff]
      %v596 = vld [vmem:[%s420 + $0xb1] sm:$0xff]
      %v597 = vld [vmem:[%s420 + $0xc1] sm:$0xff]
      %v598 = vld [vmem:[%s420 + $0xc9] sm:$0xff]
      %v599 = vld [vmem:[%s420 + $0xd9] sm:$0xff]
      %v600 = vld [vmem:[%s420 + $0xe1] sm:$0xff]
      %v601 = vld [vmem:[%s420 + $0xf1] sm:$0xff]
      %v602 = vld [vmem:[%s420 + $0xf9] sm:$0xff]
      %v603 = vld [vmem:[%s420 + $0x109] sm:$0xff]
      %v604 = vld [vmem:[%s420 + $0x111] sm:$0xff]
      %v605 = vld [vmem:[%s420 + $0x121] sm:$0xff]
      %v606 = vld [vmem:[%s420 + $0x129] sm:$0xff]
      %v607 = vld [vmem:[%s420 + $0x139] sm:$0xff]
      %v608 = vld [vmem:[%s420 + $0x141] sm:$0xff]
      %v609 = vld [vmem:[%s420 + $0x151] sm:$0xff]
      %v610 = vld [vmem:[%s420 + $0x159] sm:$0xff]
      %v611 = vld [vmem:[%s420 + $0x169] sm:$0xff]
      %v612 = vld [vmem:[%s420 + $0x171] sm:$0xff]
      %v613 = vld [vmem:[%s420 + $0x2] sm:$0xff]
      %v614 = vld [vmem:[%s420 + $0xa] sm:$0xff]
      %v615 = vld [vmem:[%s420 + $0x1a] sm:$0xff]
      %v616 = vld [vmem:[%s420 + $0x22] sm:$0xff]
      %v617 = vld [vmem:[%s420 + $0x32] sm:$0xff]
      %v618 = vld [vmem:[%s420 + $0x3a] sm:$0xff]
      %v619 = vld [vmem:[%s420 + $0x4a] sm:$0xff]
      %v620 = vld [vmem:[%s420 + $0x52] sm:$0xff]
      %v621 = vld [vmem:[%s420 + $0x62] sm:$0xff]
      %v622 = vld [vmem:[%s420 + $0x6a] sm:$0xff]
      %v623 = vld [vmem:[%s420 + $0x7a] sm:$0xff]
      %v624 = vld [vmem:[%s420 + $0x82] sm:$0xff]
      %v625 = vld [vmem:[%s420 + $0x92] sm:$0xff]
      %v626 = vld [vmem:[%s420 + $0x9a] sm:$0xff]
      %v627 = vld [vmem:[%s420 + $0xaa] sm:$0xff]
      %v628 = vld [vmem:[%s420 + $0xb2] sm:$0xff]
      %v629 = vld [vmem:[%s420 + $0xc2] sm:$0xff]
      %v630 = vld [vmem:[%s420 + $0xca] sm:$0xff]
      %v631 = vld [vmem:[%s420 + $0xda] sm:$0xff]
      %v632 = vld [vmem:[%s420 + $0xe2] sm:$0xff]
      %v633 = vld [vmem:[%s420 + $0xf2] sm:$0xff]
      %v634 = vld [vmem:[%s420 + $0xfa] sm:$0xff]
      %v635 = vld [vmem:[%s420 + $0x10a] sm:$0xff]
      %v636 = vld [vmem:[%s420 + $0x112] sm:$0xff]
      %v637 = vld [vmem:[%s420 + $0x122] sm:$0xff]
      %v638 = vld [vmem:[%s420 + $0x12a] sm:$0xff]
      %v639 = vld [vmem:[%s420 + $0x13a] sm:$0xff]
      %v640 = vld [vmem:[%s420 + $0x142] sm:$0xff]
      %v641 = vld [vmem:[%s420 + $0x152] sm:$0xff]
      %v642 = vld [vmem:[%s420 + $0x15a] sm:$0xff]
      %v643 = vld [vmem:[%s420 + $0x16a] sm:$0xff]
      %v644 = vld [vmem:[%s420 + $0x172] sm:$0xff]
      %s645 = scalar_lea.vmem [#allocation2], 48
      %v646 = vld [vmem:[%s645] sm:$0xff]
      %v647 = vld [vmem:[%s645 + $0x8] sm:$0xff]
      %v648 = vld [vmem:[%s645 + $0x18] sm:$0xff]
      %v649 = vld [vmem:[%s645 + $0x20] sm:$0xff]
      %v650 = vld [vmem:[%s645 + $0x30] sm:$0xff]
      %v651 = vld [vmem:[%s645 + $0x38] sm:$0xff]
      %v652 = vld [vmem:[%s645 + $0x48] sm:$0xff]
      %v653 = vld [vmem:[%s645 + $0x50] sm:$0xff]
      %v654 = vld [vmem:[%s645 + $0x60] sm:$0xff]
      %v655 = vld [vmem:[%s645 + $0x68] sm:$0xff]
      %v656 = vld [vmem:[%s645 + $0x78] sm:$0xff]
      %v657 = vld [vmem:[%s645 + $0x80] sm:$0xff]
      %v658 = vld [vmem:[%s645 + $0x90] sm:$0xff]
      %v659 = vld [vmem:[%s645 + $0x98] sm:$0xff]
      %v660 = vld [vmem:[%s645 + $0xa8] sm:$0xff]
      %v661 = vld [vmem:[%s645 + $0xb0] sm:$0xff]
      %v662 = vld [vmem:[%s645 + $0xc0] sm:$0xff]
      %v663 = vld [vmem:[%s645 + $0xc8] sm:$0xff]
      %v664 = vld [vmem:[%s645 + $0xd8] sm:$0xff]
      %v665 = vld [vmem:[%s645 + $0xe0] sm:$0xff]
      %v666 = vld [vmem:[%s645 + $0xf0] sm:$0xff]
      %v667 = vld [vmem:[%s645 + $0xf8] sm:$0xff]
      %v668 = vld [vmem:[%s645 + $0x108] sm:$0xff]
      %v669 = vld [vmem:[%s645 + $0x110] sm:$0xff]
      %v670 = vld [vmem:[%s645 + $0x120] sm:$0xff]
      %v671 = vld [vmem:[%s645 + $0x128] sm:$0xff]
      %v672 = vld [vmem:[%s645 + $0x138] sm:$0xff]
      %v673 = vld [vmem:[%s645 + $0x140] sm:$0xff]
      %v674 = vld [vmem:[%s645 + $0x150] sm:$0xff]
      %v675 = vld [vmem:[%s645 + $0x158] sm:$0xff]
      %v676 = vld [vmem:[%s645 + $0x168] sm:$0xff]
      %v677 = vld [vmem:[%s645 + $0x170] sm:$0xff]
      %v678 = vld [vmem:[%s645 + $0x1] sm:$0xff]
      %v679 = vld [vmem:[%s645 + $0x9] sm:$0xff]
      %v680 = vld [vmem:[%s645 + $0x19] sm:$0xff]
      %v681 = vld [vmem:[%s645 + $0x21] sm:$0xff]
      %v682 = vld [vmem:[%s645 + $0x31] sm:$0xff]
      %v683 = vld [vmem:[%s645 + $0x39] sm:$0xff]
      %v684 = vld [vmem:[%s645 + $0x49] sm:$0xff]
      %v685 = vld [vmem:[%s645 + $0x51] sm:$0xff]
      %v686 = vld [vmem:[%s645 + $0x61] sm:$0xff]
      %v687 = vld [vmem:[%s645 + $0x69] sm:$0xff]
      %v688 = vld [vmem:[%s645 + $0x79] sm:$0xff]
      %v689 = vld [vmem:[%s645 + $0x81] sm:$0xff]
      %v690 = vld [vmem:[%s645 + $0x91] sm:$0xff]
      %v691 = vld [vmem:[%s645 + $0x99] sm:$0xff]
      %v692 = vld [vmem:[%s645 + $0xa9] sm:$0xff]
      %v693 = vld [vmem:[%s645 + $0xb1] sm:$0xff]
      %v694 = vld [vmem:[%s645 + $0xc1] sm:$0xff]
      %v695 = vld [vmem:[%s645 + $0xc9] sm:$0xff]
      %v696 = vld [vmem:[%s645 + $0xd9] sm:$0xff]
      %v697 = vld [vmem:[%s645 + $0xe1] sm:$0xff]
      %v698 = vld [vmem:[%s645 + $0xf1] sm:$0xff]
      %v699 = vld [vmem:[%s645 + $0xf9] sm:$0xff]
      %v700 = vld [vmem:[%s645 + $0x109] sm:$0xff]
      %v701 = vld [vmem:[%s645 + $0x111] sm:$0xff]
      %v702 = vld [vmem:[%s645 + $0x121] sm:$0xff]
      %v703 = vld [vmem:[%s645 + $0x129] sm:$0xff]
      %v704 = vld [vmem:[%s645 + $0x139] sm:$0xff]
      %v705 = vld [vmem:[%s645 + $0x141] sm:$0xff]
      %v706 = vld [vmem:[%s645 + $0x151] sm:$0xff]
      %v707 = vld [vmem:[%s645 + $0x159] sm:$0xff]
      %v708 = vld [vmem:[%s645 + $0x169] sm:$0xff]
      %v709 = vld [vmem:[%s645 + $0x171] sm:$0xff]
      %v710 = vld [vmem:[%s645 + $0x2] sm:$0xff]
      %v711 = vld [vmem:[%s645 + $0xa] sm:$0xff]
      %v712 = vld [vmem:[%s645 + $0x1a] sm:$0xff]
      %v713 = vld [vmem:[%s645 + $0x22] sm:$0xff]
      %v714 = vld [vmem:[%s645 + $0x32] sm:$0xff]
      %v715 = vld [vmem:[%s645 + $0x3a] sm:$0xff]
      %v716 = vld [vmem:[%s645 + $0x4a] sm:$0xff]
      %v717 = vld [vmem:[%s645 + $0x52] sm:$0xff]
      %v718 = vld [vmem:[%s645 + $0x62] sm:$0xff]
      %v719 = vld [vmem:[%s645 + $0x6a] sm:$0xff]
      %v720 = vld [vmem:[%s645 + $0x7a] sm:$0xff]
      %v721 = vld [vmem:[%s645 + $0x82] sm:$0xff]
      %v722 = vld [vmem:[%s645 + $0x92] sm:$0xff]
      %v723 = vld [vmem:[%s645 + $0x9a] sm:$0xff]
      %v724 = vld [vmem:[%s645 + $0xaa] sm:$0xff]
      %v725 = vld [vmem:[%s645 + $0xb2] sm:$0xff]
      %v726 = vld [vmem:[%s645 + $0xc2] sm:$0xff]
      %v727 = vld [vmem:[%s645 + $0xca] sm:$0xff]
      %v728 = vld [vmem:[%s645 + $0xda] sm:$0xff]
      %v729 = vld [vmem:[%s645 + $0xe2] sm:$0xff]
      %v730 = vld [vmem:[%s645 + $0xf2] sm:$0xff]
      %v731 = vld [vmem:[%s645 + $0xfa] sm:$0xff]
      %v732 = vld [vmem:[%s645 + $0x10a] sm:$0xff]
      %v733 = vld [vmem:[%s645 + $0x112] sm:$0xff]
      %v734 = vld [vmem:[%s645 + $0x122] sm:$0xff]
      %v735 = vld [vmem:[%s645 + $0x12a] sm:$0xff]
      %v736 = vld [vmem:[%s645 + $0x13a] sm:$0xff]
      %v737 = vld [vmem:[%s645 + $0x142] sm:$0xff]
      %v738 = vld [vmem:[%s645 + $0x152] sm:$0xff]
      %v739 = vld [vmem:[%s645 + $0x15a] sm:$0xff]
      %v740 = vld [vmem:[%s645 + $0x16a] sm:$0xff]
      %v741 = vld [vmem:[%s645 + $0x172] sm:$0xff]
      %774 = vrot.lane.b32.xlu0 %v485, 8
      %v775 = vpop.permute.xlu0 %774
      %776 = vrot.lane.b32.xlu0 %v486, 8
      %v777 = vpop.permute.xlu0 %776
      %778 = vrot.lane.b32.xlu0 %v487, 8
      %v779 = vpop.permute.xlu0 %778
      %780 = vrot.lane.b32.xlu0 %v488, 8
      %v781 = vpop.permute.xlu0 %780
      %782 = vrot.lane.b32.xlu0 %v489, 8
      %v783 = vpop.permute.xlu0 %782
      %784 = vrot.lane.b32.xlu0 %v490, 8
      %v785 = vpop.permute.xlu0 %784
      %786 = vrot.lane.b32.xlu0 %v491, 8
      %v787 = vpop.permute.xlu0 %786
      %788 = vrot.lane.b32.xlu0 %v492, 8
      %v789 = vpop.permute.xlu0 %788
      %790 = vrot.lane.b32.xlu0 %v493, 8
      %v791 = vpop.permute.xlu0 %790
      %792 = vrot.lane.b32.xlu0 %v494, 8
      %v793 = vpop.permute.xlu0 %792
      %794 = vrot.lane.b32.xlu0 %v495, 8
      %v795 = vpop.permute.xlu0 %794
      %796 = vrot.lane.b32.xlu0 %v496, 8
      %v797 = vpop.permute.xlu0 %796
      %798 = vrot.lane.b32.xlu0 %v497, 8
      %v799 = vpop.permute.xlu0 %798
      %800 = vrot.lane.b32.xlu0 %v498, 8
      %v801 = vpop.permute.xlu0 %800
      %802 = vrot.lane.b32.xlu0 %v499, 8
      %v803 = vpop.permute.xlu0 %802
      %804 = vrot.lane.b32.xlu0 %v500, 8
      %v805 = vpop.permute.xlu0 %804
      %806 = vrot.lane.b32.xlu0 %v501, 8
      %v807 = vpop.permute.xlu0 %806
      %808 = vrot.lane.b32.xlu0 %v502, 8
      %v809 = vpop.permute.xlu0 %808
      %810 = vrot.lane.b32.xlu0 %v503, 8
      %v811 = vpop.permute.xlu0 %810
      %812 = vrot.lane.b32.xlu0 %v504, 8
      %v813 = vpop.permute.xlu0 %812
      %814 = vrot.lane.b32.xlu0 %v505, 8
      %v815 = vpop.permute.xlu0 %814
      %816 = vrot.lane.b32.xlu0 %v506, 8
      %v817 = vpop.permute.xlu0 %816
      %818 = vrot.lane.b32.xlu0 %v507, 8
      %v819 = vpop.permute.xlu0 %818
      %820 = vrot.lane.b32.xlu0 %v508, 8
      %v821 = vpop.permute.xlu0 %820
      %822 = vrot.lane.b32.xlu0 %v509, 8
      %v823 = vpop.permute.xlu0 %822
      %824 = vrot.lane.b32.xlu0 %v510, 8
      %v825 = vpop.permute.xlu0 %824
      %826 = vrot.lane.b32.xlu0 %v511, 8
      %v827 = vpop.permute.xlu0 %826
      %828 = vrot.lane.b32.xlu0 %v512, 8
      %v829 = vpop.permute.xlu0 %828
      %830 = vrot.lane.b32.xlu0 %v513, 8
      %v831 = vpop.permute.xlu0 %830
      %832 = vrot.lane.b32.xlu0 %v514, 8
      %v833 = vpop.permute.xlu0 %832
      %834 = vrot.lane.b32.xlu0 %v515, 8
      %v835 = vpop.permute.xlu0 %834
      %836 = vrot.lane.b32.xlu0 %v516, 8
      %v837 = vpop.permute.xlu0 %836
      %902 = vrot.lane.b32.xlu0 %v517, 16
      %v903 = vpop.permute.xlu0 %902
      %904 = vrot.lane.b32.xlu0 %v518, 16
      %v905 = vpop.permute.xlu0 %904
      %906 = vrot.lane.b32.xlu0 %v519, 16
      %v907 = vpop.permute.xlu0 %906
      %908 = vrot.lane.b32.xlu0 %v520, 16
      %v909 = vpop.permute.xlu0 %908
      %910 = vrot.lane.b32.xlu0 %v521, 16
      %v911 = vpop.permute.xlu0 %910
      %912 = vrot.lane.b32.xlu0 %v522, 16
      %v913 = vpop.permute.xlu0 %912
      %914 = vrot.lane.b32.xlu0 %v523, 16
      %v915 = vpop.permute.xlu0 %914
      %916 = vrot.lane.b32.xlu0 %v524, 16
      %v917 = vpop.permute.xlu0 %916
      %918 = vrot.lane.b32.xlu0 %v525, 16
      %v919 = vpop.permute.xlu0 %918
      %920 = vrot.lane.b32.xlu0 %v526, 16
      %v921 = vpop.permute.xlu0 %920
      %922 = vrot.lane.b32.xlu0 %v527, 16
      %v923 = vpop.permute.xlu0 %922
      %924 = vrot.lane.b32.xlu0 %v528, 16
      %v925 = vpop.permute.xlu0 %924
      %926 = vrot.lane.b32.xlu0 %v529, 16
      %v927 = vpop.permute.xlu0 %926
      %928 = vrot.lane.b32.xlu0 %v530, 16
      %v929 = vpop.permute.xlu0 %928
      %930 = vrot.lane.b32.xlu0 %v531, 16
      %v931 = vpop.permute.xlu0 %930
      %932 = vrot.lane.b32.xlu0 %v532, 16
      %v933 = vpop.permute.xlu0 %932
      %934 = vrot.lane.b32.xlu0 %v533, 16
      %v935 = vpop.permute.xlu0 %934
      %936 = vrot.lane.b32.xlu0 %v534, 16
      %v937 = vpop.permute.xlu0 %936
      %938 = vrot.lane.b32.xlu0 %v535, 16
      %v939 = vpop.permute.xlu0 %938
      %940 = vrot.lane.b32.xlu0 %v536, 16
      %v941 = vpop.permute.xlu0 %940
      %942 = vrot.lane.b32.xlu0 %v537, 16
      %v943 = vpop.permute.xlu0 %942
      %944 = vrot.lane.b32.xlu0 %v538, 16
      %v945 = vpop.permute.xlu0 %944
      %946 = vrot.lane.b32.xlu0 %v539, 16
      %v947 = vpop.permute.xlu0 %946
      %948 = vrot.lane.b32.xlu0 %v540, 16
      %v949 = vpop.permute.xlu0 %948
      %950 = vrot.lane.b32.xlu0 %v541, 16
      %v951 = vpop.permute.xlu0 %950
      %952 = vrot.lane.b32.xlu0 %v542, 16
      %v953 = vpop.permute.xlu0 %952
      %954 = vrot.lane.b32.xlu0 %v543, 16
      %v955 = vpop.permute.xlu0 %954
      %956 = vrot.lane.b32.xlu0 %v544, 16
      %v957 = vpop.permute.xlu0 %956
      %958 = vrot.lane.b32.xlu0 %v545, 16
      %v959 = vpop.permute.xlu0 %958
      %960 = vrot.lane.b32.xlu0 %v546, 16
      %v961 = vpop.permute.xlu0 %960
      %962 = vrot.lane.b32.xlu0 %v547, 16
      %v963 = vpop.permute.xlu0 %962
      %964 = vrot.lane.b32.xlu0 %v548, 16
      %v965 = vpop.permute.xlu0 %964
      %1030 = vrot.lane.b32.xlu0 %v549, 24
      %v1031 = vpop.permute.xlu0 %1030
      %1032 = vrot.lane.b32.xlu0 %v550, 24
      %v1033 = vpop.permute.xlu0 %1032
      %1034 = vrot.lane.b32.xlu0 %v551, 24
      %v1035 = vpop.permute.xlu0 %1034
      %1036 = vrot.lane.b32.xlu0 %v552, 24
      %v1037 = vpop.permute.xlu0 %1036
      %1038 = vrot.lane.b32.xlu0 %v553, 24
      %v1039 = vpop.permute.xlu0 %1038
      %1040 = vrot.lane.b32.xlu0 %v554, 24
      %v1041 = vpop.permute.xlu0 %1040
      %1042 = vrot.lane.b32.xlu0 %v555, 24
      %v1043 = vpop.permute.xlu0 %1042
      %1044 = vrot.lane.b32.xlu0 %v556, 24
      %v1045 = vpop.permute.xlu0 %1044
      %1046 = vrot.lane.b32.xlu0 %v557, 24
      %v1047 = vpop.permute.xlu0 %1046
      %1048 = vrot.lane.b32.xlu0 %v558, 24
      %v1049 = vpop.permute.xlu0 %1048
      %1050 = vrot.lane.b32.xlu0 %v559, 24
      %v1051 = vpop.permute.xlu0 %1050
      %1052 = vrot.lane.b32.xlu0 %v560, 24
      %v1053 = vpop.permute.xlu0 %1052
      %1054 = vrot.lane.b32.xlu0 %v561, 24
      %v1055 = vpop.permute.xlu0 %1054
      %1056 = vrot.lane.b32.xlu0 %v562, 24
      %v1057 = vpop.permute.xlu0 %1056
      %1058 = vrot.lane.b32.xlu0 %v563, 24
      %v1059 = vpop.permute.xlu0 %1058
      %1060 = vrot.lane.b32.xlu0 %v564, 24
      %v1061 = vpop.permute.xlu0 %1060
      %1062 = vrot.lane.b32.xlu0 %v565, 24
      %v1063 = vpop.permute.xlu0 %1062
      %1064 = vrot.lane.b32.xlu0 %v566, 24
      %v1065 = vpop.permute.xlu0 %1064
      %1066 = vrot.lane.b32.xlu0 %v567, 24
      %v1067 = vpop.permute.xlu0 %1066
      %1068 = vrot.lane.b32.xlu0 %v568, 24
      %v1069 = vpop.permute.xlu0 %1068
      %1070 = vrot.lane.b32.xlu0 %v569, 24
      %v1071 = vpop.permute.xlu0 %1070
      %1072 = vrot.lane.b32.xlu0 %v570, 24
      %v1073 = vpop.permute.xlu0 %1072
      %1074 = vrot.lane.b32.xlu0 %v571, 24
      %v1075 = vpop.permute.xlu0 %1074
      %1076 = vrot.lane.b32.xlu0 %v572, 24
      %v1077 = vpop.permute.xlu0 %1076
      %1078 = vrot.lane.b32.xlu0 %v573, 24
      %v1079 = vpop.permute.xlu0 %1078
      %1080 = vrot.lane.b32.xlu0 %v574, 24
      %v1081 = vpop.permute.xlu0 %1080
      %1082 = vrot.lane.b32.xlu0 %v575, 24
      %v1083 = vpop.permute.xlu0 %1082
      %1084 = vrot.lane.b32.xlu0 %v576, 24
      %v1085 = vpop.permute.xlu0 %1084
      %1086 = vrot.lane.b32.xlu0 %v577, 24
      %v1087 = vpop.permute.xlu0 %1086
      %1088 = vrot.lane.b32.xlu0 %v578, 24
      %v1089 = vpop.permute.xlu0 %1088
      %1090 = vrot.lane.b32.xlu0 %v579, 24
      %v1091 = vpop.permute.xlu0 %1090
      %1092 = vrot.lane.b32.xlu0 %v580, 24
      %v1093 = vpop.permute.xlu0 %1092
      %1158 = vrot.lane.b32.xlu0 %v581, 32
      %v1159 = vpop.permute.xlu0 %1158
      %1160 = vrot.lane.b32.xlu0 %v582, 32
      %v1161 = vpop.permute.xlu0 %1160
      %1162 = vrot.lane.b32.xlu0 %v583, 32
      %v1163 = vpop.permute.xlu0 %1162
      %1164 = vrot.lane.b32.xlu0 %v584, 32
      %v1165 = vpop.permute.xlu0 %1164
      %1166 = vrot.lane.b32.xlu0 %v585, 32
      %v1167 = vpop.permute.xlu0 %1166
      %1168 = vrot.lane.b32.xlu0 %v586, 32
      %v1169 = vpop.permute.xlu0 %1168
      %1170 = vrot.lane.b32.xlu0 %v587, 32
      %v1171 = vpop.permute.xlu0 %1170
      %1172 = vrot.lane.b32.xlu0 %v588, 32
      %v1173 = vpop.permute.xlu0 %1172
      %1174 = vrot.lane.b32.xlu0 %v589, 32
      %v1175 = vpop.permute.xlu0 %1174
      %1176 = vrot.lane.b32.xlu0 %v590, 32
      %v1177 = vpop.permute.xlu0 %1176
      %1178 = vrot.lane.b32.xlu0 %v591, 32
      %v1179 = vpop.permute.xlu0 %1178
      %1180 = vrot.lane.b32.xlu0 %v592, 32
      %v1181 = vpop.permute.xlu0 %1180
      %1182 = vrot.lane.b32.xlu0 %v593, 32
      %v1183 = vpop.permute.xlu0 %1182
      %1184 = vrot.lane.b32.xlu0 %v594, 32
      %v1185 = vpop.permute.xlu0 %1184
      %1186 = vrot.lane.b32.xlu0 %v595, 32
      %v1187 = vpop.permute.xlu0 %1186
      %1188 = vrot.lane.b32.xlu0 %v596, 32
      %v1189 = vpop.permute.xlu0 %1188
      %1190 = vrot.lane.b32.xlu0 %v597, 32
      %v1191 = vpop.permute.xlu0 %1190
      %1192 = vrot.lane.b32.xlu0 %v598, 32
      %v1193 = vpop.permute.xlu0 %1192
      %1194 = vrot.lane.b32.xlu0 %v599, 32
      %v1195 = vpop.permute.xlu0 %1194
      %1196 = vrot.lane.b32.xlu0 %v600, 32
      %v1197 = vpop.permute.xlu0 %1196
      %1198 = vrot.lane.b32.xlu0 %v601, 32
      %v1199 = vpop.permute.xlu0 %1198
      %1200 = vrot.lane.b32.xlu0 %v602, 32
      %v1201 = vpop.permute.xlu0 %1200
      %1202 = vrot.lane.b32.xlu0 %v603, 32
      %v1203 = vpop.permute.xlu0 %1202
      %1204 = vrot.lane.b32.xlu0 %v604, 32
      %v1205 = vpop.permute.xlu0 %1204
      %1206 = vrot.lane.b32.xlu0 %v605, 32
      %v1207 = vpop.permute.xlu0 %1206
      %1208 = vrot.lane.b32.xlu0 %v606, 32
      %v1209 = vpop.permute.xlu0 %1208
      %1210 = vrot.lane.b32.xlu0 %v607, 32
      %v1211 = vpop.permute.xlu0 %1210
      %1212 = vrot.lane.b32.xlu0 %v608, 32
      %v1213 = vpop.permute.xlu0 %1212
      %1214 = vrot.lane.b32.xlu0 %v609, 32
      %v1215 = vpop.permute.xlu0 %1214
      %1216 = vrot.lane.b32.xlu0 %v610, 32
      %v1217 = vpop.permute.xlu0 %1216
      %1218 = vrot.lane.b32.xlu0 %v611, 32
      %v1219 = vpop.permute.xlu0 %1218
      %1220 = vrot.lane.b32.xlu0 %v612, 32
      %v1221 = vpop.permute.xlu0 %1220
      %1286 = vrot.lane.b32.xlu0 %v613, 40
      %v1287 = vpop.permute.xlu0 %1286
      %1288 = vrot.lane.b32.xlu0 %v614, 40
      %v1289 = vpop.permute.xlu0 %1288
      %1290 = vrot.lane.b32.xlu0 %v615, 40
      %v1291 = vpop.permute.xlu0 %1290
      %1292 = vrot.lane.b32.xlu0 %v616, 40
      %v1293 = vpop.permute.xlu0 %1292
      %1294 = vrot.lane.b32.xlu0 %v617, 40
      %v1295 = vpop.permute.xlu0 %1294
      %1296 = vrot.lane.b32.xlu0 %v618, 40
      %v1297 = vpop.permute.xlu0 %1296
      %1298 = vrot.lane.b32.xlu0 %v619, 40
      %v1299 = vpop.permute.xlu0 %1298
      %1300 = vrot.lane.b32.xlu0 %v620, 40
      %v1301 = vpop.permute.xlu0 %1300
      %1302 = vrot.lane.b32.xlu0 %v621, 40
      %v1303 = vpop.permute.xlu0 %1302
      %1304 = vrot.lane.b32.xlu0 %v622, 40
      %v1305 = vpop.permute.xlu0 %1304
      %1306 = vrot.lane.b32.xlu0 %v623, 40
      %v1307 = vpop.permute.xlu0 %1306
      %1308 = vrot.lane.b32.xlu0 %v624, 40
      %v1309 = vpop.permute.xlu0 %1308
      %1310 = vrot.lane.b32.xlu0 %v625, 40
      %v1311 = vpop.permute.xlu0 %1310
      %1312 = vrot.lane.b32.xlu0 %v626, 40
      %v1313 = vpop.permute.xlu0 %1312
      %1314 = vrot.lane.b32.xlu0 %v627, 40
      %v1315 = vpop.permute.xlu0 %1314
      %1316 = vrot.lane.b32.xlu0 %v628, 40
      %v1317 = vpop.permute.xlu0 %1316
      %1318 = vrot.lane.b32.xlu0 %v629, 40
      %v1319 = vpop.permute.xlu0 %1318
      %1320 = vrot.lane.b32.xlu0 %v630, 40
      %v1321 = vpop.permute.xlu0 %1320
      %1322 = vrot.lane.b32.xlu0 %v631, 40
      %v1323 = vpop.permute.xlu0 %1322
      %1324 = vrot.lane.b32.xlu0 %v632, 40
      %v1325 = vpop.permute.xlu0 %1324
      %1326 = vrot.lane.b32.xlu0 %v633, 40
      %v1327 = vpop.permute.xlu0 %1326
      %1328 = vrot.lane.b32.xlu0 %v634, 40
      %v1329 = vpop.permute.xlu0 %1328
      %1330 = vrot.lane.b32.xlu0 %v635, 40
      %v1331 = vpop.permute.xlu0 %1330
      %1332 = vrot.lane.b32.xlu0 %v636, 40
      %v1333 = vpop.permute.xlu0 %1332
      %1334 = vrot.lane.b32.xlu0 %v637, 40
      %v1335 = vpop.permute.xlu0 %1334
      %1336 = vrot.lane.b32.xlu0 %v638, 40
      %v1337 = vpop.permute.xlu0 %1336
      %1338 = vrot.lane.b32.xlu0 %v639, 40
      %v1339 = vpop.permute.xlu0 %1338
      %1340 = vrot.lane.b32.xlu0 %v640, 40
      %v1341 = vpop.permute.xlu0 %1340
      %1342 = vrot.lane.b32.xlu0 %v641, 40
      %v1343 = vpop.permute.xlu0 %1342
      %1344 = vrot.lane.b32.xlu0 %v642, 40
      %v1345 = vpop.permute.xlu0 %1344
      %1346 = vrot.lane.b32.xlu0 %v643, 40
      %v1347 = vpop.permute.xlu0 %1346
      %1348 = vrot.lane.b32.xlu0 %v644, 40
      %v1349 = vpop.permute.xlu0 %1348
      %1414 = vrot.lane.b32.xlu0 %v646, 48
      %v1415 = vpop.permute.xlu0 %1414
      %1416 = vrot.lane.b32.xlu0 %v647, 48
      %v1417 = vpop.permute.xlu0 %1416
      %1418 = vrot.lane.b32.xlu0 %v648, 48
      %v1419 = vpop.permute.xlu0 %1418
      %1420 = vrot.lane.b32.xlu0 %v649, 48
      %v1421 = vpop.permute.xlu0 %1420
      %1422 = vrot.lane.b32.xlu0 %v650, 48
      %v1423 = vpop.permute.xlu0 %1422
      %1424 = vrot.lane.b32.xlu0 %v651, 48
      %v1425 = vpop.permute.xlu0 %1424
      %1426 = vrot.lane.b32.xlu0 %v652, 48
      %v1427 = vpop.permute.xlu0 %1426
      %1428 = vrot.lane.b32.xlu0 %v653, 48
      %v1429 = vpop.permute.xlu0 %1428
      %1430 = vrot.lane.b32.xlu0 %v654, 48
      %v1431 = vpop.permute.xlu0 %1430
      %1432 = vrot.lane.b32.xlu0 %v655, 48
      %v1433 = vpop.permute.xlu0 %1432
      %1434 = vrot.lane.b32.xlu0 %v656, 48
      %v1435 = vpop.permute.xlu0 %1434
      %1436 = vrot.lane.b32.xlu0 %v657, 48
      %v1437 = vpop.permute.xlu0 %1436
      %1438 = vrot.lane.b32.xlu0 %v658, 48
      %v1439 = vpop.permute.xlu0 %1438
      %1440 = vrot.lane.b32.xlu0 %v659, 48
      %v1441 = vpop.permute.xlu0 %1440
      %1442 = vrot.lane.b32.xlu0 %v660, 48
      %v1443 = vpop.permute.xlu0 %1442
      %1444 = vrot.lane.b32.xlu0 %v661, 48
      %v1445 = vpop.permute.xlu0 %1444
      %1446 = vrot.lane.b32.xlu0 %v662, 48
      %v1447 = vpop.permute.xlu0 %1446
      %1448 = vrot.lane.b32.xlu0 %v663, 48
      %v1449 = vpop.permute.xlu0 %1448
      %1450 = vrot.lane.b32.xlu0 %v664, 48
      %v1451 = vpop.permute.xlu0 %1450
      %1452 = vrot.lane.b32.xlu0 %v665, 48
      %v1453 = vpop.permute.xlu0 %1452
      %1454 = vrot.lane.b32.xlu0 %v666, 48
      %v1455 = vpop.permute.xlu0 %1454
      %1456 = vrot.lane.b32.xlu0 %v667, 48
      %v1457 = vpop.permute.xlu0 %1456
      %1458 = vrot.lane.b32.xlu0 %v668, 48
      %v1459 = vpop.permute.xlu0 %1458
      %1460 = vrot.lane.b32.xlu0 %v669, 48
      %v1461 = vpop.permute.xlu0 %1460
      %1462 = vrot.lane.b32.xlu0 %v670, 48
      %v1463 = vpop.permute.xlu0 %1462
      %1464 = vrot.lane.b32.xlu0 %v671, 48
      %v1465 = vpop.permute.xlu0 %1464
      %1466 = vrot.lane.b32.xlu0 %v672, 48
      %v1467 = vpop.permute.xlu0 %1466
      %1468 = vrot.lane.b32.xlu0 %v673, 48
      %v1469 = vpop.permute.xlu0 %1468
      %1470 = vrot.lane.b32.xlu0 %v674, 48
      %v1471 = vpop.permute.xlu0 %1470
      %1472 = vrot.lane.b32.xlu0 %v675, 48
      %v1473 = vpop.permute.xlu0 %1472
      %1474 = vrot.lane.b32.xlu0 %v676, 48
      %v1475 = vpop.permute.xlu0 %1474
      %1476 = vrot.lane.b32.xlu0 %v677, 48
      %v1477 = vpop.permute.xlu0 %1476
      %1542 = vrot.lane.b32.xlu0 %v678, 56
      %v1543 = vpop.permute.xlu0 %1542
      %1544 = vrot.lane.b32.xlu0 %v679, 56
      %v1545 = vpop.permute.xlu0 %1544
      %1546 = vrot.lane.b32.xlu0 %v680, 56
      %v1547 = vpop.permute.xlu0 %1546
      %1548 = vrot.lane.b32.xlu0 %v681, 56
      %v1549 = vpop.permute.xlu0 %1548
      %1550 = vrot.lane.b32.xlu0 %v682, 56
      %v1551 = vpop.permute.xlu0 %1550
      %1552 = vrot.lane.b32.xlu0 %v683, 56
      %v1553 = vpop.permute.xlu0 %1552
      %1554 = vrot.lane.b32.xlu0 %v684, 56
      %v1555 = vpop.permute.xlu0 %1554
      %1556 = vrot.lane.b32.xlu0 %v685, 56
      %v1557 = vpop.permute.xlu0 %1556
      %1558 = vrot.lane.b32.xlu0 %v686, 56
      %v1559 = vpop.permute.xlu0 %1558
      %1560 = vrot.lane.b32.xlu0 %v687, 56
      %v1561 = vpop.permute.xlu0 %1560
      %1562 = vrot.lane.b32.xlu0 %v688, 56
      %v1563 = vpop.permute.xlu0 %1562
      %1564 = vrot.lane.b32.xlu0 %v689, 56
      %v1565 = vpop.permute.xlu0 %1564
      %1566 = vrot.lane.b32.xlu0 %v690, 56
      %v1567 = vpop.permute.xlu0 %1566
      %1568 = vrot.lane.b32.xlu0 %v691, 56
      %v1569 = vpop.permute.xlu0 %1568
      %1570 = vrot.lane.b32.xlu0 %v692, 56
      %v1571 = vpop.permute.xlu0 %1570
      %1572 = vrot.lane.b32.xlu0 %v693, 56
      %v1573 = vpop.permute.xlu0 %1572
      %1574 = vrot.lane.b32.xlu0 %v694, 56
      %v1575 = vpop.permute.xlu0 %1574
      %1576 = vrot.lane.b32.xlu0 %v695, 56
      %v1577 = vpop.permute.xlu0 %1576
      %1578 = vrot.lane.b32.xlu0 %v696, 56
      %v1579 = vpop.permute.xlu0 %1578
      %1580 = vrot.lane.b32.xlu0 %v697, 56
      %v1581 = vpop.permute.xlu0 %1580
      %1582 = vrot.lane.b32.xlu0 %v698, 56
      %v1583 = vpop.permute.xlu0 %1582
      %1584 = vrot.lane.b32.xlu0 %v699, 56
      %v1585 = vpop.permute.xlu0 %1584
      %1586 = vrot.lane.b32.xlu0 %v700, 56
      %v1587 = vpop.permute.xlu0 %1586
      %1588 = vrot.lane.b32.xlu0 %v701, 56
      %v1589 = vpop.permute.xlu0 %1588
      %1590 = vrot.lane.b32.xlu0 %v702, 56
      %v1591 = vpop.permute.xlu0 %1590
      %1592 = vrot.lane.b32.xlu0 %v703, 56
      %v1593 = vpop.permute.xlu0 %1592
      %1594 = vrot.lane.b32.xlu0 %v704, 56
      %v1595 = vpop.permute.xlu0 %1594
      %1596 = vrot.lane.b32.xlu0 %v705, 56
      %v1597 = vpop.permute.xlu0 %1596
      %1598 = vrot.lane.b32.xlu0 %v706, 56
      %v1599 = vpop.permute.xlu0 %1598
      %1600 = vrot.lane.b32.xlu0 %v707, 56
      %v1601 = vpop.permute.xlu0 %1600
      %1602 = vrot.lane.b32.xlu0 %v708, 56
      %v1603 = vpop.permute.xlu0 %1602
      %1604 = vrot.lane.b32.xlu0 %v709, 56
      %v1605 = vpop.permute.xlu0 %1604
      %1670 = vrot.lane.b32.xlu0 %v710, 64
      %v1671 = vpop.permute.xlu0 %1670
      %1672 = vrot.lane.b32.xlu0 %v711, 64
      %v1673 = vpop.permute.xlu0 %1672
      %1674 = vrot.lane.b32.xlu0 %v712, 64
      %v1675 = vpop.permute.xlu0 %1674
      %1676 = vrot.lane.b32.xlu0 %v713, 64
      %v1677 = vpop.permute.xlu0 %1676
      %1678 = vrot.lane.b32.xlu0 %v714, 64
      %v1679 = vpop.permute.xlu0 %1678
      %1680 = vrot.lane.b32.xlu0 %v715, 64
      %v1681 = vpop.permute.xlu0 %1680
      %1682 = vrot.lane.b32.xlu0 %v716, 64
      %v1683 = vpop.permute.xlu0 %1682
      %1684 = vrot.lane.b32.xlu0 %v717, 64
      %v1685 = vpop.permute.xlu0 %1684
      %1686 = vrot.lane.b32.xlu0 %v718, 64
      %v1687 = vpop.permute.xlu0 %1686
      %1688 = vrot.lane.b32.xlu0 %v719, 64
      %v1689 = vpop.permute.xlu0 %1688
      %1690 = vrot.lane.b32.xlu0 %v720, 64
      %v1691 = vpop.permute.xlu0 %1690
      %1692 = vrot.lane.b32.xlu0 %v721, 64
      %v1693 = vpop.permute.xlu0 %1692
      %1694 = vrot.lane.b32.xlu0 %v722, 64
      %v1695 = vpop.permute.xlu0 %1694
      %1696 = vrot.lane.b32.xlu0 %v723, 64
      %v1697 = vpop.permute.xlu0 %1696
      %1698 = vrot.lane.b32.xlu0 %v724, 64
      %v1699 = vpop.permute.xlu0 %1698
      %1700 = vrot.lane.b32.xlu0 %v725, 64
      %v1701 = vpop.permute.xlu0 %1700
      %1702 = vrot.lane.b32.xlu0 %v726, 64
      %v1703 = vpop.permute.xlu0 %1702
      %1704 = vrot.lane.b32.xlu0 %v727, 64
      %v1705 = vpop.permute.xlu0 %1704
      %1706 = vrot.lane.b32.xlu0 %v728, 64
      %v1707 = vpop.permute.xlu0 %1706
      %1708 = vrot.lane.b32.xlu0 %v729, 64
      %v1709 = vpop.permute.xlu0 %1708
      %1710 = vrot.lane.b32.xlu0 %v730, 64
      %v1711 = vpop.permute.xlu0 %1710
      %1712 = vrot.lane.b32.xlu0 %v731, 64
      %v1713 = vpop.permute.xlu0 %1712
      %1714 = vrot.lane.b32.xlu0 %v732, 64
      %v1715 = vpop.permute.xlu0 %1714
      %1716 = vrot.lane.b32.xlu0 %v733, 64
      %v1717 = vpop.permute.xlu0 %1716
      %1718 = vrot.lane.b32.xlu0 %v734, 64
      %v1719 = vpop.permute.xlu0 %1718
      %1720 = vrot.lane.b32.xlu0 %v735, 64
      %v1721 = vpop.permute.xlu0 %1720
      %1722 = vrot.lane.b32.xlu0 %v736, 64
      %v1723 = vpop.permute.xlu0 %1722
      %1724 = vrot.lane.b32.xlu0 %v737, 64
      %v1725 = vpop.permute.xlu0 %1724
      %1726 = vrot.lane.b32.xlu0 %v738, 64
      %v1727 = vpop.permute.xlu0 %1726
      %1728 = vrot.lane.b32.xlu0 %v739, 64
      %v1729 = vpop.permute.xlu0 %1728
      %1730 = vrot.lane.b32.xlu0 %v740, 64
      %v1731 = vpop.permute.xlu0 %1730
      %1732 = vrot.lane.b32.xlu0 %v741, 64
      %v1733 = vpop.permute.xlu0 %1732
      %v1766 = vsel %vm374, %v453, %v775
      %v1767 = vsel %vm374, %v454, %v777
      %v1768 = vsel %vm374, %v455, %v779
      %v1769 = vsel %vm374, %v456, %v781
      %v1770 = vsel %vm374, %v457, %v783
      %v1771 = vsel %vm374, %v458, %v785
      %v1772 = vsel %vm374, %v459, %v787
      %v1773 = vsel %vm374, %v460, %v789
      %v1774 = vsel %vm374, %v461, %v791
      %v1775 = vsel %vm374, %v462, %v793
      %v1776 = vsel %vm374, %v463, %v795
      %v1777 = vsel %vm374, %v464, %v797
      %v1778 = vsel %vm374, %v465, %v799
      %v1779 = vsel %vm374, %v466, %v801
      %v1780 = vsel %vm374, %v467, %v803
      %v1781 = vsel %vm374, %v468, %v805
      %v1782 = vsel %vm374, %v469, %v807
      %v1783 = vsel %vm374, %v470, %v809
      %v1784 = vsel %vm374, %v471, %v811
      %v1785 = vsel %vm374, %v472, %v813
      %v1786 = vsel %vm374, %v473, %v815
      %v1787 = vsel %vm374, %v474, %v817
      %v1788 = vsel %vm374, %v475, %v819
      %v1789 = vsel %vm374, %v476, %v821
      %v1790 = vsel %vm374, %v477, %v823
      %v1791 = vsel %vm374, %v478, %v825
      %v1792 = vsel %vm374, %v479, %v827
      %v1793 = vsel %vm374, %v480, %v829
      %v1794 = vsel %vm374, %v481, %v831
      %v1795 = vsel %vm374, %v482, %v833
      %v1796 = vsel %vm374, %v483, %v835
      %v1797 = vsel %vm374, %v484, %v837
      %vm1798 = vcmask 130048
      %v1799 = vsel %vm1798, %v1766, %v903
      %v1800 = vsel %vm1798, %v1767, %v905
      %v1801 = vsel %vm1798, %v1768, %v907
      %v1802 = vsel %vm1798, %v1769, %v909
      %v1803 = vsel %vm1798, %v1770, %v911
      %v1804 = vsel %vm1798, %v1771, %v913
      %v1805 = vsel %vm1798, %v1772, %v915
      %v1806 = vsel %vm1798, %v1773, %v917
      %v1807 = vsel %vm1798, %v1774, %v919
      %v1808 = vsel %vm1798, %v1775, %v921
      %v1809 = vsel %vm1798, %v1776, %v923
      %v1810 = vsel %vm1798, %v1777, %v925
      %v1811 = vsel %vm1798, %v1778, %v927
      %v1812 = vsel %vm1798, %v1779, %v929
      %v1813 = vsel %vm1798, %v1780, %v931
      %v1814 = vsel %vm1798, %v1781, %v933
      %v1815 = vsel %vm1798, %v1782, %v935
      %v1816 = vsel %vm1798, %v1783, %v937
      %v1817 = vsel %vm1798, %v1784, %v939
      %v1818 = vsel %vm1798, %v1785, %v941
      %v1819 = vsel %vm1798, %v1786, %v943
      %v1820 = vsel %vm1798, %v1787, %v945
      %v1821 = vsel %vm1798, %v1788, %v947
      %v1822 = vsel %vm1798, %v1789, %v949
      %v1823 = vsel %vm1798, %v1790, %v951
      %v1824 = vsel %vm1798, %v1791, %v953
      %v1825 = vsel %vm1798, %v1792, %v955
      %v1826 = vsel %vm1798, %v1793, %v957
      %v1827 = vsel %vm1798, %v1794, %v959
      %v1828 = vsel %vm1798, %v1795, %v961
      %v1829 = vsel %vm1798, %v1796, %v963
      %v1830 = vsel %vm1798, %v1797, %v965
      %vm1831 = vcmask 195584
      %v1832 = vsel %vm1831, %v1799, %v1031
      %v1833 = vsel %vm1831, %v1800, %v1033
      %v1834 = vsel %vm1831, %v1801, %v1035
      %v1835 = vsel %vm1831, %v1802, %v1037
      %v1836 = vsel %vm1831, %v1803, %v1039
      %v1837 = vsel %vm1831, %v1804, %v1041
      %v1838 = vsel %vm1831, %v1805, %v1043
      %v1839 = vsel %vm1831, %v1806, %v1045
      %v1840 = vsel %vm1831, %v1807, %v1047
      %v1841 = vsel %vm1831, %v1808, %v1049
      %v1842 = vsel %vm1831, %v1809, %v1051
      %v1843 = vsel %vm1831, %v1810, %v1053
      %v1844 = vsel %vm1831, %v1811, %v1055
      %v1845 = vsel %vm1831, %v1812, %v1057
      %v1846 = vsel %vm1831, %v1813, %v1059
      %v1847 = vsel %vm1831, %v1814, %v1061
      %v1848 = vsel %vm1831, %v1815, %v1063
      %v1849 = vsel %vm1831, %v1816, %v1065
      %v1850 = vsel %vm1831, %v1817, %v1067
      %v1851 = vsel %vm1831, %v1818, %v1069
      %v1852 = vsel %vm1831, %v1819, %v1071
      %v1853 = vsel %vm1831, %v1820, %v1073
      %v1854 = vsel %vm1831, %v1821, %v1075
      %v1855 = vsel %vm1831, %v1822, %v1077
      %v1856 = vsel %vm1831, %v1823, %v1079
      %v1857 = vsel %vm1831, %v1824, %v1081
      %v1858 = vsel %vm1831, %v1825, %v1083
      %v1859 = vsel %vm1831, %v1826, %v1085
      %v1860 = vsel %vm1831, %v1827, %v1087
      %v1861 = vsel %vm1831, %v1828, %v1089
      %v1862 = vsel %vm1831, %v1829, %v1091
      %v1863 = vsel %vm1831, %v1830, %v1093
      %vm1864 = vcmask 261120
      %v1865 = vsel %vm1864, %v1832, %v1159
      %v1866 = vsel %vm1864, %v1833, %v1161
      %v1867 = vsel %vm1864, %v1834, %v1163
      %v1868 = vsel %vm1864, %v1835, %v1165
      %v1869 = vsel %vm1864, %v1836, %v1167
      %v1870 = vsel %vm1864, %v1837, %v1169
      %v1871 = vsel %vm1864, %v1838, %v1171
      %v1872 = vsel %vm1864, %v1839, %v1173
      %v1873 = vsel %vm1864, %v1840, %v1175
      %v1874 = vsel %vm1864, %v1841, %v1177
      %v1875 = vsel %vm1864, %v1842, %v1179
      %v1876 = vsel %vm1864, %v1843, %v1181
      %v1877 = vsel %vm1864, %v1844, %v1183
      %v1878 = vsel %vm1864, %v1845, %v1185
      %v1879 = vsel %vm1864, %v1846, %v1187
      %v1880 = vsel %vm1864, %v1847, %v1189
      %v1881 = vsel %vm1864, %v1848, %v1191
      %v1882 = vsel %vm1864, %v1849, %v1193
      %v1883 = vsel %vm1864, %v1850, %v1195
      %v1884 = vsel %vm1864, %v1851, %v1197
      %v1885 = vsel %vm1864, %v1852, %v1199
      %v1886 = vsel %vm1864, %v1853, %v1201
      %v1887 = vsel %vm1864, %v1854, %v1203
      %v1888 = vsel %vm1864, %v1855, %v1205
      %v1889 = vsel %vm1864, %v1856, %v1207
      %v1890 = vsel %vm1864, %v1857, %v1209
      %v1891 = vsel %vm1864, %v1858, %v1211
      %v1892 = vsel %vm1864, %v1859, %v1213
      %v1893 = vsel %vm1864, %v1860, %v1215
      %v1894 = vsel %vm1864, %v1861, %v1217
      %v1895 = vsel %vm1864, %v1862, %v1219
      %v1896 = vsel %vm1864, %v1863, %v1221
      %vm1897 = vcmask 326656
      %v1898 = vsel %vm1897, %v1865, %v1287
      %v1899 = vsel %vm1897, %v1866, %v1289
      %v1900 = vsel %vm1897, %v1867, %v1291
      %v1901 = vsel %vm1897, %v1868, %v1293
      %v1902 = vsel %vm1897, %v1869, %v1295
      %v1903 = vsel %vm1897, %v1870, %v1297
      %v1904 = vsel %vm1897, %v1871, %v1299
      %v1905 = vsel %vm1897, %v1872, %v1301
      %v1906 = vsel %vm1897, %v1873, %v1303
      %v1907 = vsel %vm1897, %v1874, %v1305
      %v1908 = vsel %vm1897, %v1875, %v1307
      %v1909 = vsel %vm1897, %v1876, %v1309
      %v1910 = vsel %vm1897, %v1877, %v1311
      %v1911 = vsel %vm1897, %v1878, %v1313
      %v1912 = vsel %vm1897, %v1879, %v1315
      %v1913 = vsel %vm1897, %v1880, %v1317
      %v1914 = vsel %vm1897, %v1881, %v1319
      %v1915 = vsel %vm1897, %v1882, %v1321
      %v1916 = vsel %vm1897, %v1883, %v1323
      %v1917 = vsel %vm1897, %v1884, %v1325
      %v1918 = vsel %vm1897, %v1885, %v1327
      %v1919 = vsel %vm1897, %v1886, %v1329
      %v1920 = vsel %vm1897, %v1887, %v1331
      %v1921 = vsel %vm1897, %v1888, %v1333
      %v1922 = vsel %vm1897, %v1889, %v1335
      %v1923 = vsel %vm1897, %v1890, %v1337
      %v1924 = vsel %vm1897, %v1891, %v1339
      %v1925 = vsel %vm1897, %v1892, %v1341
      %v1926 = vsel %vm1897, %v1893, %v1343
      %v1927 = vsel %vm1897, %v1894, %v1345
      %v1928 = vsel %vm1897, %v1895, %v1347
      %v1929 = vsel %vm1897, %v1896, %v1349
      %vm1930 = vcmask 392192
      %v1931 = vsel %vm1930, %v1898, %v1415
      %v1932 = vsel %vm1930, %v1899, %v1417
      %v1933 = vsel %vm1930, %v1900, %v1419
      %v1934 = vsel %vm1930, %v1901, %v1421
      %v1935 = vsel %vm1930, %v1902, %v1423
      %v1936 = vsel %vm1930, %v1903, %v1425
      %v1937 = vsel %vm1930, %v1904, %v1427
      %v1938 = vsel %vm1930, %v1905, %v1429
      %v1939 = vsel %vm1930, %v1906, %v1431
      %v1940 = vsel %vm1930, %v1907, %v1433
      %v1941 = vsel %vm1930, %v1908, %v1435
      %v1942 = vsel %vm1930, %v1909, %v1437
      %v1943 = vsel %vm1930, %v1910, %v1439
      %v1944 = vsel %vm1930, %v1911, %v1441
      %v1945 = vsel %vm1930, %v1912, %v1443
      %v1946 = vsel %vm1930, %v1913, %v1445
      %v1947 = vsel %vm1930, %v1914, %v1447
      %v1948 = vsel %vm1930, %v1915, %v1449
      %v1949 = vsel %vm1930, %v1916, %v1451
      %v1950 = vsel %vm1930, %v1917, %v1453
      %v1951 = vsel %vm1930, %v1918, %v1455
      %v1952 = vsel %vm1930, %v1919, %v1457
      %v1953 = vsel %vm1930, %v1920, %v1459
      %v1954 = vsel %vm1930, %v1921, %v1461
      %v1955 = vsel %vm1930, %v1922, %v1463
      %v1956 = vsel %vm1930, %v1923, %v1465
      %v1957 = vsel %vm1930, %v1924, %v1467
      %v1958 = vsel %vm1930, %v1925, %v1469
      %v1959 = vsel %vm1930, %v1926, %v1471
      %v1960 = vsel %vm1930, %v1927, %v1473
      %v1961 = vsel %vm1930, %v1928, %v1475
      %v1962 = vsel %vm1930, %v1929, %v1477
      %vm1963 = vcmask 457728
      %v1964 = vsel %vm1963, %v1931, %v1543
      %v1965 = vsel %vm1963, %v1932, %v1545
      %v1966 = vsel %vm1963, %v1933, %v1547
      %v1967 = vsel %vm1963, %v1934, %v1549
      %v1968 = vsel %vm1963, %v1935, %v1551
      %v1969 = vsel %vm1963, %v1936, %v1553
      %v1970 = vsel %vm1963, %v1937, %v1555
      %v1971 = vsel %vm1963, %v1938, %v1557
      %v1972 = vsel %vm1963, %v1939, %v1559
      %v1973 = vsel %vm1963, %v1940, %v1561
      %v1974 = vsel %vm1963, %v1941, %v1563
      %v1975 = vsel %vm1963, %v1942, %v1565
      %v1976 = vsel %vm1963, %v1943, %v1567
      %v1977 = vsel %vm1963, %v1944, %v1569
      %v1978 = vsel %vm1963, %v1945, %v1571
      %v1979 = vsel %vm1963, %v1946, %v1573
      %v1980 = vsel %vm1963, %v1947, %v1575
      %v1981 = vsel %vm1963, %v1948, %v1577
      %v1982 = vsel %vm1963, %v1949, %v1579
      %v1983 = vsel %vm1963, %v1950, %v1581
      %v1984 = vsel %vm1963, %v1951, %v1583
      %v1985 = vsel %vm1963, %v1952, %v1585
      %v1986 = vsel %vm1963, %v1953, %v1587
      %v1987 = vsel %vm1963, %v1954, %v1589
      %v1988 = vsel %vm1963, %v1955, %v1591
      %v1989 = vsel %vm1963, %v1956, %v1593
      %v1990 = vsel %vm1963, %v1957, %v1595
      %v1991 = vsel %vm1963, %v1958, %v1597
      %v1992 = vsel %vm1963, %v1959, %v1599
      %v1993 = vsel %vm1963, %v1960, %v1601
      %v1994 = vsel %vm1963, %v1961, %v1603
      %v1995 = vsel %vm1963, %v1962, %v1605
      %vm1996 = vcmask 523264
      %v1997 = vsel %vm1996, %v1964, %v1671
      %v1998 = vsel %vm1996, %v1965, %v1673
      %v1999 = vsel %vm1996, %v1966, %v1675
      %v2000 = vsel %vm1996, %v1967, %v1677
      %v2001 = vsel %vm1996, %v1968, %v1679
      %v2002 = vsel %vm1996, %v1969, %v1681
      %v2003 = vsel %vm1996, %v1970, %v1683
      %v2004 = vsel %vm1996, %v1971, %v1685
      %v2005 = vsel %vm1996, %v1972, %v1687
      %v2006 = vsel %vm1996, %v1973, %v1689
      %v2007 = vsel %vm1996, %v1974, %v1691
      %v2008 = vsel %vm1996, %v1975, %v1693
      %v2009 = vsel %vm1996, %v1976, %v1695
      %v2010 = vsel %vm1996, %v1977, %v1697
      %v2011 = vsel %vm1996, %v1978, %v1699
      %v2012 = vsel %vm1996, %v1979, %v1701
      %v2013 = vsel %vm1996, %v1980, %v1703
      %v2014 = vsel %vm1996, %v1981, %v1705
      %v2015 = vsel %vm1996, %v1982, %v1707
      %v2016 = vsel %vm1996, %v1983, %v1709
      %v2017 = vsel %vm1996, %v1984, %v1711
      %v2018 = vsel %vm1996, %v1985, %v1713
      %v2019 = vsel %vm1996, %v1986, %v1715
      %v2020 = vsel %vm1996, %v1987, %v1717
      %v2021 = vsel %vm1996, %v1988, %v1719
      %v2022 = vsel %vm1996, %v1989, %v1721
      %v2023 = vsel %vm1996, %v1990, %v1723
      %v2024 = vsel %vm1996, %v1991, %v1725
      %v2025 = vsel %vm1996, %v1992, %v1727
      %v2026 = vsel %vm1996, %v1993, %v1729
      %v2027 = vsel %vm1996, %v1994, %v1731
      %v2028 = vsel %vm1996, %v1995, %v1733
      %v2029 = vpack.c.bf16 %v1998, %v1997
      %v2030 = vpack.c.bf16 %v2000, %v1999
      %v2031 = vpack.c.bf16 %v2002, %v2001
      %v2032 = vpack.c.bf16 %v2004, %v2003
      %v2033 = vpack.c.bf16 %v2006, %v2005
      %v2034 = vpack.c.bf16 %v2008, %v2007
      %v2035 = vpack.c.bf16 %v2010, %v2009
      %v2036 = vpack.c.bf16 %v2012, %v2011
      %v2037 = vpack.c.bf16 %v2014, %v2013
      %v2038 = vpack.c.bf16 %v2016, %v2015
      %v2039 = vpack.c.bf16 %v2018, %v2017
      %v2040 = vpack.c.bf16 %v2020, %v2019
      %v2041 = vpack.c.bf16 %v2022, %v2021
      %v2042 = vpack.c.bf16 %v2024, %v2023
      %v2043 = vpack.c.bf16 %v2026, %v2025
      %v2044 = vpack.c.bf16 %v2028, %v2027
      %v2045 = vld [vmem:[%s3] sm:$0xf]
      %v2046 = vld [vmem:[%s3 + $0x4] sm:$0xf]
      %v2047 = vld [vmem:[%s3 + $0x8] sm:$0xf]
      %v2048 = vld [vmem:[%s3 + $0xc] sm:$0xf]
      %v2049 = vld [vmem:[%s3 + $0x10] sm:$0xf]
      %v2050 = vld [vmem:[%s3 + $0x14] sm:$0xf]
      %v2051 = vld [vmem:[%s3 + $0x18] sm:$0xf]
      %v2052 = vld [vmem:[%s3 + $0x1c] sm:$0xf]
      %v2053 = vld [vmem:[%s3 + $0x20] sm:$0xf]
      %v2054 = vld [vmem:[%s4] sm:$0x1]
      %v2056 = vlaneseq
      %v2057 = vshrl.u32 %v2056, 7
      %v2058 = vsub.s32 0, %v2057
      %v2059 = vrot.slane %v2054, %v2058
      %v2070 = vunpack.c.l.b16 %v2045
      %v2071 = vunpack.c.l.b16 %v2046
      %v2072 = vunpack.c.l.b16 %v2047
      %v2073 = vunpack.c.l.b16 %v2048
      %v2074 = vunpack.c.l.b16 %v2049
      %v2075 = vunpack.c.l.b16 %v2050
      %v2076 = vunpack.c.l.b16 %v2051
      %v2077 = vunpack.c.l.b16 %v2052
      %v2078 = vunpack.c.l.b16 %v2053
      %v2079 = vpack.c.b16 %v2071, %v2070
      %v2080 = vpack.c.b16 %v2073, %v2072
      %v2081 = vpack.c.b16 %v2075, %v2074
      %v2082 = vpack.c.b16 %v2077, %v2076
      %v2083 = vpack.c.b16 %v2078, %v2078
      %vm2088 = vcmask 588800
      %v2090 = vsel %vm2088, %v2029, 0
      %v2093 = vsel %vm2088, %v2030, 0
      %v2096 = vsel %vm2088, %v2031, 0
      %v2099 = vsel %vm2088, %v2032, 0
      %v2102 = vsel %vm2088, %v2033, 0
      %v2105 = vsel %vm2088, %v2034, 0
      %v2108 = vsel %vm2088, %v2035, 0
      %v2111 = vsel %vm2088, %v2036, 0
      %v2114 = vsel %vm2088, %v2037, 0
      %v2117 = vsel %vm2088, %v2038, 0
      %v2120 = vsel %vm2088, %v2039, 0
      %v2123 = vsel %vm2088, %v2040, 0
      %v2126 = vsel %vm2088, %v2041, 0
      %v2129 = vsel %vm2088, %v2042, 0
      %v2132 = vsel %vm2088, %v2043, 0
      %v2135 = vsel %vm2088, %v2044, 0
      %vm2137 = vcmask 1043456
      %v2139 = vsel %vm2137, %v2083, 0
      %2141 = vmatprep.subr.bf16.mxu0 0
      %2142 = vmatpush1.bf16.msra.mxu0 %v2079
      %2143 = vmatprep.subr.bf16.mxu0 0
      %2144 = vmatpush1.bf16.msra.mxu0 %v2080
      %2145 = vmatprep.subr.bf16.mxu0 0
      %2146 = vmatpush1.bf16.msra.mxu0 %v2081
      %2147 = vmatprep.subr.bf16.mxu0 0
      %2148 = vmatpush1.bf16.msra.mxu0 %v2082
      %2149 = vmatprep.subr.bf16.mxu0 0
      %2150 = vmatpush1.bf16.msra.mxu0 %v2139
      %2151 = vmatprep.subr.bf16.mxu0 0
      %2152 = vmatpush1.bf16.msra.mxu0 0
      %2153 = vmatprep.subr.bf16.mxu0 0
      %2154 = vmatpush1.bf16.msra.mxu0 0
      %2155 = vmatprep.subr.bf16.mxu0 0
      %2156 = vmatpush1.bf16.msra.mxu0 0
      %2157 = vmatprep.subr.bf16.mxu0 0
      %2158 = vmatpush1.bf16.msra.mxu0 0
      %2159 = vmatprep.subr.bf16.mxu0 0
      %2160 = vmatpush1.bf16.msra.mxu0 0
      %2161 = vmatprep.subr.bf16.mxu0 0
      %2162 = vmatpush1.bf16.msra.mxu0 0
      %2163 = vmatprep.subr.bf16.mxu0 0
      %2164 = vmatpush1.bf16.msra.mxu0 0
      %2165 = vmatprep.subr.bf16.mxu0 0
      %2166 = vmatpush1.bf16.msra.mxu0 0
      %2167 = vmatprep.subr.bf16.mxu0 0
      %2168 = vmatpush1.bf16.msra.mxu0 0
      %2169 = vmatprep.subr.bf16.mxu0 0
      %2170 = vmatpush1.bf16.msra.mxu0 0
      %2171 = vmatprep.subr.bf16.mxu0 0
      %2172 = vmatpush1.bf16.msra.mxu0 0
      %2173 = vmatprep.mubr.bf16.mxu0 0
      %2174 = vmatmul.mubr.bf16.gmra.mrb[0].mxu0 %v2090
      %v2175 = vpop.f32.mrb[0].mxu0
      %v2176 = vadd.f32 %v2059, %v2175
      %v2177 = vpop.f32.mrb[0].mxu0
      %v2178 = vpop.f32.mrb[0].mxu0
      %v2179 = vadd.f32 %v2059, %v2178
      %v2180 = vpop.f32.mrb[0].mxu0
      %2181 = vmatprep.mubr.bf16.mxu0 0
      %2182 = vmatmul.mubr.bf16.gmra.mrb[0].mxu0 %v2093
      %v2183 = vpop.f32.mrb[0].mxu0
      %v2184 = vadd.f32 %v2059, %v2183
      %v2185 = vpop.f32.mrb[0].mxu0
      %v2186 = vpop.f32.mrb[0].mxu0
      %v2187 = vadd.f32 %v2059, %v2186
      %v2188 = vpop.f32.mrb[0].mxu0
      %2189 = vmatprep.mubr.bf16.mxu0 0
      %2190 = vmatmul.mubr.bf16.gmra.mrb[0].mxu0 %v2096
      %v2191 = vpop.f32.mrb[0].mxu0
      %v2192 = vadd.f32 %v2059, %v2191
      %v2193 = vpop.f32.mrb[0].mxu0
      %v2194 = vpop.f32.mrb[0].mxu0
      %v2195 = vadd.f32 %v2059, %v2194
      %v2196 = vpop.f32.mrb[0].mxu0
      %2197 = vmatprep.mubr.bf16.mxu0 0
      %2198 = vmatmul.mubr.bf16.gmra.mrb[0].mxu0 %v2099
      %v2199 = vpop.f32.mrb[0].mxu0
      %v2200 = vadd.f32 %v2059, %v2199
      %v2201 = vpop.f32.mrb[0].mxu0
      %v2202 = vpop.f32.mrb[0].mxu0
      %v2203 = vadd.f32 %v2059, %v2202
      %v2204 = vpop.f32.mrb[0].mxu0
      %2205 = vmatprep.mubr.bf16.mxu0 0
      %2206 = vmatmul.mubr.bf16.gmra.mrb[0].mxu0 %v2102
      %v2207 = vpop.f32.mrb[0].mxu0
      %v2208 = vadd.f32 %v2059, %v2207
      %v2209 = vpop.f32.mrb[0].mxu0
      %v2210 = vpop.f32.mrb[0].mxu0
      %v2211 = vadd.f32 %v2059, %v2210
      %v2212 = vpop.f32.mrb[0].mxu0
      %2213 = vmatprep.mubr.bf16.mxu0 0
      %2214 = vmatmul.mubr.bf16.gmra.mrb[0].mxu0 %v2105
      %v2215 = vpop.f32.mrb[0].mxu0
      %v2216 = vadd.f32 %v2059, %v2215
      %v2217 = vpop.f32.mrb[0].mxu0
      %v2218 = vpop.f32.mrb[0].mxu0
      %v2219 = vadd.f32 %v2059, %v2218
      %v2220 = vpop.f32.mrb[0].mxu0
      %2221 = vmatprep.mubr.bf16.mxu0 0
      %2222 = vmatmul.mubr.bf16.gmra.mrb[0].mxu0 %v2108
      %v2223 = vpop.f32.mrb[0].mxu0
      %v2224 = vadd.f32 %v2059, %v2223
      %v2225 = vpop.f32.mrb[0].mxu0
      %v2226 = vpop.f32.mrb[0].mxu0
      %v2227 = vadd.f32 %v2059, %v2226
      %v2228 = vpop.f32.mrb[0].mxu0
      %2229 = vmatprep.mubr.bf16.mxu0 0
      %2230 = vmatmul.mubr.bf16.gmra.mrb[0].mxu0 %v2111
      %v2231 = vpop.f32.mrb[0].mxu0
      %v2232 = vadd.f32 %v2059, %v2231
      %v2233 = vpop.f32.mrb[0].mxu0
      %v2234 = vpop.f32.mrb[0].mxu0
      %v2235 = vadd.f32 %v2059, %v2234
      %v2236 = vpop.f32.mrb[0].mxu0
      %2237 = vmatprep.mubr.bf16.mxu0 0
      %2238 = vmatmul.mubr.bf16.gmra.mrb[0].mxu0 %v2114
      %v2239 = vpop.f32.mrb[0].mxu0
      %v2240 = vadd.f32 %v2059, %v2239
      %v2241 = vpop.f32.mrb[0].mxu0
      %v2242 = vpop.f32.mrb[0].mxu0
      %v2243 = vadd.f32 %v2059, %v2242
      %v2244 = vpop.f32.mrb[0].mxu0
      %2245 = vmatprep.mubr.bf16.mxu0 0
      %2246 = vmatmul.mubr.bf16.gmra.mrb[0].mxu0 %v2117
      %v2247 = vpop.f32.mrb[0].mxu0
      %v2248 = vadd.f32 %v2059, %v2247
      %v2249 = vpop.f32.mrb[0].mxu0
      %v2250 = vpop.f32.mrb[0].mxu0
      %v2251 = vadd.f32 %v2059, %v2250
      %v2252 = vpop.f32.mrb[0].mxu0
      %2253 = vmatprep.mubr.bf16.mxu0 0
      %2254 = vmatmul.mubr.bf16.gmra.mrb[0].mxu0 %v2120
      %v2255 = vpop.f32.mrb[0].mxu0
      %v2256 = vadd.f32 %v2059, %v2255
      %v2257 = vpop.f32.mrb[0].mxu0
      %v2258 = vpop.f32.mrb[0].mxu0
      %v2259 = vadd.f32 %v2059, %v2258
      %v2260 = vpop.f32.mrb[0].mxu0
      %2261 = vmatprep.mubr.bf16.mxu0 0
      %2262 = vmatmul.mubr.bf16.gmra.mrb[0].mxu0 %v2123
      %v2263 = vpop.f32.mrb[0].mxu0
      %v2264 = vadd.f32 %v2059, %v2263
      %v2265 = vpop.f32.mrb[0].mxu0
      %v2266 = vpop.f32.mrb[0].mxu0
      %v2267 = vadd.f32 %v2059, %v2266
      %v2268 = vpop.f32.mrb[0].mxu0
      %2269 = vmatprep.mubr.bf16.mxu0 0
      %2270 = vmatmul.mubr.bf16.gmra.mrb[0].mxu0 %v2126
      %v2271 = vpop.f32.mrb[0].mxu0
      %v2272 = vadd.f32 %v2059, %v2271
      %v2273 = vpop.f32.mrb[0].mxu0
      %v2274 = vpop.f32.mrb[0].mxu0
      %v2275 = vadd.f32 %v2059, %v2274
      %v2276 = vpop.f32.mrb[0].mxu0
      %2277 = vmatprep.mubr.bf16.mxu0 0
      %2278 = vmatmul.mubr.bf16.gmra.mrb[0].mxu0 %v2129
      %v2279 = vpop.f32.mrb[0].mxu0
      %v2280 = vadd.f32 %v2059, %v2279
      %v2281 = vpop.f32.mrb[0].mxu0
      %v2282 = vpop.f32.mrb[0].mxu0
      %v2283 = vadd.f32 %v2059, %v2282
      %v2284 = vpop.f32.mrb[0].mxu0
      %2285 = vmatprep.mubr.bf16.mxu0 0
      %2286 = vmatmul.mubr.bf16.gmra.mrb[0].mxu0 %v2132
      %v2287 = vpop.f32.mrb[0].mxu0
      %v2288 = vadd.f32 %v2059, %v2287
      %v2289 = vpop.f32.mrb[0].mxu0
      %v2290 = vpop.f32.mrb[0].mxu0
      %v2291 = vadd.f32 %v2059, %v2290
      %v2292 = vpop.f32.mrb[0].mxu0
      %2293 = vmatprep.mubr.bf16.mxu0 0
      %2294 = vmatmul.mubr.bf16.gmra.mrb[0].mxu0 %v2135
      %v2295 = vpop.f32.mrb[0].mxu0
      %v2296 = vadd.f32 %v2059, %v2295
      %v2297 = vpop.f32.mrb[0].mxu0
      %v2298 = vpop.f32.mrb[0].mxu0
      %v2299 = vadd.f32 %v2059, %v2298
      %v2300 = vpop.f32.mrb[0].mxu0
      %2301 = vdwg.mxu0
      %vm2302 = vcmask 31744
      %2303 = vst.msk [vmem:[%s258] sm:$0xff] %vm2302, %v2176
      %2304 = vst.msk [vmem:[%s258 + $0x8] sm:$0xff] %vm2302, %v2179
      %2305 = vst.msk [vmem:[%s258 + $0x10] sm:$0xff] %vm2302, %v2184
      %2306 = vst.msk [vmem:[%s258 + $0x18] sm:$0xff] %vm2302, %v2187
      %2307 = vst.msk [vmem:[%s258 + $0x20] sm:$0xff] %vm2302, %v2192
      %2308 = vst.msk [vmem:[%s258 + $0x28] sm:$0xff] %vm2302, %v2195
      %2309 = vst.msk [vmem:[%s258 + $0x30] sm:$0xff] %vm2302, %v2200
      %2310 = vst.msk [vmem:[%s258 + $0x38] sm:$0xff] %vm2302, %v2203
      %2311 = vst.msk [vmem:[%s258 + $0x40] sm:$0xff] %vm2302, %v2208
      %2312 = vst.msk [vmem:[%s258 + $0x48] sm:$0xff] %vm2302, %v2211
      %2313 = vst.msk [vmem:[%s258 + $0x50] sm:$0xff] %vm2302, %v2216
      %2314 = vst.msk [vmem:[%s258 + $0x58] sm:$0xff] %vm2302, %v2219
      %2315 = vst.msk [vmem:[%s258 + $0x60] sm:$0xff] %vm2302, %v2224
      %2316 = vst.msk [vmem:[%s258 + $0x68] sm:$0xff] %vm2302, %v2227
      %2317 = vst.msk [vmem:[%s258 + $0x70] sm:$0xff] %vm2302, %v2232
      %2318 = vst.msk [vmem:[%s258 + $0x78] sm:$0xff] %vm2302, %v2235
      %2319 = vst.msk [vmem:[%s258 + $0x80] sm:$0xff] %vm2302, %v2240
      %2320 = vst.msk [vmem:[%s258 + $0x88] sm:$0xff] %vm2302, %v2243
      %2321 = vst.msk [vmem:[%s258 + $0x90] sm:$0xff] %vm2302, %v2248
      %2322 = vst.msk [vmem:[%s258 + $0x98] sm:$0xff] %vm2302, %v2251
      %2323 = vst.msk [vmem:[%s258 + $0xa0] sm:$0xff] %vm2302, %v2256
      %2324 = vst.msk [vmem:[%s258 + $0xa8] sm:$0xff] %vm2302, %v2259
      %2325 = vst.msk [vmem:[%s258 + $0xb0] sm:$0xff] %vm2302, %v2264
      %2326 = vst.msk [vmem:[%s258 + $0xb8] sm:$0xff] %vm2302, %v2267
      %2327 = vst.msk [vmem:[%s258 + $0xc0] sm:$0xff] %vm2302, %v2272
      %2328 = vst.msk [vmem:[%s258 + $0xc8] sm:$0xff] %vm2302, %v2275
      %2329 = vst.msk [vmem:[%s258 + $0xd0] sm:$0xff] %vm2302, %v2280
      %2330 = vst.msk [vmem:[%s258 + $0xd8] sm:$0xff] %vm2302, %v2283
      %2331 = vst.msk [vmem:[%s258 + $0xe0] sm:$0xff] %vm2302, %v2288
      %2332 = vst.msk [vmem:[%s258 + $0xe8] sm:$0xff] %vm2302, %v2291
      %2333 = vst.msk [vmem:[%s258 + $0xf0] sm:$0xff] %vm2302, %v2296
      %2334 = vst.msk [vmem:[%s258 + $0xf8] sm:$0xff] %vm2302, %v2299
      %v2335 = vsel %vm2302, %v2176, 0.0
      %v2336 = vsel %vm2302, %v2179, 0.0
      %v2337 = vadd.f32 %v2335, %v2336
      %v2338 = vsel %vm2302, %v2184, 0.0
      %v2339 = vadd.f32 %v2337, %v2338
      %v2340 = vsel %vm2302, %v2187, 0.0
      %v2341 = vadd.f32 %v2339, %v2340
      %v2342 = vsel %vm2302, %v2192, 0.0
      %v2343 = vadd.f32 %v2341, %v2342
      %v2344 = vsel %vm2302, %v2195, 0.0
      %v2345 = vadd.f32 %v2343, %v2344
      %v2346 = vsel %vm2302, %v2200, 0.0
      %v2347 = vadd.f32 %v2345, %v2346
      %v2348 = vsel %vm2302, %v2203, 0.0
      %v2349 = vadd.f32 %v2347, %v2348
      %v2350 = vsel %vm2302, %v2208, 0.0
      %v2351 = vadd.f32 %v2349, %v2350
      %v2352 = vsel %vm2302, %v2211, 0.0
      %v2353 = vadd.f32 %v2351, %v2352
      %v2354 = vsel %vm2302, %v2216, 0.0
      %v2355 = vadd.f32 %v2353, %v2354
      %v2356 = vsel %vm2302, %v2219, 0.0
      %v2357 = vadd.f32 %v2355, %v2356
      %v2358 = vsel %vm2302, %v2224, 0.0
      %v2359 = vadd.f32 %v2357, %v2358
      %v2360 = vsel %vm2302, %v2227, 0.0
      %v2361 = vadd.f32 %v2359, %v2360
      %v2362 = vsel %vm2302, %v2232, 0.0
      %v2363 = vadd.f32 %v2361, %v2362
      %v2364 = vsel %vm2302, %v2235, 0.0
      %v2365 = vadd.f32 %v2363, %v2364
      %v2366 = vsel %vm2302, %v2240, 0.0
      %v2367 = vadd.f32 %v2365, %v2366
      %v2368 = vsel %vm2302, %v2243, 0.0
      %v2369 = vadd.f32 %v2367, %v2368
      %v2370 = vsel %vm2302, %v2248, 0.0
      %v2371 = vadd.f32 %v2369, %v2370
      %v2372 = vsel %vm2302, %v2251, 0.0
      %v2373 = vadd.f32 %v2371, %v2372
      %v2374 = vsel %vm2302, %v2256, 0.0
      %v2375 = vadd.f32 %v2373, %v2374
      %v2376 = vsel %vm2302, %v2259, 0.0
      %v2377 = vadd.f32 %v2375, %v2376
      %v2378 = vsel %vm2302, %v2264, 0.0
      %v2379 = vadd.f32 %v2377, %v2378
      %v2380 = vsel %vm2302, %v2267, 0.0
      %v2381 = vadd.f32 %v2379, %v2380
      %v2382 = vsel %vm2302, %v2272, 0.0
      %v2383 = vadd.f32 %v2381, %v2382
      %v2384 = vsel %vm2302, %v2275, 0.0
      %v2385 = vadd.f32 %v2383, %v2384
      %v2386 = vsel %vm2302, %v2280, 0.0
      %v2387 = vadd.f32 %v2385, %v2386
      %v2388 = vsel %vm2302, %v2283, 0.0
      %v2389 = vadd.f32 %v2387, %v2388
      %v2390 = vsel %vm2302, %v2288, 0.0
      %v2391 = vadd.f32 %v2389, %v2390
      %v2392 = vsel %vm2302, %v2291, 0.0
      %v2393 = vadd.f32 %v2391, %v2392
      %v2394 = vsel %vm2302, %v2296, 0.0
      %v2395 = vadd.f32 %v2393, %v2394
      %v2396 = vsel %vm2302, %v2299, 0.0
      %v2397 = vadd.f32 %v2395, %v2396
      %v2398 = vrot.slane %v2397, 4
      %v2399 = vadd.f32 %v2397, %v2398
      %v2400 = vrot.slane %v2399, 2
      %v2401 = vadd.f32 %v2399, %v2400
      %v2402 = vrot.slane %v2401, 1
      %v2403 = vadd.f32 %v2401, %v2402
      %v2404 = vmul.f32 %v2176, %v2176
      %v2405 = vmul.f32 %v2179, %v2179
      %v2406 = vmul.f32 %v2184, %v2184
      %v2407 = vmul.f32 %v2187, %v2187
      %v2408 = vmul.f32 %v2192, %v2192
      %v2409 = vmul.f32 %v2195, %v2195
      %v2410 = vmul.f32 %v2200, %v2200
      %v2411 = vmul.f32 %v2203, %v2203
      %v2412 = vmul.f32 %v2208, %v2208
      %v2413 = vmul.f32 %v2211, %v2211
      %v2414 = vmul.f32 %v2216, %v2216
      %v2415 = vmul.f32 %v2219, %v2219
      %v2416 = vmul.f32 %v2224, %v2224
      %v2417 = vmul.f32 %v2227, %v2227
      %v2418 = vmul.f32 %v2232, %v2232
      %v2419 = vmul.f32 %v2235, %v2235
      %v2420 = vmul.f32 %v2240, %v2240
      %v2421 = vmul.f32 %v2243, %v2243
      %v2422 = vmul.f32 %v2248, %v2248
      %v2423 = vmul.f32 %v2251, %v2251
      %v2424 = vmul.f32 %v2256, %v2256
      %v2425 = vmul.f32 %v2259, %v2259
      %v2426 = vmul.f32 %v2264, %v2264
      %v2427 = vmul.f32 %v2267, %v2267
      %v2428 = vmul.f32 %v2272, %v2272
      %v2429 = vmul.f32 %v2275, %v2275
      %v2430 = vmul.f32 %v2280, %v2280
      %v2431 = vmul.f32 %v2283, %v2283
      %v2432 = vmul.f32 %v2288, %v2288
      %v2433 = vmul.f32 %v2291, %v2291
      %v2434 = vmul.f32 %v2296, %v2296
      %v2435 = vmul.f32 %v2299, %v2299
      %v2436 = vsel %vm2302, %v2404, 0.0
      %v2437 = vsel %vm2302, %v2405, 0.0
      %v2438 = vadd.f32 %v2436, %v2437
      %v2439 = vsel %vm2302, %v2406, 0.0
      %v2440 = vadd.f32 %v2438, %v2439
      %v2441 = vsel %vm2302, %v2407, 0.0
      %v2442 = vadd.f32 %v2440, %v2441
      %v2443 = vsel %vm2302, %v2408, 0.0
      %v2444 = vadd.f32 %v2442, %v2443
      %v2445 = vsel %vm2302, %v2409, 0.0
      %v2446 = vadd.f32 %v2444, %v2445
      %v2447 = vsel %vm2302, %v2410, 0.0
      %v2448 = vadd.f32 %v2446, %v2447
      %v2449 = vsel %vm2302, %v2411, 0.0
      %v2450 = vadd.f32 %v2448, %v2449
      %v2451 = vsel %vm2302, %v2412, 0.0
      %v2452 = vadd.f32 %v2450, %v2451
      %v2453 = vsel %vm2302, %v2413, 0.0
      %v2454 = vadd.f32 %v2452, %v2453
      %v2455 = vsel %vm2302, %v2414, 0.0
      %v2456 = vadd.f32 %v2454, %v2455
      %v2457 = vsel %vm2302, %v2415, 0.0
      %v2458 = vadd.f32 %v2456, %v2457
      %v2459 = vsel %vm2302, %v2416, 0.0
      %v2460 = vadd.f32 %v2458, %v2459
      %v2461 = vsel %vm2302, %v2417, 0.0
      %v2462 = vadd.f32 %v2460, %v2461
      %v2463 = vsel %vm2302, %v2418, 0.0
      %v2464 = vadd.f32 %v2462, %v2463
      %v2465 = vsel %vm2302, %v2419, 0.0
      %v2466 = vadd.f32 %v2464, %v2465
      %v2467 = vsel %vm2302, %v2420, 0.0
      %v2468 = vadd.f32 %v2466, %v2467
      %v2469 = vsel %vm2302, %v2421, 0.0
      %v2470 = vadd.f32 %v2468, %v2469
      %v2471 = vsel %vm2302, %v2422, 0.0
      %v2472 = vadd.f32 %v2470, %v2471
      %v2473 = vsel %vm2302, %v2423, 0.0
      %v2474 = vadd.f32 %v2472, %v2473
      %v2475 = vsel %vm2302, %v2424, 0.0
      %v2476 = vadd.f32 %v2474, %v2475
      %v2477 = vsel %vm2302, %v2425, 0.0
      %v2478 = vadd.f32 %v2476, %v2477
      %v2479 = vsel %vm2302, %v2426, 0.0
      %v2480 = vadd.f32 %v2478, %v2479
      %v2481 = vsel %vm2302, %v2427, 0.0
      %v2482 = vadd.f32 %v2480, %v2481
      %v2483 = vsel %vm2302, %v2428, 0.0
      %v2484 = vadd.f32 %v2482, %v2483
      %v2485 = vsel %vm2302, %v2429, 0.0
      %v2486 = vadd.f32 %v2484, %v2485
      %v2487 = vsel %vm2302, %v2430, 0.0
      %v2488 = vadd.f32 %v2486, %v2487
      %v2489 = vsel %vm2302, %v2431, 0.0
      %v2490 = vadd.f32 %v2488, %v2489
      %v2491 = vsel %vm2302, %v2432, 0.0
      %v2492 = vadd.f32 %v2490, %v2491
      %v2493 = vsel %vm2302, %v2433, 0.0
      %v2494 = vadd.f32 %v2492, %v2493
      %v2495 = vsel %vm2302, %v2434, 0.0
      %v2496 = vadd.f32 %v2494, %v2495
      %v2497 = vsel %vm2302, %v2435, 0.0
      %v2498 = vadd.f32 %v2496, %v2497
      %v2499 = vrot.slane %v2498, 4
      %v2500 = vadd.f32 %v2498, %v2499
      %v2501 = vrot.slane %v2500, 2
      %v2502 = vadd.f32 %v2500, %v2501
      %v2503 = vrot.slane %v2502, 1
      %v2504 = vadd.f32 %v2502, %v2503
      %vm2505 = vcmask 1040384
      %v2506 = vsel %vm2505, %v2403, %v2504
      %vm2507 = vcmask 25600
      %2508 = vst.msk [vmem:[%s262] sm:$0x3] %vm2507, %v2506
      %p2509 = scmp.lt.s32.totalorder %s18, 1
      %s2510 = scalar_select %p2509, %s18, 1
      %s2511 = smul.addr %s2510, 32
      %s2512 = smul.addr %s2511, 8
      %s2513 = scalar_lea.vmem %s5, %s2512
      %p2514 = scmp.lt.s32.totalorder %s18, 1
      %s2515 = scalar_select %p2514, %s18, 1
      %s2516 = smul.addr %s2515, 2
      %s2517 = scalar_lea.vmem %s6, %s2516
      // Predicated region
      $region41: #{block_forward.4} parent=39 // pred_check
        %p2518 = pneg %p146
      $region42: #{block_forward.4} parent=39 // pred_check_branch
        %2520 = sbr.rel (%p2518) target = $region44
      $region43: #{block_forward.4} parent=39 // pred_region
        _
      $region44: #{block_forward.4} parent=39 // pred_fallthru
        _
      // Predicated region
      $region45: #{block_forward.4} parent=39 // pred_check
        %p2521 = pneg %p172
      $region46: #{block_forward.4} parent=39 // pred_check_branch
        %2523 = sbr.rel (%p2521) target = $region48
      $region47: #{block_forward.4} parent=39 // pred_region
        _
      $region48: #{block_forward.4} parent=39 // pred_fallthru
        _
    $region40: #{block_forward.4} parent=5 // pred_fallthru
      _
    %p2524 = scmp.le.s32.totalorder 2, %s13
    // Predicated region
    $region49: #{block_forward.4} parent=5 // pred_check
      %p2525 = pneg %p2524
    $region50: #{block_forward.4} parent=5 // pred_check_branch
      %2527 = sbr.rel (%p2525) target = $region52
    $region51: #{block_forward.4} parent=5 // pred_region
      %s2528 = ssub.s32 %s13, 2
      // Predicated region
      $region53: #{block_forward.4} parent=51 // pred_check
        %p2529 = pneg %p152
      $region54: #{block_forward.4} parent=51 // pred_check_branch
        %2531 = sbr.rel (%p2529) target = $region56
      $region55: #{block_forward.4} parent=51 // pred_region
        %p2532 = scmp.lt.s32.totalorder %s19, 1
        %s2533 = scalar_select %p2532, %s19, 1
        %s2534 = smul.addr %s2533, 32
        %s2535 = smul.addr %s2534, 8
        %s2536 = scalar_lea.vmem %s5, %s2535
      $region56: #{block_forward.4} parent=51 // pred_fallthru
        _
      // Predicated region
      $region57: #{block_forward.4} parent=51 // pred_check
        %p2537 = pneg %p178
      $region58: #{block_forward.4} parent=51 // pred_check_branch
        %2539 = sbr.rel (%p2537) target = $region60
      $region59: #{block_forward.4} parent=51 // pred_region
        %p2540 = scmp.lt.s32.totalorder %s19, 1
        %s2541 = scalar_select %p2540, %s19, 1
        %s2542 = smul.addr %s2541, 2
        %s2543 = scalar_lea.vmem %s6, %s2542
      $region60: #{block_forward.4} parent=51 // pred_fallthru
        _
    $region52: #{block_forward.4} parent=5 // pred_fallthru
      _
  $region6: #{block_forward.4} parent=0 // loop_footer
    %s17 = sadd.s32 1, %s13
  $region7: #{block_forward.4} parent=0 // loop_footer_branch
    %12 = sbr.rel target = $region3
  $region8: #{block_forward.4} parent=0 // loop_exit
    _

</llo_original>
